<compile_context>
chip_gen: v6e
topology: v6e:2x2x1
jax: 0.10.0
libtpu: 0.0.40
codegen_flags: <defaults>
</compile_context>

<pallas_src>
import functools
import math

import jax
import jax.numpy as jnp
from jax.experimental import pallas as pl
from jax.experimental.pallas import tpu as pltpu


# ---------------------------------------------------------------------------
# Kernel
# ---------------------------------------------------------------------------
def _resnet_pointnet_kernel(p_ref, wpos_ref, bpos_ref,
                            w0_ref, b0_ref, w1_ref, b1_ref, ws_ref,
                            wc_ref, bc_ref, out_ref, *, bf16_eltwise):
    f32, bf16 = jnp.float32, jnp.bfloat16

    B_TILE, T, in_dim = p_ref.shape
    H = w1_ref.shape[-1]
    n_blocks = w0_ref.shape[0]
    M = B_TILE * T

    def mm(a_bf, w_bf):
        # bf16 operands, f32 accumulate on the MXU.
        return jnp.dot(a_bf, w_bf, preferred_element_type=f32)

    def op_pair(x):
        """bf16 MXU operands (x, relu(x)); one cast pass per block on v6e/v7x."""
        if bf16_eltwise:
            xb = x.astype(bf16)
            return xb, jnp.maximum(xb, 0)          # relu commutes with bf16 rounding
        return x.astype(bf16), jnp.maximum(x, 0.0).astype(bf16)

    def relu_op(x):
        if bf16_eltwise:
            return jnp.maximum(x.astype(bf16), 0)
        return jnp.maximum(x, 0.0).astype(bf16)

    # ---- fc_pos: tiny K (3-4) -> rank-1 VPU accumulation in f32 -----------
    x = p_ref[...].reshape(M, in_dim).astype(f32)
    if in_dim <= 8:
        net = x[:, 0:1] * wpos_ref[0:1, :]
        for d in range(1, in_dim):
            net = net + x[:, d:d + 1] * wpos_ref[d:d + 1, :]
        net = net + bpos_ref[...]                                  # (M, 2H) f32
    else:
        net = mm(x.astype(bf16), wpos_ref[...].astype(bf16)) + bpos_ref[...]

    # ---- block 0: input is the raw (M, 2H) features ------------------------
    net_op, rnet_op = op_pair(net)
    h = mm(rnet_op, w0_ref[0]) + b0_ref[0]                         # (M, H)
    dx = mm(relu_op(h), w1_ref[0])                                 # (M, H), bias fused below
    feat = mm(net_op, ws_ref[0]) + dx + b1_ref[0]                  # residual + bias, one pass

    # ---- blocks 1..n-1: input is concat([feat, pooled bcast]) -------------
    # Split the (2H, H) weights instead of materializing the concat; the
    # pooled half is a (B_TILE, H) matmul broadcast back over points, with the
    # per-row biases folded into the pooled term.
    # TODO(synk): if a bundle dump shows VMEM spills at large H, convert this
    # trip-count-4 Python loop to lax.fori_loop with dynamic w*_ref[i] indexing
    # so live ranges are bounded.
    for i in range(1, n_blocks):
        pooled = jnp.max(feat.reshape(B_TILE, T, H), axis=1)       # (B_TILE, H) f32
        feat_op, rf_op = op_pair(feat)                             # (M, H) bf16, cast once
        pooled_op = pooled.astype(bf16)
        rp_op = jnp.maximum(pooled_op, 0)
        w0i = w0_ref[i]                                            # (2H, H) bf16
        wsi = ws_ref[i]
        # NOTE: relu(pooled) != pooled, so the two pooled matmuls stay separate.
        h_pool = mm(rp_op, w0i[H:, :]) + b0_ref[i]                 # (B_TILE, H), b0 folded
        h = mm(rf_op, w0i[:H, :]).reshape(B_TILE, T, H) + h_pool[:, None, :]
        dx = mm(relu_op(h).reshape(M, H), w1_ref[i])               # (M, H), b1 folded below
        xs_pool = mm(pooled_op, wsi[H:, :]) + b1_ref[i]            # (B_TILE, H)
        feat = ((mm(feat_op, wsi[:H, :]) + dx).reshape(B_TILE, T, H)
                + xs_pool[:, None, :]).reshape(M, H)

    # ---- final max-pool over points, then fc_c(relu(.)) -------------------
    final = jnp.max(feat.reshape(B_TILE, T, H), axis=1)            # (B_TILE, H)
    final_op = jnp.maximum(final, 0.0).astype(bf16)
    c = mm(final_op, wc_ref[...]) + bc_ref[...]                    # (B_TILE, out_pad)
    out_ref[0] = c.astype(out_ref.dtype)


# ---------------------------------------------------------------------------
# Wrapper helpers
# ---------------------------------------------------------------------------
def _tpu_profile():
    kind = ""
    try:
        kind = jax.devices()[0].device_kind.lower()
    except Exception:
        pass
    vmem_cap = 128 * 1024 * 1024
    try:
        vmem_cap = int(pltpu.get_tpu_info().vmem_capacity_bytes)
    except Exception:
        pass
    is_v6_plus = ("v6" in kind) or ("v7" in kind) or ("tpu7" in kind)
    is_v7 = ("v7" in kind) or ("tpu7" in kind)
    return dict(
        kind=kind,
        vmem_cap=vmem_cap,
        bf16_eltwise=is_v6_plus,            # v6e/v7x VPU has bf16; v5e/older keep f32
        m_align=256 if is_v6_plus else 128,  # MXU row tile: 2x256^2 vs 4x128^2
        target_m=1024 if is_v7 else 2048,    # v7x: 64 MiB VMEM/TC; v5e/v6e: 128 MiB
        min_tiles=2 if is_v7 else 1,         # v7x: 2 TensorCores per chip
    )


def _choose_b_tile(B, T_pad, target_m, m_align, min_tiles):
    """Pick the per-grid-step batch tile (M = B_TILE*T_pad ~ target_m rows)."""
    # B_TILE granularity that keeps M a multiple of the MXU row tile.
    step = max(1, m_align // math.gcd(T_pad, m_align))
    bt = max(1, target_m // T_pad)
    if bt >= B:
        bt = B                                # whole batch in one tile: no fake rows
    else:
        bt = max(step, (bt // step) * step)   # large batch: keep M aligned
    if min_tiles > 1 and B > 1:
        bt = min(bt, -(-B // min_tiles))      # >= min_tiles grid steps (2 TCs)
    return max(1, bt)


def _vmem_limit_bytes(weights, B_TILE, T_pad, in_dim, H, out_pad,
                      vmem_cap, weight_buf_count):
    wb = sum(int(a.size) * a.dtype.itemsize for a in weights) * weight_buf_count
    io = 2 * B_TILE * T_pad * in_dim * 4 + 2 * B_TILE * out_pad * 4
    M = B_TILE * T_pad
    acts = 2 * M * (2 * H) * 4 + 6 * M * H * 4      # generous live-slab estimate
    need = wb + io + acts + (16 << 20)              # + Mosaic internal scratch headroom
    return int(max(32 << 20, min(need, int(vmem_cap * 0.7))))


# ---------------------------------------------------------------------------
# Public entry point
# ---------------------------------------------------------------------------
def resnet_pointnet(p, params):
    wpos, bpos, w0, b0, w1, b1, ws, wc, bc = params
    B, T, in_dim = p.shape
    H = w1.shape[-1]
    out_dim = wc.shape[-1]
    f32, bf16 = jnp.float32, jnp.bfloat16

    prof = _tpu_profile()

    # Pad T to a sublane multiple by repeating the edge point: reshapes and
    # max-pools stay layout no-ops, and duplicated points never change a max.
    T_pad = ((T + 7) // 8) * 8
    if T_pad != T:
        p = jnp.pad(p, ((0, 0), (0, T_pad - T), (0, 0)), mode="edge")

    # Batch tiling (generation-aware target M, alignment, >=2 tiles on v7x).
    B_TILE = _choose_b_tile(B, T_pad, prof["target_m"],
                            prof["m_align"], prof["min_tiles"])
    num_tiles = pl.cdiv(B, B_TILE)
    B_pad = num_tiles * B_TILE
    if B_pad != B:
        p = jnp.pad(p, ((0, B_pad - B), (0, 0), (0, 0)))

    # Lane-dense output: pad out_dim to a multiple of 128 (zeros sliced off).
    out_pad = ((out_dim + 127) // 128) * 128
    if out_pad != out_dim:
        wc = jnp.pad(wc, ((0, 0), (0, out_pad - out_dim)))
        bc = jnp.pad(bc, ((0, 0), (0, out_pad - out_dim)))

    # bf16 matmul weights; biases + tiny fc_pos weight stay f32 (VPU path).
    p = p.astype(f32)
    wpos, bpos = wpos.astype(f32), bpos.astype(f32)
    w0, w1, ws, wc = (a.astype(bf16) for a in (w0, w1, ws, wc))
    b0, b1, bc = (a.astype(f32) for a in (b0, b1, bc))
    weights = (wpos, bpos, w0, b0, w1, b1, ws, wc, bc)

    kernel = functools.partial(_resnet_pointnet_kernel,
                               bf16_eltwise=prof["bf16_eltwise"])

    def run(single_buffer_weights):
        buf_count = 1 if single_buffer_weights else 2

        def const_spec(a):
            nd = a.ndim
            idx = lambda b, _nd=nd: (0,) * _nd
            if single_buffer_weights:
                # Grid-invariant block: a single buffer halves its VMEM cost.
                return pl.BlockSpec(a.shape, idx, pipeline_mode=pl.Buffered(1))
            return pl.BlockSpec(a.shape, idx)

        vmem_limit = _vmem_limit_bytes(weights, B_TILE, T_pad, in_dim, H,
                                       out_pad, prof["vmem_cap"], buf_count)
        out = pl.pallas_call(
            kernel,
            out_shape=jax.ShapeDtypeStruct((num_tiles, B_TILE, out_pad), f32),
            grid=(num_tiles,),
            in_specs=[pl.BlockSpec((B_TILE, T_pad, in_dim), lambda b: (b, 0, 0))]
                     + [const_spec(a) for a in weights],
            out_specs=pl.BlockSpec((1, B_TILE, out_pad), lambda b: (b, 0, 0)),
            compiler_params=pltpu.CompilerParams(
                dimension_semantics=("parallel",),
                vmem_limit_bytes=vmem_limit),
        )(p, *weights)
        return jax.block_until_ready(out)

    try:
        out = run(True)
    except Exception:
        # pipeline_mode=pl.Buffered(1) not supported/accepted on this jax
        # version: fall back to default double-buffered weight blocks.
        out = run(False)

    return out.reshape(B_pad, out_pad)[:B, :out_dim]


# ---------------------------------------------------------------------------
# Pure-JAX reference / test harness
# ---------------------------------------------------------------------------
def resnet_pointnet_reference(p, params):
    """Pure-JAX reference mirroring the PyTorch forward pass (f32)."""
    wpos, bpos, w0, b0, w1, b1, ws, wc, bc = params
    relu = jax.nn.relu

    def block(x, i):
        net = relu(x) @ w0[i] + b0[i][0]
        dx = relu(net) @ w1[i] + b1[i][0]
        x_s = x @ ws[i]
        return x_s + dx

    net = p @ wpos + bpos[0]
    net = block(net, 0)
    for i in range(1, w0.shape[0]):
        pooled = jnp.max(net, axis=1, keepdims=True)
        net = jnp.concatenate([net, jnp.broadcast_to(pooled, net.shape)], axis=2)
        net = block(net, i)
    net = jnp.max(net, axis=1)
    return relu(net) @ wc + bc[0]


def quantize_like_kernel(params):
    """Apply the kernel's intentional bf16 weight quantization to the params."""
    wpos, bpos, w0, b0, w1, b1, ws, wc, bc = params
    q = lambda a: a.astype(jnp.bfloat16).astype(jnp.float32)
    # The kernel only routes fc_pos through the MXU (bf16) when in_dim > 8.
    wpos_q = q(wpos) if wpos.shape[0] > 8 else wpos
    return (wpos_q, bpos, q(w0), b0, q(w1), b1, q(ws), q(wc), bc)


def make_params(key, in_dim, hidden_dim, out_dim):
    # Deterministic synthetic init (module shapes only; the reference module
    # zero-inits fc_1.weight, here we use small random values so the kernel's
    # second matmul is exercised non-trivially).
    H = hidden_dim
    ks = jax.random.split(key, 9)
    s = 0.1
    wpos = s * jax.random.normal(ks[0], (in_dim, 2 * H), jnp.float32)
    bpos = s * jax.random.normal(ks[1], (1, 2 * H), jnp.float32)
    w0 = s * jax.random.normal(ks[2], (5, 2 * H, H), jnp.float32)
    b0 = s * jax.random.normal(ks[3], (5, 1, H), jnp.float32)
    w1 = s * jax.random.normal(ks[4], (5, H, H), jnp.float32)
    b1 = s * jax.random.normal(ks[5], (5, 1, H), jnp.float32)
    ws = s * jax.random.normal(ks[6], (5, 2 * H, H), jnp.float32)
    wc = s * jax.random.normal(ks[7], (H, out_dim), jnp.float32)
    bc = s * jax.random.normal(ks[8], (1, out_dim), jnp.float32)
    return (wpos, bpos, w0, b0, w1, b1, ws, wc, bc)


if __name__ == "__main__":
    B, T, in_dim = 2, 8, 4      # batch, num points, point feature dim
    hidden_dim, out_dim = 32, 32

    key = jax.random.PRNGKey(0)
    kp, kw = jax.random.split(key)
    p = jax.random.normal(kp, (B, T, in_dim), jnp.float32)
    params = make_params(kw, in_dim, hidden_dim, out_dim)

    c = resnet_pointnet(p, params)
    c = jax.block_until_ready(c)

    # Compare against the f32 reference evaluated with the same bf16-quantized
    # matmul weights (the kernel's intentional precision tradeoff); remaining
    # drift comes only from bf16 activation operands with f32 accumulation.
    c_ref = resnet_pointnet_reference(p, quantize_like_kernel(params))
    assert c.shape == (B, out_dim)
    err = jnp.max(jnp.abs(c - c_ref))
    assert jnp.allclose(c, c_ref, atol=2e-2, rtol=2e-2), (
        f"mismatch: max abs err {err}")

    print("KERNEL_OK")
</pallas_src>

<mosaic_0001>
module attributes {stable_mosaic.version = 11 : i64} {
  func.func @_resnet_pointnet_kernel(%arg0: i32, %arg1: memref<2x8x4xf32, #tpu.memory_space<vmem>>, %arg2: memref<4x64xf32, #tpu.memory_space<vmem>>, %arg3: memref<1x64xf32, #tpu.memory_space<vmem>>, %arg4: memref<5x64x32xbf16, #tpu.memory_space<vmem>>, %arg5: memref<5x1x32xf32, #tpu.memory_space<vmem>>, %arg6: memref<5x32x32xbf16, #tpu.memory_space<vmem>>, %arg7: memref<5x1x32xf32, #tpu.memory_space<vmem>>, %arg8: memref<5x64x32xbf16, #tpu.memory_space<vmem>>, %arg9: memref<32x128xbf16, #tpu.memory_space<vmem>>, %arg10: memref<1x128xf32, #tpu.memory_space<vmem>>, %arg11: memref<1x2x128xf32, #tpu.memory_space<vmem>>) attributes {dimension_semantics = [#tpu.dimension_semantics<parallel>], iteration_bounds = array<i64: 1>, scalar_prefetch = 0 : i64, scratch_operands = 0 : i64, tpu.core_type = #tpu.core_type<tc>, window_params = [{transform_indices = @transform_0, window_bounds = array<i64: 2, 8, 4>}, {pipeline_mode = #tpu.pipeline_mode<synchronous>, transform_indices = @transform_1, window_bounds = array<i64: 4, 64>}, {pipeline_mode = #tpu.pipeline_mode<synchronous>, transform_indices = @transform_2, window_bounds = array<i64: 1, 64>}, {pipeline_mode = #tpu.pipeline_mode<synchronous>, transform_indices = @transform_3, window_bounds = array<i64: 5, 64, 32>}, {pipeline_mode = #tpu.pipeline_mode<synchronous>, transform_indices = @transform_4, window_bounds = array<i64: 5, 1, 32>}, {pipeline_mode = #tpu.pipeline_mode<synchronous>, transform_indices = @transform_5, window_bounds = array<i64: 5, 32, 32>}, {pipeline_mode = #tpu.pipeline_mode<synchronous>, transform_indices = @transform_6, window_bounds = array<i64: 5, 1, 32>}, {pipeline_mode = #tpu.pipeline_mode<synchronous>, transform_indices = @transform_7, window_bounds = array<i64: 5, 64, 32>}, {pipeline_mode = #tpu.pipeline_mode<synchronous>, transform_indices = @transform_8, window_bounds = array<i64: 32, 128>}, {pipeline_mode = #tpu.pipeline_mode<synchronous>, transform_indices = @transform_9, window_bounds = array<i64: 1, 128>}, {transform_indices = @transform_10, window_bounds = array<i64: 1, 2, 128>}]} {
    %c0 = arith.constant 0 : index
    %c0_0 = arith.constant 0 : index
    %c0_1 = arith.constant 0 : index
    %0 = vector.load %arg1[%c0, %c0_0, %c0_1] : memref<2x8x4xf32, #tpu.memory_space<vmem>>, vector<2x8x4xf32>
    %1 = vector.shape_cast %0 : vector<2x8x4xf32> to vector<16x4xf32>
    %2 = vector.extract_strided_slice %1 {offsets = [0, 0], sizes = [16, 1], strides = [1, 1]} : vector<16x4xf32> to vector<16x1xf32>
    %c0_2 = arith.constant 0 : index
    %c0_3 = arith.constant 0 : index
    %3 = vector.load %arg2[%c0_2, %c0_3] : memref<4x64xf32, #tpu.memory_space<vmem>>, vector<1x64xf32>
    %4 = vector.broadcast %2 : vector<16x1xf32> to vector<16x64xf32>
    %5 = vector.broadcast %3 : vector<1x64xf32> to vector<16x64xf32>
    %6 = arith.mulf %4, %5 : vector<16x64xf32>
    %7 = vector.extract_strided_slice %1 {offsets = [0, 1], sizes = [16, 1], strides = [1, 1]} : vector<16x4xf32> to vector<16x1xf32>
    %c1 = arith.constant 1 : index
    %c0_4 = arith.constant 0 : index
    %8 = vector.load %arg2[%c1, %c0_4] : memref<4x64xf32, #tpu.memory_space<vmem>>, vector<1x64xf32>
    %9 = vector.broadcast %7 : vector<16x1xf32> to vector<16x64xf32>
    %10 = vector.broadcast %8 : vector<1x64xf32> to vector<16x64xf32>
    %11 = arith.mulf %9, %10 : vector<16x64xf32>
    %12 = arith.addf %6, %11 : vector<16x64xf32>
    %13 = vector.extract_strided_slice %1 {offsets = [0, 2], sizes = [16, 1], strides = [1, 1]} : vector<16x4xf32> to vector<16x1xf32>
    %c2 = arith.constant 2 : index
    %c0_5 = arith.constant 0 : index
    %14 = vector.load %arg2[%c2, %c0_5] : memref<4x64xf32, #tpu.memory_space<vmem>>, vector<1x64xf32>
    %15 = vector.broadcast %13 : vector<16x1xf32> to vector<16x64xf32>
    %16 = vector.broadcast %14 : vector<1x64xf32> to vector<16x64xf32>
    %17 = arith.mulf %15, %16 : vector<16x64xf32>
    %18 = arith.addf %12, %17 : vector<16x64xf32>
    %19 = vector.extract_strided_slice %1 {offsets = [0, 3], sizes = [16, 1], strides = [1, 1]} : vector<16x4xf32> to vector<16x1xf32>
    %c3 = arith.constant 3 : index
    %c0_6 = arith.constant 0 : index
    %20 = vector.load %arg2[%c3, %c0_6] : memref<4x64xf32, #tpu.memory_space<vmem>>, vector<1x64xf32>
    %21 = vector.broadcast %19 : vector<16x1xf32> to vector<16x64xf32>
    %22 = vector.broadcast %20 : vector<1x64xf32> to vector<16x64xf32>
    %23 = arith.mulf %21, %22 : vector<16x64xf32>
    %24 = arith.addf %18, %23 : vector<16x64xf32>
    %c0_7 = arith.constant 0 : index
    %c0_8 = arith.constant 0 : index
    %25 = vector.load %arg3[%c0_7, %c0_8] : memref<1x64xf32, #tpu.memory_space<vmem>>, vector<1x64xf32>
    %26 = vector.broadcast %25 : vector<1x64xf32> to vector<16x64xf32>
    %27 = arith.addf %24, %26 : vector<16x64xf32>
    %28 = arith.truncf %27 : vector<16x64xf32> to vector<16x64xbf16>
    %cst = arith.constant 0.000000e+00 : f32
    %29 = vector.broadcast %cst : f32 to vector<16x64xf32>
    %30 = arith.maximumf %27, %29 : vector<16x64xf32>
    %31 = arith.truncf %30 : vector<16x64xf32> to vector<16x64xbf16>
    %c0_9 = arith.constant 0 : index
    %c0_10 = arith.constant 0 : index
    %c0_11 = arith.constant 0 : index
    %32 = vector.load %arg4[%c0_9, %c0_10, %c0_11] : memref<5x64x32xbf16, #tpu.memory_space<vmem>>, vector<1x64x32xbf16>
    %33 = vector.shape_cast %32 : vector<1x64x32xbf16> to vector<64x32xbf16>
    %cst_12 = arith.constant dense<0.000000e+00> : vector<16x32xf32>
    %34 = tpu.matmul %31, %33, %cst_12 {dimension_numbers = #tpu.dot_dimension_numbers<[1], [0], [0], [1], [0, 0, 1, 1], [], []>} : vector<16x64xbf16>, vector<64x32xbf16>, vector<16x32xf32> -> vector<16x32xf32>
    %c0_13 = arith.constant 0 : index
    %c0_14 = arith.constant 0 : index
    %c0_15 = arith.constant 0 : index
    %35 = vector.load %arg5[%c0_13, %c0_14, %c0_15] : memref<5x1x32xf32, #tpu.memory_space<vmem>>, vector<1x1x32xf32>
    %36 = vector.shape_cast %35 : vector<1x1x32xf32> to vector<1x32xf32>
    %37 = vector.broadcast %36 : vector<1x32xf32> to vector<16x32xf32>
    %38 = arith.addf %34, %37 : vector<16x32xf32>
    %cst_16 = arith.constant 0.000000e+00 : f32
    %39 = vector.broadcast %cst_16 : f32 to vector<16x32xf32>
    %40 = arith.maximumf %38, %39 : vector<16x32xf32>
    %41 = arith.truncf %40 : vector<16x32xf32> to vector<16x32xbf16>
    %c0_17 = arith.constant 0 : index
    %c0_18 = arith.constant 0 : index
    %c0_19 = arith.constant 0 : index
    %42 = vector.load %arg6[%c0_17, %c0_18, %c0_19] : memref<5x32x32xbf16, #tpu.memory_space<vmem>>, vector<1x32x32xbf16>
    %43 = vector.shape_cast %42 : vector<1x32x32xbf16> to vector<32x32xbf16>
    %cst_20 = arith.constant dense<0.000000e+00> : vector<16x32xf32>
    %44 = tpu.matmul %41, %43, %cst_20 {dimension_numbers = #tpu.dot_dimension_numbers<[1], [0], [0], [1], [0, 0, 1, 1], [], []>} : vector<16x32xbf16>, vector<32x32xbf16>, vector<16x32xf32> -> vector<16x32xf32>
    %c0_21 = arith.constant 0 : index
    %c0_22 = arith.constant 0 : index
    %c0_23 = arith.constant 0 : index
    %45 = vector.load %arg8[%c0_21, %c0_22, %c0_23] : memref<5x64x32xbf16, #tpu.memory_space<vmem>>, vector<1x64x32xbf16>
    %46 = vector.shape_cast %45 : vector<1x64x32xbf16> to vector<64x32xbf16>
    %cst_24 = arith.constant dense<0.000000e+00> : vector<16x32xf32>
    %47 = tpu.matmul %28, %46, %cst_24 {dimension_numbers = #tpu.dot_dimension_numbers<[1], [0], [0], [1], [0, 0, 1, 1], [], []>} : vector<16x64xbf16>, vector<64x32xbf16>, vector<16x32xf32> -> vector<16x32xf32>
    %48 = arith.addf %47, %44 : vector<16x32xf32>
    %c0_25 = arith.constant 0 : index
    %c0_26 = arith.constant 0 : index
    %c0_27 = arith.constant 0 : index
    %49 = vector.load %arg7[%c0_25, %c0_26, %c0_27] : memref<5x1x32xf32, #tpu.memory_space<vmem>>, vector<1x1x32xf32>
    %50 = vector.shape_cast %49 : vector<1x1x32xf32> to vector<1x32xf32>
    %51 = vector.broadcast %50 : vector<1x32xf32> to vector<16x32xf32>
    %52 = arith.addf %48, %51 : vector<16x32xf32>
    %53 = vector.shape_cast %52 : vector<16x32xf32> to vector<2x8x32xf32>
    %cst_28 = arith.constant dense<0xFF800000> : vector<2x32xf32>
    %54 = vector.multi_reduction <maximumf>, %53, %cst_28 [1] : vector<2x8x32xf32> to vector<2x32xf32>
    %55 = arith.truncf %52 : vector<16x32xf32> to vector<16x32xbf16>
    %cst_29 = arith.constant 0.000000e+00 : f32
    %56 = vector.broadcast %cst_29 : f32 to vector<16x32xf32>
    %57 = arith.maximumf %52, %56 : vector<16x32xf32>
    %58 = arith.truncf %57 : vector<16x32xf32> to vector<16x32xbf16>
    %59 = arith.truncf %54 : vector<2x32xf32> to vector<2x32xbf16>
    %cst_30 = arith.constant 0.000000e+00 : bf16
    %60 = vector.broadcast %cst_30 : bf16 to vector<2x32xbf16>
    %61 = arith.maximumf %59, %60 : vector<2x32xbf16>
    %c1_31 = arith.constant 1 : index
    %c0_32 = arith.constant 0 : index
    %c0_33 = arith.constant 0 : index
    %62 = vector.load %arg4[%c1_31, %c0_32, %c0_33] : memref<5x64x32xbf16, #tpu.memory_space<vmem>>, vector<1x64x32xbf16>
    %63 = vector.shape_cast %62 : vector<1x64x32xbf16> to vector<64x32xbf16>
    %c1_34 = arith.constant 1 : index
    %c0_35 = arith.constant 0 : index
    %c0_36 = arith.constant 0 : index
    %64 = vector.load %arg8[%c1_34, %c0_35, %c0_36] : memref<5x64x32xbf16, #tpu.memory_space<vmem>>, vector<1x64x32xbf16>
    %65 = vector.shape_cast %64 : vector<1x64x32xbf16> to vector<64x32xbf16>
    %66 = vector.extract_strided_slice %63 {offsets = [32, 0], sizes = [32, 32], strides = [1, 1]} : vector<64x32xbf16> to vector<32x32xbf16>
    %cst_37 = arith.constant dense<0.000000e+00> : vector<2x32xf32>
    %67 = tpu.matmul %61, %66, %cst_37 {dimension_numbers = #tpu.dot_dimension_numbers<[1], [0], [0], [1], [0, 0, 1, 1], [], []>} : vector<2x32xbf16>, vector<32x32xbf16>, vector<2x32xf32> -> vector<2x32xf32>
    %c1_38 = arith.constant 1 : index
    %c0_39 = arith.constant 0 : index
    %c0_40 = arith.constant 0 : index
    %68 = vector.load %arg5[%c1_38, %c0_39, %c0_40] : memref<5x1x32xf32, #tpu.memory_space<vmem>>, vector<1x1x32xf32>
    %69 = vector.shape_cast %68 : vector<1x1x32xf32> to vector<1x32xf32>
    %70 = vector.broadcast %69 : vector<1x32xf32> to vector<2x32xf32>
    %71 = arith.addf %67, %70 : vector<2x32xf32>
    %72 = vector.extract_strided_slice %63 {offsets = [0, 0], sizes = [32, 32], strides = [1, 1]} : vector<64x32xbf16> to vector<32x32xbf16>
    %cst_41 = arith.constant dense<0.000000e+00> : vector<16x32xf32>
    %73 = tpu.matmul %58, %72, %cst_41 {dimension_numbers = #tpu.dot_dimension_numbers<[1], [0], [0], [1], [0, 0, 1, 1], [], []>} : vector<16x32xbf16>, vector<32x32xbf16>, vector<16x32xf32> -> vector<16x32xf32>
    %74 = vector.shape_cast %73 : vector<16x32xf32> to vector<2x8x32xf32>
    %75 = vector.shape_cast %71 : vector<2x32xf32> to vector<2x1x32xf32>
    %76 = vector.broadcast %75 : vector<2x1x32xf32> to vector<2x8x32xf32>
    %77 = arith.addf %74, %76 : vector<2x8x32xf32>
    %cst_42 = arith.constant 0.000000e+00 : f32
    %78 = vector.broadcast %cst_42 : f32 to vector<2x8x32xf32>
    %79 = arith.maximumf %77, %78 : vector<2x8x32xf32>
    %80 = arith.truncf %79 : vector<2x8x32xf32> to vector<2x8x32xbf16>
    %81 = vector.shape_cast %80 : vector<2x8x32xbf16> to vector<16x32xbf16>
    %c1_43 = arith.constant 1 : index
    %c0_44 = arith.constant 0 : index
    %c0_45 = arith.constant 0 : index
    %82 = vector.load %arg6[%c1_43, %c0_44, %c0_45] : memref<5x32x32xbf16, #tpu.memory_space<vmem>>, vector<1x32x32xbf16>
    %83 = vector.shape_cast %82 : vector<1x32x32xbf16> to vector<32x32xbf16>
    %cst_46 = arith.constant dense<0.000000e+00> : vector<16x32xf32>
    %84 = tpu.matmul %81, %83, %cst_46 {dimension_numbers = #tpu.dot_dimension_numbers<[1], [0], [0], [1], [0, 0, 1, 1], [], []>} : vector<16x32xbf16>, vector<32x32xbf16>, vector<16x32xf32> -> vector<16x32xf32>
    %85 = vector.extract_strided_slice %65 {offsets = [32, 0], sizes = [32, 32], strides = [1, 1]} : vector<64x32xbf16> to vector<32x32xbf16>
    %cst_47 = arith.constant dense<0.000000e+00> : vector<2x32xf32>
    %86 = tpu.matmul %59, %85, %cst_47 {dimension_numbers = #tpu.dot_dimension_numbers<[1], [0], [0], [1], [0, 0, 1, 1], [], []>} : vector<2x32xbf16>, vector<32x32xbf16>, vector<2x32xf32> -> vector<2x32xf32>
    %c1_48 = arith.constant 1 : index
    %c0_49 = arith.constant 0 : index
    %c0_50 = arith.constant 0 : index
    %87 = vector.load %arg7[%c1_48, %c0_49, %c0_50] : memref<5x1x32xf32, #tpu.memory_space<vmem>>, vector<1x1x32xf32>
    %88 = vector.shape_cast %87 : vector<1x1x32xf32> to vector<1x32xf32>
    %89 = vector.broadcast %88 : vector<1x32xf32> to vector<2x32xf32>
    %90 = arith.addf %86, %89 : vector<2x32xf32>
    %91 = vector.extract_strided_slice %65 {offsets = [0, 0], sizes = [32, 32], strides = [1, 1]} : vector<64x32xbf16> to vector<32x32xbf16>
    %cst_51 = arith.constant dense<0.000000e+00> : vector<16x32xf32>
    %92 = tpu.matmul %55, %91, %cst_51 {dimension_numbers = #tpu.dot_dimension_numbers<[1], [0], [0], [1], [0, 0, 1, 1], [], []>} : vector<16x32xbf16>, vector<32x32xbf16>, vector<16x32xf32> -> vector<16x32xf32>
    %93 = arith.addf %92, %84 : vector<16x32xf32>
    %94 = vector.shape_cast %93 : vector<16x32xf32> to vector<2x8x32xf32>
    %95 = vector.shape_cast %90 : vector<2x32xf32> to vector<2x1x32xf32>
    %96 = vector.broadcast %95 : vector<2x1x32xf32> to vector<2x8x32xf32>
    %97 = arith.addf %94, %96 : vector<2x8x32xf32>
    %98 = vector.shape_cast %97 : vector<2x8x32xf32> to vector<16x32xf32>
    %99 = vector.shape_cast %98 : vector<16x32xf32> to vector<2x8x32xf32>
    %cst_52 = arith.constant dense<0xFF800000> : vector<2x32xf32>
    %100 = vector.multi_reduction <maximumf>, %99, %cst_52 [1] : vector<2x8x32xf32> to vector<2x32xf32>
    %101 = arith.truncf %98 : vector<16x32xf32> to vector<16x32xbf16>
    %cst_53 = arith.constant 0.000000e+00 : f32
    %102 = vector.broadcast %cst_53 : f32 to vector<16x32xf32>
    %103 = arith.maximumf %98, %102 : vector<16x32xf32>
    %104 = arith.truncf %103 : vector<16x32xf32> to vector<16x32xbf16>
    %105 = arith.truncf %100 : vector<2x32xf32> to vector<2x32xbf16>
    %cst_54 = arith.constant 0.000000e+00 : bf16
    %106 = vector.broadcast %cst_54 : bf16 to vector<2x32xbf16>
    %107 = arith.maximumf %105, %106 : vector<2x32xbf16>
    %c2_55 = arith.constant 2 : index
    %c0_56 = arith.constant 0 : index
    %c0_57 = arith.constant 0 : index
    %108 = vector.load %arg4[%c2_55, %c0_56, %c0_57] : memref<5x64x32xbf16, #tpu.memory_space<vmem>>, vector<1x64x32xbf16>
    %109 = vector.shape_cast %108 : vector<1x64x32xbf16> to vector<64x32xbf16>
    %c2_58 = arith.constant 2 : index
    %c0_59 = arith.constant 0 : index
    %c0_60 = arith.constant 0 : index
    %110 = vector.load %arg8[%c2_58, %c0_59, %c0_60] : memref<5x64x32xbf16, #tpu.memory_space<vmem>>, vector<1x64x32xbf16>
    %111 = vector.shape_cast %110 : vector<1x64x32xbf16> to vector<64x32xbf16>
    %112 = vector.extract_strided_slice %109 {offsets = [32, 0], sizes = [32, 32], strides = [1, 1]} : vector<64x32xbf16> to vector<32x32xbf16>
    %cst_61 = arith.constant dense<0.000000e+00> : vector<2x32xf32>
    %113 = tpu.matmul %107, %112, %cst_61 {dimension_numbers = #tpu.dot_dimension_numbers<[1], [0], [0], [1], [0, 0, 1, 1], [], []>} : vector<2x32xbf16>, vector<32x32xbf16>, vector<2x32xf32> -> vector<2x32xf32>
    %c2_62 = arith.constant 2 : index
    %c0_63 = arith.constant 0 : index
    %c0_64 = arith.constant 0 : index
    %114 = vector.load %arg5[%c2_62, %c0_63, %c0_64] : memref<5x1x32xf32, #tpu.memory_space<vmem>>, vector<1x1x32xf32>
    %115 = vector.shape_cast %114 : vector<1x1x32xf32> to vector<1x32xf32>
    %116 = vector.broadcast %115 : vector<1x32xf32> to vector<2x32xf32>
    %117 = arith.addf %113, %116 : vector<2x32xf32>
    %118 = vector.extract_strided_slice %109 {offsets = [0, 0], sizes = [32, 32], strides = [1, 1]} : vector<64x32xbf16> to vector<32x32xbf16>
    %cst_65 = arith.constant dense<0.000000e+00> : vector<16x32xf32>
    %119 = tpu.matmul %104, %118, %cst_65 {dimension_numbers = #tpu.dot_dimension_numbers<[1], [0], [0], [1], [0, 0, 1, 1], [], []>} : vector<16x32xbf16>, vector<32x32xbf16>, vector<16x32xf32> -> vector<16x32xf32>
    %120 = vector.shape_cast %119 : vector<16x32xf32> to vector<2x8x32xf32>
    %121 = vector.shape_cast %117 : vector<2x32xf32> to vector<2x1x32xf32>
    %122 = vector.broadcast %121 : vector<2x1x32xf32> to vector<2x8x32xf32>
    %123 = arith.addf %120, %122 : vector<2x8x32xf32>
    %cst_66 = arith.constant 0.000000e+00 : f32
    %124 = vector.broadcast %cst_66 : f32 to vector<2x8x32xf32>
    %125 = arith.maximumf %123, %124 : vector<2x8x32xf32>
    %126 = arith.truncf %125 : vector<2x8x32xf32> to vector<2x8x32xbf16>
    %127 = vector.shape_cast %126 : vector<2x8x32xbf16> to vector<16x32xbf16>
    %c2_67 = arith.constant 2 : index
    %c0_68 = arith.constant 0 : index
    %c0_69 = arith.constant 0 : index
    %128 = vector.load %arg6[%c2_67, %c0_68, %c0_69] : memref<5x32x32xbf16, #tpu.memory_space<vmem>>, vector<1x32x32xbf16>
    %129 = vector.shape_cast %128 : vector<1x32x32xbf16> to vector<32x32xbf16>
    %cst_70 = arith.constant dense<0.000000e+00> : vector<16x32xf32>
    %130 = tpu.matmul %127, %129, %cst_70 {dimension_numbers = #tpu.dot_dimension_numbers<[1], [0], [0], [1], [0, 0, 1, 1], [], []>} : vector<16x32xbf16>, vector<32x32xbf16>, vector<16x32xf32> -> vector<16x32xf32>
    %131 = vector.extract_strided_slice %111 {offsets = [32, 0], sizes = [32, 32], strides = [1, 1]} : vector<64x32xbf16> to vector<32x32xbf16>
    %cst_71 = arith.constant dense<0.000000e+00> : vector<2x32xf32>
    %132 = tpu.matmul %105, %131, %cst_71 {dimension_numbers = #tpu.dot_dimension_numbers<[1], [0], [0], [1], [0, 0, 1, 1], [], []>} : vector<2x32xbf16>, vector<32x32xbf16>, vector<2x32xf32> -> vector<2x32xf32>
    %c2_72 = arith.constant 2 : index
    %c0_73 = arith.constant 0 : index
    %c0_74 = arith.constant 0 : index
    %133 = vector.load %arg7[%c2_72, %c0_73, %c0_74] : memref<5x1x32xf32, #tpu.memory_space<vmem>>, vector<1x1x32xf32>
    %134 = vector.shape_cast %133 : vector<1x1x32xf32> to vector<1x32xf32>
    %135 = vector.broadcast %134 : vector<1x32xf32> to vector<2x32xf32>
    %136 = arith.addf %132, %135 : vector<2x32xf32>
    %137 = vector.extract_strided_slice %111 {offsets = [0, 0], sizes = [32, 32], strides = [1, 1]} : vector<64x32xbf16> to vector<32x32xbf16>
    %cst_75 = arith.constant dense<0.000000e+00> : vector<16x32xf32>
    %138 = tpu.matmul %101, %137, %cst_75 {dimension_numbers = #tpu.dot_dimension_numbers<[1], [0], [0], [1], [0, 0, 1, 1], [], []>} : vector<16x32xbf16>, vector<32x32xbf16>, vector<16x32xf32> -> vector<16x32xf32>
    %139 = arith.addf %138, %130 : vector<16x32xf32>
    %140 = vector.shape_cast %139 : vector<16x32xf32> to vector<2x8x32xf32>
    %141 = vector.shape_cast %136 : vector<2x32xf32> to vector<2x1x32xf32>
    %142 = vector.broadcast %141 : vector<2x1x32xf32> to vector<2x8x32xf32>
    %143 = arith.addf %140, %142 : vector<2x8x32xf32>
    %144 = vector.shape_cast %143 : vector<2x8x32xf32> to vector<16x32xf32>
    %145 = vector.shape_cast %144 : vector<16x32xf32> to vector<2x8x32xf32>
    %cst_76 = arith.constant dense<0xFF800000> : vector<2x32xf32>
    %146 = vector.multi_reduction <maximumf>, %145, %cst_76 [1] : vector<2x8x32xf32> to vector<2x32xf32>
    %147 = arith.truncf %144 : vector<16x32xf32> to vector<16x32xbf16>
    %cst_77 = arith.constant 0.000000e+00 : f32
    %148 = vector.broadcast %cst_77 : f32 to vector<16x32xf32>
    %149 = arith.maximumf %144, %148 : vector<16x32xf32>
    %150 = arith.truncf %149 : vector<16x32xf32> to vector<16x32xbf16>
    %151 = arith.truncf %146 : vector<2x32xf32> to vector<2x32xbf16>
    %cst_78 = arith.constant 0.000000e+00 : bf16
    %152 = vector.broadcast %cst_78 : bf16 to vector<2x32xbf16>
    %153 = arith.maximumf %151, %152 : vector<2x32xbf16>
    %c3_79 = arith.constant 3 : index
    %c0_80 = arith.constant 0 : index
    %c0_81 = arith.constant 0 : index
    %154 = vector.load %arg4[%c3_79, %c0_80, %c0_81] : memref<5x64x32xbf16, #tpu.memory_space<vmem>>, vector<1x64x32xbf16>
    %155 = vector.shape_cast %154 : vector<1x64x32xbf16> to vector<64x32xbf16>
    %c3_82 = arith.constant 3 : index
    %c0_83 = arith.constant 0 : index
    %c0_84 = arith.constant 0 : index
    %156 = vector.load %arg8[%c3_82, %c0_83, %c0_84] : memref<5x64x32xbf16, #tpu.memory_space<vmem>>, vector<1x64x32xbf16>
    %157 = vector.shape_cast %156 : vector<1x64x32xbf16> to vector<64x32xbf16>
    %158 = vector.extract_strided_slice %155 {offsets = [32, 0], sizes = [32, 32], strides = [1, 1]} : vector<64x32xbf16> to vector<32x32xbf16>
    %cst_85 = arith.constant dense<0.000000e+00> : vector<2x32xf32>
    %159 = tpu.matmul %153, %158, %cst_85 {dimension_numbers = #tpu.dot_dimension_numbers<[1], [0], [0], [1], [0, 0, 1, 1], [], []>} : vector<2x32xbf16>, vector<32x32xbf16>, vector<2x32xf32> -> vector<2x32xf32>
    %c3_86 = arith.constant 3 : index
    %c0_87 = arith.constant 0 : index
    %c0_88 = arith.constant 0 : index
    %160 = vector.load %arg5[%c3_86, %c0_87, %c0_88] : memref<5x1x32xf32, #tpu.memory_space<vmem>>, vector<1x1x32xf32>
    %161 = vector.shape_cast %160 : vector<1x1x32xf32> to vector<1x32xf32>
    %162 = vector.broadcast %161 : vector<1x32xf32> to vector<2x32xf32>
    %163 = arith.addf %159, %162 : vector<2x32xf32>
    %164 = vector.extract_strided_slice %155 {offsets = [0, 0], sizes = [32, 32], strides = [1, 1]} : vector<64x32xbf16> to vector<32x32xbf16>
    %cst_89 = arith.constant dense<0.000000e+00> : vector<16x32xf32>
    %165 = tpu.matmul %150, %164, %cst_89 {dimension_numbers = #tpu.dot_dimension_numbers<[1], [0], [0], [1], [0, 0, 1, 1], [], []>} : vector<16x32xbf16>, vector<32x32xbf16>, vector<16x32xf32> -> vector<16x32xf32>
    %166 = vector.shape_cast %165 : vector<16x32xf32> to vector<2x8x32xf32>
    %167 = vector.shape_cast %163 : vector<2x32xf32> to vector<2x1x32xf32>
    %168 = vector.broadcast %167 : vector<2x1x32xf32> to vector<2x8x32xf32>
    %169 = arith.addf %166, %168 : vector<2x8x32xf32>
    %cst_90 = arith.constant 0.000000e+00 : f32
    %170 = vector.broadcast %cst_90 : f32 to vector<2x8x32xf32>
    %171 = arith.maximumf %169, %170 : vector<2x8x32xf32>
    %172 = arith.truncf %171 : vector<2x8x32xf32> to vector<2x8x32xbf16>
    %173 = vector.shape_cast %172 : vector<2x8x32xbf16> to vector<16x32xbf16>
    %c3_91 = arith.constant 3 : index
    %c0_92 = arith.constant 0 : index
    %c0_93 = arith.constant 0 : index
    %174 = vector.load %arg6[%c3_91, %c0_92, %c0_93] : memref<5x32x32xbf16, #tpu.memory_space<vmem>>, vector<1x32x32xbf16>
    %175 = vector.shape_cast %174 : vector<1x32x32xbf16> to vector<32x32xbf16>
    %cst_94 = arith.constant dense<0.000000e+00> : vector<16x32xf32>
    %176 = tpu.matmul %173, %175, %cst_94 {dimension_numbers = #tpu.dot_dimension_numbers<[1], [0], [0], [1], [0, 0, 1, 1], [], []>} : vector<16x32xbf16>, vector<32x32xbf16>, vector<16x32xf32> -> vector<16x32xf32>
    %177 = vector.extract_strided_slice %157 {offsets = [32, 0], sizes = [32, 32], strides = [1, 1]} : vector<64x32xbf16> to vector<32x32xbf16>
    %cst_95 = arith.constant dense<0.000000e+00> : vector<2x32xf32>
    %178 = tpu.matmul %151, %177, %cst_95 {dimension_numbers = #tpu.dot_dimension_numbers<[1], [0], [0], [1], [0, 0, 1, 1], [], []>} : vector<2x32xbf16>, vector<32x32xbf16>, vector<2x32xf32> -> vector<2x32xf32>
    %c3_96 = arith.constant 3 : index
    %c0_97 = arith.constant 0 : index
    %c0_98 = arith.constant 0 : index
    %179 = vector.load %arg7[%c3_96, %c0_97, %c0_98] : memref<5x1x32xf32, #tpu.memory_space<vmem>>, vector<1x1x32xf32>
    %180 = vector.shape_cast %179 : vector<1x1x32xf32> to vector<1x32xf32>
    %181 = vector.broadcast %180 : vector<1x32xf32> to vector<2x32xf32>
    %182 = arith.addf %178, %181 : vector<2x32xf32>
    %183 = vector.extract_strided_slice %157 {offsets = [0, 0], sizes = [32, 32], strides = [1, 1]} : vector<64x32xbf16> to vector<32x32xbf16>
    %cst_99 = arith.constant dense<0.000000e+00> : vector<16x32xf32>
    %184 = tpu.matmul %147, %183, %cst_99 {dimension_numbers = #tpu.dot_dimension_numbers<[1], [0], [0], [1], [0, 0, 1, 1], [], []>} : vector<16x32xbf16>, vector<32x32xbf16>, vector<16x32xf32> -> vector<16x32xf32>
    %185 = arith.addf %184, %176 : vector<16x32xf32>
    %186 = vector.shape_cast %185 : vector<16x32xf32> to vector<2x8x32xf32>
    %187 = vector.shape_cast %182 : vector<2x32xf32> to vector<2x1x32xf32>
    %188 = vector.broadcast %187 : vector<2x1x32xf32> to vector<2x8x32xf32>
    %189 = arith.addf %186, %188 : vector<2x8x32xf32>
    %190 = vector.shape_cast %189 : vector<2x8x32xf32> to vector<16x32xf32>
    %191 = vector.shape_cast %190 : vector<16x32xf32> to vector<2x8x32xf32>
    %cst_100 = arith.constant dense<0xFF800000> : vector<2x32xf32>
    %192 = vector.multi_reduction <maximumf>, %191, %cst_100 [1] : vector<2x8x32xf32> to vector<2x32xf32>
    %193 = arith.truncf %190 : vector<16x32xf32> to vector<16x32xbf16>
    %cst_101 = arith.constant 0.000000e+00 : f32
    %194 = vector.broadcast %cst_101 : f32 to vector<16x32xf32>
    %195 = arith.maximumf %190, %194 : vector<16x32xf32>
    %196 = arith.truncf %195 : vector<16x32xf32> to vector<16x32xbf16>
    %197 = arith.truncf %192 : vector<2x32xf32> to vector<2x32xbf16>
    %cst_102 = arith.constant 0.000000e+00 : bf16
    %198 = vector.broadcast %cst_102 : bf16 to vector<2x32xbf16>
    %199 = arith.maximumf %197, %198 : vector<2x32xbf16>
    %c4 = arith.constant 4 : index
    %c0_103 = arith.constant 0 : index
    %c0_104 = arith.constant 0 : index
    %200 = vector.load %arg4[%c4, %c0_103, %c0_104] : memref<5x64x32xbf16, #tpu.memory_space<vmem>>, vector<1x64x32xbf16>
    %201 = vector.shape_cast %200 : vector<1x64x32xbf16> to vector<64x32xbf16>
    %c4_105 = arith.constant 4 : index
    %c0_106 = arith.constant 0 : index
    %c0_107 = arith.constant 0 : index
    %202 = vector.load %arg8[%c4_105, %c0_106, %c0_107] : memref<5x64x32xbf16, #tpu.memory_space<vmem>>, vector<1x64x32xbf16>
    %203 = vector.shape_cast %202 : vector<1x64x32xbf16> to vector<64x32xbf16>
    %204 = vector.extract_strided_slice %201 {offsets = [32, 0], sizes = [32, 32], strides = [1, 1]} : vector<64x32xbf16> to vector<32x32xbf16>
    %cst_108 = arith.constant dense<0.000000e+00> : vector<2x32xf32>
    %205 = tpu.matmul %199, %204, %cst_108 {dimension_numbers = #tpu.dot_dimension_numbers<[1], [0], [0], [1], [0, 0, 1, 1], [], []>} : vector<2x32xbf16>, vector<32x32xbf16>, vector<2x32xf32> -> vector<2x32xf32>
    %c4_109 = arith.constant 4 : index
    %c0_110 = arith.constant 0 : index
    %c0_111 = arith.constant 0 : index
    %206 = vector.load %arg5[%c4_109, %c0_110, %c0_111] : memref<5x1x32xf32, #tpu.memory_space<vmem>>, vector<1x1x32xf32>
    %207 = vector.shape_cast %206 : vector<1x1x32xf32> to vector<1x32xf32>
    %208 = vector.broadcast %207 : vector<1x32xf32> to vector<2x32xf32>
    %209 = arith.addf %205, %208 : vector<2x32xf32>
    %210 = vector.extract_strided_slice %201 {offsets = [0, 0], sizes = [32, 32], strides = [1, 1]} : vector<64x32xbf16> to vector<32x32xbf16>
    %cst_112 = arith.constant dense<0.000000e+00> : vector<16x32xf32>
    %211 = tpu.matmul %196, %210, %cst_112 {dimension_numbers = #tpu.dot_dimension_numbers<[1], [0], [0], [1], [0, 0, 1, 1], [], []>} : vector<16x32xbf16>, vector<32x32xbf16>, vector<16x32xf32> -> vector<16x32xf32>
    %212 = vector.shape_cast %211 : vector<16x32xf32> to vector<2x8x32xf32>
    %213 = vector.shape_cast %209 : vector<2x32xf32> to vector<2x1x32xf32>
    %214 = vector.broadcast %213 : vector<2x1x32xf32> to vector<2x8x32xf32>
    %215 = arith.addf %212, %214 : vector<2x8x32xf32>
    %cst_113 = arith.constant 0.000000e+00 : f32
    %216 = vector.broadcast %cst_113 : f32 to vector<2x8x32xf32>
    %217 = arith.maximumf %215, %216 : vector<2x8x32xf32>
    %218 = arith.truncf %217 : vector<2x8x32xf32> to vector<2x8x32xbf16>
    %219 = vector.shape_cast %218 : vector<2x8x32xbf16> to vector<16x32xbf16>
    %c4_114 = arith.constant 4 : index
    %c0_115 = arith.constant 0 : index
    %c0_116 = arith.constant 0 : index
    %220 = vector.load %arg6[%c4_114, %c0_115, %c0_116] : memref<5x32x32xbf16, #tpu.memory_space<vmem>>, vector<1x32x32xbf16>
    %221 = vector.shape_cast %220 : vector<1x32x32xbf16> to vector<32x32xbf16>
    %cst_117 = arith.constant dense<0.000000e+00> : vector<16x32xf32>
    %222 = tpu.matmul %219, %221, %cst_117 {dimension_numbers = #tpu.dot_dimension_numbers<[1], [0], [0], [1], [0, 0, 1, 1], [], []>} : vector<16x32xbf16>, vector<32x32xbf16>, vector<16x32xf32> -> vector<16x32xf32>
    %223 = vector.extract_strided_slice %203 {offsets = [32, 0], sizes = [32, 32], strides = [1, 1]} : vector<64x32xbf16> to vector<32x32xbf16>
    %cst_118 = arith.constant dense<0.000000e+00> : vector<2x32xf32>
    %224 = tpu.matmul %197, %223, %cst_118 {dimension_numbers = #tpu.dot_dimension_numbers<[1], [0], [0], [1], [0, 0, 1, 1], [], []>} : vector<2x32xbf16>, vector<32x32xbf16>, vector<2x32xf32> -> vector<2x32xf32>
    %c4_119 = arith.constant 4 : index
    %c0_120 = arith.constant 0 : index
    %c0_121 = arith.constant 0 : index
    %225 = vector.load %arg7[%c4_119, %c0_120, %c0_121] : memref<5x1x32xf32, #tpu.memory_space<vmem>>, vector<1x1x32xf32>
    %226 = vector.shape_cast %225 : vector<1x1x32xf32> to vector<1x32xf32>
    %227 = vector.broadcast %226 : vector<1x32xf32> to vector<2x32xf32>
    %228 = arith.addf %224, %227 : vector<2x32xf32>
    %229 = vector.extract_strided_slice %203 {offsets = [0, 0], sizes = [32, 32], strides = [1, 1]} : vector<64x32xbf16> to vector<32x32xbf16>
    %cst_122 = arith.constant dense<0.000000e+00> : vector<16x32xf32>
    %230 = tpu.matmul %193, %229, %cst_122 {dimension_numbers = #tpu.dot_dimension_numbers<[1], [0], [0], [1], [0, 0, 1, 1], [], []>} : vector<16x32xbf16>, vector<32x32xbf16>, vector<16x32xf32> -> vector<16x32xf32>
    %231 = arith.addf %230, %222 : vector<16x32xf32>
    %232 = vector.shape_cast %231 : vector<16x32xf32> to vector<2x8x32xf32>
    %233 = vector.shape_cast %228 : vector<2x32xf32> to vector<2x1x32xf32>
    %234 = vector.broadcast %233 : vector<2x1x32xf32> to vector<2x8x32xf32>
    %235 = arith.addf %232, %234 : vector<2x8x32xf32>
    %236 = vector.shape_cast %235 : vector<2x8x32xf32> to vector<16x32xf32>
    %237 = vector.shape_cast %236 : vector<16x32xf32> to vector<2x8x32xf32>
    %cst_123 = arith.constant dense<0xFF800000> : vector<2x32xf32>
    %238 = vector.multi_reduction <maximumf>, %237, %cst_123 [1] : vector<2x8x32xf32> to vector<2x32xf32>
    %cst_124 = arith.constant 0.000000e+00 : f32
    %239 = vector.broadcast %cst_124 : f32 to vector<2x32xf32>
    %240 = arith.maximumf %238, %239 : vector<2x32xf32>
    %241 = arith.truncf %240 : vector<2x32xf32> to vector<2x32xbf16>
    %c0_125 = arith.constant 0 : index
    %c0_126 = arith.constant 0 : index
    %242 = vector.load %arg9[%c0_125, %c0_126] : memref<32x128xbf16, #tpu.memory_space<vmem>>, vector<32x128xbf16>
    %cst_127 = arith.constant dense<0.000000e+00> : vector<2x128xf32>
    %243 = tpu.matmul %241, %242, %cst_127 {dimension_numbers = #tpu.dot_dimension_numbers<[1], [0], [0], [1], [0, 0, 1, 1], [], []>} : vector<2x32xbf16>, vector<32x128xbf16>, vector<2x128xf32> -> vector<2x128xf32>
    %c0_128 = arith.constant 0 : index
    %c0_129 = arith.constant 0 : index
    %244 = vector.load %arg10[%c0_128, %c0_129] : memref<1x128xf32, #tpu.memory_space<vmem>>, vector<1x128xf32>
    %245 = vector.broadcast %244 : vector<1x128xf32> to vector<2x128xf32>
    %246 = arith.addf %243, %245 : vector<2x128xf32>
    %c0_130 = arith.constant 0 : index
    %c0_131 = arith.constant 0 : index
    %c0_132 = arith.constant 0 : index
    %247 = vector.load %arg11[%c0_130, %c0_131, %c0_132] : memref<1x2x128xf32, #tpu.memory_space<vmem>>, vector<1x2x128xf32>
    %248 = vector.shape_cast %247 : vector<1x2x128xf32> to vector<2x128xf32>
    %249 = vector.shape_cast %246 : vector<2x128xf32> to vector<1x2x128xf32>
    tpu.vector_store %arg11[%c0_130, %c0_131, %c0_132], %249 {strides = array<i32>} : memref<1x2x128xf32, #tpu.memory_space<vmem>>, vector<1x2x128xf32>,
    return
  }
  func.func @transform_0(%arg0: i32) -> (i32, i32, i32) {
    %c0_i32 = arith.constant 0 : i32
    %c0_i32_0 = arith.constant 0 : i32
    %c0_i32_1 = arith.constant 0 : i32
    return %arg0, %c0_i32, %c0_i32_0 : i32, i32, i32
  }
  func.func @transform_1(%arg0: i32) -> (i32, i32) {
    %c0_i32 = arith.constant 0 : i32
    %c0_i32_0 = arith.constant 0 : i32
    %c0_i32_1 = arith.constant 0 : i32
    return %c0_i32, %c0_i32_0 : i32, i32
  }
  func.func @transform_2(%arg0: i32) -> (i32, i32) {
    %c0_i32 = arith.constant 0 : i32
    %c0_i32_0 = arith.constant 0 : i32
    %c0_i32_1 = arith.constant 0 : i32
    return %c0_i32, %c0_i32_0 : i32, i32
  }
  func.func @transform_3(%arg0: i32) -> (i32, i32, i32) {
    %c0_i32 = arith.constant 0 : i32
    %c0_i32_0 = arith.constant 0 : i32
    %c0_i32_1 = arith.constant 0 : i32
    %c0_i32_2 = arith.constant 0 : i32
    return %c0_i32, %c0_i32_0, %c0_i32_1 : i32, i32, i32
  }
  func.func @transform_4(%arg0: i32) -> (i32, i32, i32) {
    %c0_i32 = arith.constant 0 : i32
    %c0_i32_0 = arith.constant 0 : i32
    %c0_i32_1 = arith.constant 0 : i32
    %c0_i32_2 = arith.constant 0 : i32
    return %c0_i32, %c0_i32_0, %c0_i32_1 : i32, i32, i32
  }
  func.func @transform_5(%arg0: i32) -> (i32, i32, i32) {
    %c0_i32 = arith.constant 0 : i32
    %c0_i32_0 = arith.constant 0 : i32
    %c0_i32_1 = arith.constant 0 : i32
    %c0_i32_2 = arith.constant 0 : i32
    return %c0_i32, %c0_i32_0, %c0_i32_1 : i32, i32, i32
  }
  func.func @transform_6(%arg0: i32) -> (i32, i32, i32) {
    %c0_i32 = arith.constant 0 : i32
    %c0_i32_0 = arith.constant 0 : i32
    %c0_i32_1 = arith.constant 0 : i32
    %c0_i32_2 = arith.constant 0 : i32
    return %c0_i32, %c0_i32_0, %c0_i32_1 : i32, i32, i32
  }
  func.func @transform_7(%arg0: i32) -> (i32, i32, i32) {
    %c0_i32 = arith.constant 0 : i32
    %c0_i32_0 = arith.constant 0 : i32
    %c0_i32_1 = arith.constant 0 : i32
    %c0_i32_2 = arith.constant 0 : i32
    return %c0_i32, %c0_i32_0, %c0_i32_1 : i32, i32, i32
  }
  func.func @transform_8(%arg0: i32) -> (i32, i32) {
    %c0_i32 = arith.constant 0 : i32
    %c0_i32_0 = arith.constant 0 : i32
    %c0_i32_1 = arith.constant 0 : i32
    return %c0_i32, %c0_i32_0 : i32, i32
  }
  func.func @transform_9(%arg0: i32) -> (i32, i32) {
    %c0_i32 = arith.constant 0 : i32
    %c0_i32_0 = arith.constant 0 : i32
    %c0_i32_1 = arith.constant 0 : i32
    return %c0_i32, %c0_i32_0 : i32, i32
  }
  func.func @transform_10(%arg0: i32) -> (i32, i32, i32) {
    %c0_i32 = arith.constant 0 : i32
    %c0_i32_0 = arith.constant 0 : i32
    %c0_i32_1 = arith.constant 0 : i32
    return %arg0, %c0_i32, %c0_i32_0 : i32, i32, i32
  }
}

module attributes {stable_mosaic.version = 11 : i64} {
  func.func @_resnet_pointnet_kernel(%arg0: i32, %arg1: memref<2x8x4xf32, #tpu.memory_space<vmem>>, %arg2: memref<4x64xf32, #tpu.memory_space<vmem>>, %arg3: memref<1x64xf32, #tpu.memory_space<vmem>>, %arg4: memref<5x64x32xbf16, #tpu.memory_space<vmem>>, %arg5: memref<5x1x32xf32, #tpu.memory_space<vmem>>, %arg6: memref<5x32x32xbf16, #tpu.memory_space<vmem>>, %arg7: memref<5x1x32xf32, #tpu.memory_space<vmem>>, %arg8: memref<5x64x32xbf16, #tpu.memory_space<vmem>>, %arg9: memref<32x128xbf16, #tpu.memory_space<vmem>>, %arg10: memref<1x128xf32, #tpu.memory_space<vmem>>, %arg11: memref<1x2x128xf32, #tpu.memory_space<vmem>>) attributes {dimension_semantics = [#tpu.dimension_semantics<parallel>], iteration_bounds = array<i64: 1>, scalar_prefetch = 0 : i64, scratch_operands = 0 : i64, tpu.core_type = #tpu.core_type<tc>, window_params = [{transform_indices = @transform_0, window_bounds = array<i64: 2, 8, 4>}, {pipeline_mode = #tpu.pipeline_mode<synchronous>, transform_indices = @transform_1, window_bounds = array<i64: 4, 64>}, {pipeline_mode = #tpu.pipeline_mode<synchronous>, transform_indices = @transform_2, window_bounds = array<i64: 1, 64>}, {pipeline_mode = #tpu.pipeline_mode<synchronous>, transform_indices = @transform_3, window_bounds = array<i64: 5, 64, 32>}, {pipeline_mode = #tpu.pipeline_mode<synchronous>, transform_indices = @transform_4, window_bounds = array<i64: 5, 1, 32>}, {pipeline_mode = #tpu.pipeline_mode<synchronous>, transform_indices = @transform_5, window_bounds = array<i64: 5, 32, 32>}, {pipeline_mode = #tpu.pipeline_mode<synchronous>, transform_indices = @transform_6, window_bounds = array<i64: 5, 1, 32>}, {pipeline_mode = #tpu.pipeline_mode<synchronous>, transform_indices = @transform_7, window_bounds = array<i64: 5, 64, 32>}, {pipeline_mode = #tpu.pipeline_mode<synchronous>, transform_indices = @transform_8, window_bounds = array<i64: 32, 128>}, {pipeline_mode = #tpu.pipeline_mode<synchronous>, transform_indices = @transform_9, window_bounds = array<i64: 1, 128>}, {transform_indices = @transform_10, window_bounds = array<i64: 1, 2, 128>}]} {
    %c0 = arith.constant 0 : index
    %c0_0 = arith.constant 0 : index
    %c0_1 = arith.constant 0 : index
    %0 = vector.load %arg1[%c0, %c0_0, %c0_1] : memref<2x8x4xf32, #tpu.memory_space<vmem>>, vector<2x8x4xf32>
    %1 = vector.shape_cast %0 : vector<2x8x4xf32> to vector<16x4xf32>
    %2 = vector.extract_strided_slice %1 {offsets = [0, 0], sizes = [16, 1], strides = [1, 1]} : vector<16x4xf32> to vector<16x1xf32>
    %c0_2 = arith.constant 0 : index
    %c0_3 = arith.constant 0 : index
    %3 = vector.load %arg2[%c0_2, %c0_3] : memref<4x64xf32, #tpu.memory_space<vmem>>, vector<1x64xf32>
    %4 = vector.broadcast %2 : vector<16x1xf32> to vector<16x64xf32>
    %5 = vector.broadcast %3 : vector<1x64xf32> to vector<16x64xf32>
    %6 = arith.mulf %4, %5 : vector<16x64xf32>
    %7 = vector.extract_strided_slice %1 {offsets = [0, 1], sizes = [16, 1], strides = [1, 1]} : vector<16x4xf32> to vector<16x1xf32>
    %c1 = arith.constant 1 : index
    %c0_4 = arith.constant 0 : index
    %8 = vector.load %arg2[%c1, %c0_4] : memref<4x64xf32, #tpu.memory_space<vmem>>, vector<1x64xf32>
    %9 = vector.broadcast %7 : vector<16x1xf32> to vector<16x64xf32>
    %10 = vector.broadcast %8 : vector<1x64xf32> to vector<16x64xf32>
    %11 = arith.mulf %9, %10 : vector<16x64xf32>
    %12 = arith.addf %6, %11 : vector<16x64xf32>
    %13 = vector.extract_strided_slice %1 {offsets = [0, 2], sizes = [16, 1], strides = [1, 1]} : vector<16x4xf32> to vector<16x1xf32>
    %c2 = arith.constant 2 : index
    %c0_5 = arith.constant 0 : index
    %14 = vector.load %arg2[%c2, %c0_5] : memref<4x64xf32, #tpu.memory_space<vmem>>, vector<1x64xf32>
    %15 = vector.broadcast %13 : vector<16x1xf32> to vector<16x64xf32>
    %16 = vector.broadcast %14 : vector<1x64xf32> to vector<16x64xf32>
    %17 = arith.mulf %15, %16 : vector<16x64xf32>
    %18 = arith.addf %12, %17 : vector<16x64xf32>
    %19 = vector.extract_strided_slice %1 {offsets = [0, 3], sizes = [16, 1], strides = [1, 1]} : vector<16x4xf32> to vector<16x1xf32>
    %c3 = arith.constant 3 : index
    %c0_6 = arith.constant 0 : index
    %20 = vector.load %arg2[%c3, %c0_6] : memref<4x64xf32, #tpu.memory_space<vmem>>, vector<1x64xf32>
    %21 = vector.broadcast %19 : vector<16x1xf32> to vector<16x64xf32>
    %22 = vector.broadcast %20 : vector<1x64xf32> to vector<16x64xf32>
    %23 = arith.mulf %21, %22 : vector<16x64xf32>
    %24 = arith.addf %18, %23 : vector<16x64xf32>
    %c0_7 = arith.constant 0 : index
    %c0_8 = arith.constant 0 : index
    %25 = vector.load %arg3[%c0_7, %c0_8] : memref<1x64xf32, #tpu.memory_space<vmem>>, vector<1x64xf32>
    %26 = vector.broadcast %25 : vector<1x64xf32> to vector<16x64xf32>
    %27 = arith.addf %24, %26 : vector<16x64xf32>
    %28 = arith.truncf %27 : vector<16x64xf32> to vector<16x64xbf16>
    %cst = arith.constant 0.000000e+00 : f32
    %29 = vector.broadcast %cst : f32 to vector<16x64xf32>
    %30 = arith.maximumf %27, %29 : vector<16x64xf32>
    %31 = arith.truncf %30 : vector<16x64xf32> to vector<16x64xbf16>
    %c0_9 = arith.constant 0 : index
    %c0_10 = arith.constant 0 : index
    %c0_11 = arith.constant 0 : index
    %32 = vector.load %arg4[%c0_9, %c0_10, %c0_11] : memref<5x64x32xbf16, #tpu.memory_space<vmem>>, vector<1x64x32xbf16>
    %33 = vector.shape_cast %32 : vector<1x64x32xbf16> to vector<64x32xbf16>
    %cst_12 = arith.constant dense<0.000000e+00> : vector<16x32xf32>
    %34 = tpu.matmul %31, %33, %cst_12 {dimension_numbers = #tpu.dot_dimension_numbers<[1], [0], [0], [1], [0, 0, 1, 1], [], []>} : vector<16x64xbf16>, vector<64x32xbf16>, vector<16x32xf32> -> vector<16x32xf32>
    %c0_13 = arith.constant 0 : index
    %c0_14 = arith.constant 0 : index
    %c0_15 = arith.constant 0 : index
    %35 = vector.load %arg5[%c0_13, %c0_14, %c0_15] : memref<5x1x32xf32, #tpu.memory_space<vmem>>, vector<1x1x32xf32>
    %36 = vector.shape_cast %35 : vector<1x1x32xf32> to vector<1x32xf32>
    %37 = vector.broadcast %36 : vector<1x32xf32> to vector<16x32xf32>
    %38 = arith.addf %34, %37 : vector<16x32xf32>
    %cst_16 = arith.constant 0.000000e+00 : f32
    %39 = vector.broadcast %cst_16 : f32 to vector<16x32xf32>
    %40 = arith.maximumf %38, %39 : vector<16x32xf32>
    %41 = arith.truncf %40 : vector<16x32xf32> to vector<16x32xbf16>
    %c0_17 = arith.constant 0 : index
    %c0_18 = arith.constant 0 : index
    %c0_19 = arith.constant 0 : index
    %42 = vector.load %arg6[%c0_17, %c0_18, %c0_19] : memref<5x32x32xbf16, #tpu.memory_space<vmem>>, vector<1x32x32xbf16>
    %43 = vector.shape_cast %42 : vector<1x32x32xbf16> to vector<32x32xbf16>
    %cst_20 = arith.constant dense<0.000000e+00> : vector<16x32xf32>
    %44 = tpu.matmul %41, %43, %cst_20 {dimension_numbers = #tpu.dot_dimension_numbers<[1], [0], [0], [1], [0, 0, 1, 1], [], []>} : vector<16x32xbf16>, vector<32x32xbf16>, vector<16x32xf32> -> vector<16x32xf32>
    %c0_21 = arith.constant 0 : index
    %c0_22 = arith.constant 0 : index
    %c0_23 = arith.constant 0 : index
    %45 = vector.load %arg8[%c0_21, %c0_22, %c0_23] : memref<5x64x32xbf16, #tpu.memory_space<vmem>>, vector<1x64x32xbf16>
    %46 = vector.shape_cast %45 : vector<1x64x32xbf16> to vector<64x32xbf16>
    %cst_24 = arith.constant dense<0.000000e+00> : vector<16x32xf32>
    %47 = tpu.matmul %28, %46, %cst_24 {dimension_numbers = #tpu.dot_dimension_numbers<[1], [0], [0], [1], [0, 0, 1, 1], [], []>} : vector<16x64xbf16>, vector<64x32xbf16>, vector<16x32xf32> -> vector<16x32xf32>
    %48 = arith.addf %47, %44 : vector<16x32xf32>
    %c0_25 = arith.constant 0 : index
    %c0_26 = arith.constant 0 : index
    %c0_27 = arith.constant 0 : index
    %49 = vector.load %arg7[%c0_25, %c0_26, %c0_27] : memref<5x1x32xf32, #tpu.memory_space<vmem>>, vector<1x1x32xf32>
    %50 = vector.shape_cast %49 : vector<1x1x32xf32> to vector<1x32xf32>
    %51 = vector.broadcast %50 : vector<1x32xf32> to vector<16x32xf32>
    %52 = arith.addf %48, %51 : vector<16x32xf32>
    %53 = vector.shape_cast %52 : vector<16x32xf32> to vector<2x8x32xf32>
    %cst_28 = arith.constant dense<0xFF800000> : vector<2x32xf32>
    %54 = vector.multi_reduction <maximumf>, %53, %cst_28 [1] : vector<2x8x32xf32> to vector<2x32xf32>
    %55 = arith.truncf %52 : vector<16x32xf32> to vector<16x32xbf16>
    %cst_29 = arith.constant 0.000000e+00 : f32
    %56 = vector.broadcast %cst_29 : f32 to vector<16x32xf32>
    %57 = arith.maximumf %52, %56 : vector<16x32xf32>
    %58 = arith.truncf %57 : vector<16x32xf32> to vector<16x32xbf16>
    %59 = arith.truncf %54 : vector<2x32xf32> to vector<2x32xbf16>
    %cst_30 = arith.constant 0.000000e+00 : bf16
    %60 = vector.broadcast %cst_30 : bf16 to vector<2x32xbf16>
    %61 = arith.maximumf %59, %60 : vector<2x32xbf16>
    %c1_31 = arith.constant 1 : index
    %c0_32 = arith.constant 0 : index
    %c0_33 = arith.constant 0 : index
    %62 = vector.load %arg4[%c1_31, %c0_32, %c0_33] : memref<5x64x32xbf16, #tpu.memory_space<vmem>>, vector<1x64x32xbf16>
    %63 = vector.shape_cast %62 : vector<1x64x32xbf16> to vector<64x32xbf16>
    %c1_34 = arith.constant 1 : index
    %c0_35 = arith.constant 0 : index
    %c0_36 = arith.constant 0 : index
    %64 = vector.load %arg8[%c1_34, %c0_35, %c0_36] : memref<5x64x32xbf16, #tpu.memory_space<vmem>>, vector<1x64x32xbf16>
    %65 = vector.shape_cast %64 : vector<1x64x32xbf16> to vector<64x32xbf16>
    %66 = vector.extract_strided_slice %63 {offsets = [32, 0], sizes = [32, 32], strides = [1, 1]} : vector<64x32xbf16> to vector<32x32xbf16>
    %cst_37 = arith.constant dense<0.000000e+00> : vector<2x32xf32>
    %67 = tpu.matmul %61, %66, %cst_37 {dimension_numbers = #tpu.dot_dimension_numbers<[1], [0], [0], [1], [0, 0, 1, 1], [], []>} : vector<2x32xbf16>, vector<32x32xbf16>, vector<2x32xf32> -> vector<2x32xf32>
    %c1_38 = arith.constant 1 : index
    %c0_39 = arith.constant 0 : index
    %c0_40 = arith.constant 0 : index
    %68 = vector.load %arg5[%c1_38, %c0_39, %c0_40] : memref<5x1x32xf32, #tpu.memory_space<vmem>>, vector<1x1x32xf32>
    %69 = vector.shape_cast %68 : vector<1x1x32xf32> to vector<1x32xf32>
    %70 = vector.broadcast %69 : vector<1x32xf32> to vector<2x32xf32>
    %71 = arith.addf %67, %70 : vector<2x32xf32>
    %72 = vector.extract_strided_slice %63 {offsets = [0, 0], sizes = [32, 32], strides = [1, 1]} : vector<64x32xbf16> to vector<32x32xbf16>
    %cst_41 = arith.constant dense<0.000000e+00> : vector<16x32xf32>
    %73 = tpu.matmul %58, %72, %cst_41 {dimension_numbers = #tpu.dot_dimension_numbers<[1], [0], [0], [1], [0, 0, 1, 1], [], []>} : vector<16x32xbf16>, vector<32x32xbf16>, vector<16x32xf32> -> vector<16x32xf32>
    %74 = vector.shape_cast %73 : vector<16x32xf32> to vector<2x8x32xf32>
    %75 = vector.shape_cast %71 : vector<2x32xf32> to vector<2x1x32xf32>
    %76 = vector.broadcast %75 : vector<2x1x32xf32> to vector<2x8x32xf32>
    %77 = arith.addf %74, %76 : vector<2x8x32xf32>
    %cst_42 = arith.constant 0.000000e+00 : f32
    %78 = vector.broadcast %cst_42 : f32 to vector<2x8x32xf32>
    %79 = arith.maximumf %77, %78 : vector<2x8x32xf32>
    %80 = arith.truncf %79 : vector<2x8x32xf32> to vector<2x8x32xbf16>
    %81 = vector.shape_cast %80 : vector<2x8x32xbf16> to vector<16x32xbf16>
    %c1_43 = arith.constant 1 : index
    %c0_44 = arith.constant 0 : index
    %c0_45 = arith.constant 0 : index
    %82 = vector.load %arg6[%c1_43, %c0_44, %c0_45] : memref<5x32x32xbf16, #tpu.memory_space<vmem>>, vector<1x32x32xbf16>
    %83 = vector.shape_cast %82 : vector<1x32x32xbf16> to vector<32x32xbf16>
    %cst_46 = arith.constant dense<0.000000e+00> : vector<16x32xf32>
    %84 = tpu.matmul %81, %83, %cst_46 {dimension_numbers = #tpu.dot_dimension_numbers<[1], [0], [0], [1], [0, 0, 1, 1], [], []>} : vector<16x32xbf16>, vector<32x32xbf16>, vector<16x32xf32> -> vector<16x32xf32>
    %85 = vector.extract_strided_slice %65 {offsets = [32, 0], sizes = [32, 32], strides = [1, 1]} : vector<64x32xbf16> to vector<32x32xbf16>
    %cst_47 = arith.constant dense<0.000000e+00> : vector<2x32xf32>
    %86 = tpu.matmul %59, %85, %cst_47 {dimension_numbers = #tpu.dot_dimension_numbers<[1], [0], [0], [1], [0, 0, 1, 1], [], []>} : vector<2x32xbf16>, vector<32x32xbf16>, vector<2x32xf32> -> vector<2x32xf32>
    %c1_48 = arith.constant 1 : index
    %c0_49 = arith.constant 0 : index
    %c0_50 = arith.constant 0 : index
    %87 = vector.load %arg7[%c1_48, %c0_49, %c0_50] : memref<5x1x32xf32, #tpu.memory_space<vmem>>, vector<1x1x32xf32>
    %88 = vector.shape_cast %87 : vector<1x1x32xf32> to vector<1x32xf32>
    %89 = vector.broadcast %88 : vector<1x32xf32> to vector<2x32xf32>
    %90 = arith.addf %86, %89 : vector<2x32xf32>
    %91 = vector.extract_strided_slice %65 {offsets = [0, 0], sizes = [32, 32], strides = [1, 1]} : vector<64x32xbf16> to vector<32x32xbf16>
    %cst_51 = arith.constant dense<0.000000e+00> : vector<16x32xf32>
    %92 = tpu.matmul %55, %91, %cst_51 {dimension_numbers = #tpu.dot_dimension_numbers<[1], [0], [0], [1], [0, 0, 1, 1], [], []>} : vector<16x32xbf16>, vector<32x32xbf16>, vector<16x32xf32> -> vector<16x32xf32>
    %93 = arith.addf %92, %84 : vector<16x32xf32>
    %94 = vector.shape_cast %93 : vector<16x32xf32> to vector<2x8x32xf32>
    %95 = vector.shape_cast %90 : vector<2x32xf32> to vector<2x1x32xf32>
    %96 = vector.broadcast %95 : vector<2x1x32xf32> to vector<2x8x32xf32>
    %97 = arith.addf %94, %96 : vector<2x8x32xf32>
    %98 = vector.shape_cast %97 : vector<2x8x32xf32> to vector<16x32xf32>
    %99 = vector.shape_cast %98 : vector<16x32xf32> to vector<2x8x32xf32>
    %cst_52 = arith.constant dense<0xFF800000> : vector<2x32xf32>
    %100 = vector.multi_reduction <maximumf>, %99, %cst_52 [1] : vector<2x8x32xf32> to vector<2x32xf32>
    %101 = arith.truncf %98 : vector<16x32xf32> to vector<16x32xbf16>
    %cst_53 = arith.constant 0.000000e+00 : f32
    %102 = vector.broadcast %cst_53 : f32 to vector<16x32xf32>
    %103 = arith.maximumf %98, %102 : vector<16x32xf32>
    %104 = arith.truncf %103 : vector<16x32xf32> to vector<16x32xbf16>
    %105 = arith.truncf %100 : vector<2x32xf32> to vector<2x32xbf16>
    %cst_54 = arith.constant 0.000000e+00 : bf16
    %106 = vector.broadcast %cst_54 : bf16 to vector<2x32xbf16>
    %107 = arith.maximumf %105, %106 : vector<2x32xbf16>
    %c2_55 = arith.constant 2 : index
    %c0_56 = arith.constant 0 : index
    %c0_57 = arith.constant 0 : index
    %108 = vector.load %arg4[%c2_55, %c0_56, %c0_57] : memref<5x64x32xbf16, #tpu.memory_space<vmem>>, vector<1x64x32xbf16>
    %109 = vector.shape_cast %108 : vector<1x64x32xbf16> to vector<64x32xbf16>
    %c2_58 = arith.constant 2 : index
    %c0_59 = arith.constant 0 : index
    %c0_60 = arith.constant 0 : index
    %110 = vector.load %arg8[%c2_58, %c0_59, %c0_60] : memref<5x64x32xbf16, #tpu.memory_space<vmem>>, vector<1x64x32xbf16>
    %111 = vector.shape_cast %110 : vector<1x64x32xbf16> to vector<64x32xbf16>
    %112 = vector.extract_strided_slice %109 {offsets = [32, 0], sizes = [32, 32], strides = [1, 1]} : vector<64x32xbf16> to vector<32x32xbf16>
    %cst_61 = arith.constant dense<0.000000e+00> : vector<2x32xf32>
    %113 = tpu.matmul %107, %112, %cst_61 {dimension_numbers = #tpu.dot_dimension_numbers<[1], [0], [0], [1], [0, 0, 1, 1], [], []>} : vector<2x32xbf16>, vector<32x32xbf16>, vector<2x32xf32> -> vector<2x32xf32>
    %c2_62 = arith.constant 2 : index
    %c0_63 = arith.constant 0 : index
    %c0_64 = arith.constant 0 : index
    %114 = vector.load %arg5[%c2_62, %c0_63, %c0_64] : memref<5x1x32xf32, #tpu.memory_space<vmem>>, vector<1x1x32xf32>
    %115 = vector.shape_cast %114 : vector<1x1x32xf32> to vector<1x32xf32>
    %116 = vector.broadcast %115 : vector<1x32xf32> to vector<2x32xf32>
    %117 = arith.addf %113, %116 : vector<2x32xf32>
    %118 = vector.extract_strided_slice %109 {offsets = [0, 0], sizes = [32, 32], strides = [1, 1]} : vector<64x32xbf16> to vector<32x32xbf16>
    %cst_65 = arith.constant dense<0.000000e+00> : vector<16x32xf32>
    %119 = tpu.matmul %104, %118, %cst_65 {dimension_numbers = #tpu.dot_dimension_numbers<[1], [0], [0], [1], [0, 0, 1, 1], [], []>} : vector<16x32xbf16>, vector<32x32xbf16>, vector<16x32xf32> -> vector<16x32xf32>
    %120 = vector.shape_cast %119 : vector<16x32xf32> to vector<2x8x32xf32>
    %121 = vector.shape_cast %117 : vector<2x32xf32> to vector<2x1x32xf32>
    %122 = vector.broadcast %121 : vector<2x1x32xf32> to vector<2x8x32xf32>
    %123 = arith.addf %120, %122 : vector<2x8x32xf32>
    %cst_66 = arith.constant 0.000000e+00 : f32
    %124 = vector.broadcast %cst_66 : f32 to vector<2x8x32xf32>
    %125 = arith.maximumf %123, %124 : vector<2x8x32xf32>
    %126 = arith.truncf %125 : vector<2x8x32xf32> to vector<2x8x32xbf16>
    %127 = vector.shape_cast %126 : vector<2x8x32xbf16> to vector<16x32xbf16>
    %c2_67 = arith.constant 2 : index
    %c0_68 = arith.constant 0 : index
    %c0_69 = arith.constant 0 : index
    %128 = vector.load %arg6[%c2_67, %c0_68, %c0_69] : memref<5x32x32xbf16, #tpu.memory_space<vmem>>, vector<1x32x32xbf16>
    %129 = vector.shape_cast %128 : vector<1x32x32xbf16> to vector<32x32xbf16>
    %cst_70 = arith.constant dense<0.000000e+00> : vector<16x32xf32>
    %130 = tpu.matmul %127, %129, %cst_70 {dimension_numbers = #tpu.dot_dimension_numbers<[1], [0], [0], [1], [0, 0, 1, 1], [], []>} : vector<16x32xbf16>, vector<32x32xbf16>, vector<16x32xf32> -> vector<16x32xf32>
    %131 = vector.extract_strided_slice %111 {offsets = [32, 0], sizes = [32, 32], strides = [1, 1]} : vector<64x32xbf16> to vector<32x32xbf16>
    %cst_71 = arith.constant dense<0.000000e+00> : vector<2x32xf32>
    %132 = tpu.matmul %105, %131, %cst_71 {dimension_numbers = #tpu.dot_dimension_numbers<[1], [0], [0], [1], [0, 0, 1, 1], [], []>} : vector<2x32xbf16>, vector<32x32xbf16>, vector<2x32xf32> -> vector<2x32xf32>
    %c2_72 = arith.constant 2 : index
    %c0_73 = arith.constant 0 : index
    %c0_74 = arith.constant 0 : index
    %133 = vector.load %arg7[%c2_72, %c0_73, %c0_74] : memref<5x1x32xf32, #tpu.memory_space<vmem>>, vector<1x1x32xf32>
    %134 = vector.shape_cast %133 : vector<1x1x32xf32> to vector<1x32xf32>
    %135 = vector.broadcast %134 : vector<1x32xf32> to vector<2x32xf32>
    %136 = arith.addf %132, %135 : vector<2x32xf32>
    %137 = vector.extract_strided_slice %111 {offsets = [0, 0], sizes = [32, 32], strides = [1, 1]} : vector<64x32xbf16> to vector<32x32xbf16>
    %cst_75 = arith.constant dense<0.000000e+00> : vector<16x32xf32>
    %138 = tpu.matmul %101, %137, %cst_75 {dimension_numbers = #tpu.dot_dimension_numbers<[1], [0], [0], [1], [0, 0, 1, 1], [], []>} : vector<16x32xbf16>, vector<32x32xbf16>, vector<16x32xf32> -> vector<16x32xf32>
    %139 = arith.addf %138, %130 : vector<16x32xf32>
    %140 = vector.shape_cast %139 : vector<16x32xf32> to vector<2x8x32xf32>
    %141 = vector.shape_cast %136 : vector<2x32xf32> to vector<2x1x32xf32>
    %142 = vector.broadcast %141 : vector<2x1x32xf32> to vector<2x8x32xf32>
    %143 = arith.addf %140, %142 : vector<2x8x32xf32>
    %144 = vector.shape_cast %143 : vector<2x8x32xf32> to vector<16x32xf32>
    %145 = vector.shape_cast %144 : vector<16x32xf32> to vector<2x8x32xf32>
    %cst_76 = arith.constant dense<0xFF800000> : vector<2x32xf32>
    %146 = vector.multi_reduction <maximumf>, %145, %cst_76 [1] : vector<2x8x32xf32> to vector<2x32xf32>
    %147 = arith.truncf %144 : vector<16x32xf32> to vector<16x32xbf16>
    %cst_77 = arith.constant 0.000000e+00 : f32
    %148 = vector.broadcast %cst_77 : f32 to vector<16x32xf32>
    %149 = arith.maximumf %144, %148 : vector<16x32xf32>
    %150 = arith.truncf %149 : vector<16x32xf32> to vector<16x32xbf16>
    %151 = arith.truncf %146 : vector<2x32xf32> to vector<2x32xbf16>
    %cst_78 = arith.constant 0.000000e+00 : bf16
    %152 = vector.broadcast %cst_78 : bf16 to vector<2x32xbf16>
    %153 = arith.maximumf %151, %152 : vector<2x32xbf16>
    %c3_79 = arith.constant 3 : index
    %c0_80 = arith.constant 0 : index
    %c0_81 = arith.constant 0 : index
    %154 = vector.load %arg4[%c3_79, %c0_80, %c0_81] : memref<5x64x32xbf16, #tpu.memory_space<vmem>>, vector<1x64x32xbf16>
    %155 = vector.shape_cast %154 : vector<1x64x32xbf16> to vector<64x32xbf16>
    %c3_82 = arith.constant 3 : index
    %c0_83 = arith.constant 0 : index
    %c0_84 = arith.constant 0 : index
    %156 = vector.load %arg8[%c3_82, %c0_83, %c0_84] : memref<5x64x32xbf16, #tpu.memory_space<vmem>>, vector<1x64x32xbf16>
    %157 = vector.shape_cast %156 : vector<1x64x32xbf16> to vector<64x32xbf16>
    %158 = vector.extract_strided_slice %155 {offsets = [32, 0], sizes = [32, 32], strides = [1, 1]} : vector<64x32xbf16> to vector<32x32xbf16>
    %cst_85 = arith.constant dense<0.000000e+00> : vector<2x32xf32>
    %159 = tpu.matmul %153, %158, %cst_85 {dimension_numbers = #tpu.dot_dimension_numbers<[1], [0], [0], [1], [0, 0, 1, 1], [], []>} : vector<2x32xbf16>, vector<32x32xbf16>, vector<2x32xf32> -> vector<2x32xf32>
    %c3_86 = arith.constant 3 : index
    %c0_87 = arith.constant 0 : index
    %c0_88 = arith.constant 0 : index
    %160 = vector.load %arg5[%c3_86, %c0_87, %c0_88] : memref<5x1x32xf32, #tpu.memory_space<vmem>>, vector<1x1x32xf32>
    %161 = vector.shape_cast %160 : vector<1x1x32xf32> to vector<1x32xf32>
    %162 = vector.broadcast %161 : vector<1x32xf32> to vector<2x32xf32>
    %163 = arith.addf %159, %162 : vector<2x32xf32>
    %164 = vector.extract_strided_slice %155 {offsets = [0, 0], sizes = [32, 32], strides = [1, 1]} : vector<64x32xbf16> to vector<32x32xbf16>
    %cst_89 = arith.constant dense<0.000000e+00> : vector<16x32xf32>
    %165 = tpu.matmul %150, %164, %cst_89 {dimension_numbers = #tpu.dot_dimension_numbers<[1], [0], [0], [1], [0, 0, 1, 1], [], []>} : vector<16x32xbf16>, vector<32x32xbf16>, vector<16x32xf32> -> vector<16x32xf32>
    %166 = vector.shape_cast %165 : vector<16x32xf32> to vector<2x8x32xf32>
    %167 = vector.shape_cast %163 : vector<2x32xf32> to vector<2x1x32xf32>
    %168 = vector.broadcast %167 : vector<2x1x32xf32> to vector<2x8x32xf32>
    %169 = arith.addf %166, %168 : vector<2x8x32xf32>
    %cst_90 = arith.constant 0.000000e+00 : f32
    %170 = vector.broadcast %cst_90 : f32 to vector<2x8x32xf32>
    %171 = arith.maximumf %169, %170 : vector<2x8x32xf32>
    %172 = arith.truncf %171 : vector<2x8x32xf32> to vector<2x8x32xbf16>
    %173 = vector.shape_cast %172 : vector<2x8x32xbf16> to vector<16x32xbf16>
    %c3_91 = arith.constant 3 : index
    %c0_92 = arith.constant 0 : index
    %c0_93 = arith.constant 0 : index
    %174 = vector.load %arg6[%c3_91, %c0_92, %c0_93] : memref<5x32x32xbf16, #tpu.memory_space<vmem>>, vector<1x32x32xbf16>
    %175 = vector.shape_cast %174 : vector<1x32x32xbf16> to vector<32x32xbf16>
    %cst_94 = arith.constant dense<0.000000e+00> : vector<16x32xf32>
    %176 = tpu.matmul %173, %175, %cst_94 {dimension_numbers = #tpu.dot_dimension_numbers<[1], [0], [0], [1], [0, 0, 1, 1], [], []>} : vector<16x32xbf16>, vector<32x32xbf16>, vector<16x32xf32> -> vector<16x32xf32>
    %177 = vector.extract_strided_slice %157 {offsets = [32, 0], sizes = [32, 32], strides = [1, 1]} : vector<64x32xbf16> to vector<32x32xbf16>
    %cst_95 = arith.constant dense<0.000000e+00> : vector<2x32xf32>
    %178 = tpu.matmul %151, %177, %cst_95 {dimension_numbers = #tpu.dot_dimension_numbers<[1], [0], [0], [1], [0, 0, 1, 1], [], []>} : vector<2x32xbf16>, vector<32x32xbf16>, vector<2x32xf32> -> vector<2x32xf32>
    %c3_96 = arith.constant 3 : index
    %c0_97 = arith.constant 0 : index
    %c0_98 = arith.constant 0 : index
    %179 = vector.load %arg7[%c3_96, %c0_97, %c0_98] : memref<5x1x32xf32, #tpu.memory_space<vmem>>, vector<1x1x32xf32>
    %180 = vector.shape_cast %179 : vector<1x1x32xf32> to vector<1x32xf32>
    %181 = vector.broadcast %180 : vector<1x32xf32> to vector<2x32xf32>
    %182 = arith.addf %178, %181 : vector<2x32xf32>
    %183 = vector.extract_strided_slice %157 {offsets = [0, 0], sizes = [32, 32], strides = [1, 1]} : vector<64x32xbf16> to vector<32x32xbf16>
    %cst_99 = arith.constant dense<0.000000e+00> : vector<16x32xf32>
    %184 = tpu.matmul %147, %183, %cst_99 {dimension_numbers = #tpu.dot_dimension_numbers<[1], [0], [0], [1], [0, 0, 1, 1], [], []>} : vector<16x32xbf16>, vector<32x32xbf16>, vector<16x32xf32> -> vector<16x32xf32>
    %185 = arith.addf %184, %176 : vector<16x32xf32>
    %186 = vector.shape_cast %185 : vector<16x32xf32> to vector<2x8x32xf32>
    %187 = vector.shape_cast %182 : vector<2x32xf32> to vector<2x1x32xf32>
    %188 = vector.broadcast %187 : vector<2x1x32xf32> to vector<2x8x32xf32>
    %189 = arith.addf %186, %188 : vector<2x8x32xf32>
    %190 = vector.shape_cast %189 : vector<2x8x32xf32> to vector<16x32xf32>
    %191 = vector.shape_cast %190 : vector<16x32xf32> to vector<2x8x32xf32>
    %cst_100 = arith.constant dense<0xFF800000> : vector<2x32xf32>
    %192 = vector.multi_reduction <maximumf>, %191, %cst_100 [1] : vector<2x8x32xf32> to vector<2x32xf32>
    %193 = arith.truncf %190 : vector<16x32xf32> to vector<16x32xbf16>
    %cst_101 = arith.constant 0.000000e+00 : f32
    %194 = vector.broadcast %cst_101 : f32 to vector<16x32xf32>
    %195 = arith.maximumf %190, %194 : vector<16x32xf32>
    %196 = arith.truncf %195 : vector<16x32xf32> to vector<16x32xbf16>
    %197 = arith.truncf %192 : vector<2x32xf32> to vector<2x32xbf16>
    %cst_102 = arith.constant 0.000000e+00 : bf16
    %198 = vector.broadcast %cst_102 : bf16 to vector<2x32xbf16>
    %199 = arith.maximumf %197, %198 : vector<2x32xbf16>
    %c4 = arith.constant 4 : index
    %c0_103 = arith.constant 0 : index
    %c0_104 = arith.constant 0 : index
    %200 = vector.load %arg4[%c4, %c0_103, %c0_104] : memref<5x64x32xbf16, #tpu.memory_space<vmem>>, vector<1x64x32xbf16>
    %201 = vector.shape_cast %200 : vector<1x64x32xbf16> to vector<64x32xbf16>
    %c4_105 = arith.constant 4 : index
    %c0_106 = arith.constant 0 : index
    %c0_107 = arith.constant 0 : index
    %202 = vector.load %arg8[%c4_105, %c0_106, %c0_107] : memref<5x64x32xbf16, #tpu.memory_space<vmem>>, vector<1x64x32xbf16>
    %203 = vector.shape_cast %202 : vector<1x64x32xbf16> to vector<64x32xbf16>
    %204 = vector.extract_strided_slice %201 {offsets = [32, 0], sizes = [32, 32], strides = [1, 1]} : vector<64x32xbf16> to vector<32x32xbf16>
    %cst_108 = arith.constant dense<0.000000e+00> : vector<2x32xf32>
    %205 = tpu.matmul %199, %204, %cst_108 {dimension_numbers = #tpu.dot_dimension_numbers<[1], [0], [0], [1], [0, 0, 1, 1], [], []>} : vector<2x32xbf16>, vector<32x32xbf16>, vector<2x32xf32> -> vector<2x32xf32>
    %c4_109 = arith.constant 4 : index
    %c0_110 = arith.constant 0 : index
    %c0_111 = arith.constant 0 : index
    %206 = vector.load %arg5[%c4_109, %c0_110, %c0_111] : memref<5x1x32xf32, #tpu.memory_space<vmem>>, vector<1x1x32xf32>
    %207 = vector.shape_cast %206 : vector<1x1x32xf32> to vector<1x32xf32>
    %208 = vector.broadcast %207 : vector<1x32xf32> to vector<2x32xf32>
    %209 = arith.addf %205, %208 : vector<2x32xf32>
    %210 = vector.extract_strided_slice %201 {offsets = [0, 0], sizes = [32, 32], strides = [1, 1]} : vector<64x32xbf16> to vector<32x32xbf16>
    %cst_112 = arith.constant dense<0.000000e+00> : vector<16x32xf32>
    %211 = tpu.matmul %196, %210, %cst_112 {dimension_numbers = #tpu.dot_dimension_numbers<[1], [0], [0], [1], [0, 0, 1, 1], [], []>} : vector<16x32xbf16>, vector<32x32xbf16>, vector<16x32xf32> -> vector<16x32xf32>
    %212 = vector.shape_cast %211 : vector<16x32xf32> to vector<2x8x32xf32>
    %213 = vector.shape_cast %209 : vector<2x32xf32> to vector<2x1x32xf32>
    %214 = vector.broadcast %213 : vector<2x1x32xf32> to vector<2x8x32xf32>
    %215 = arith.addf %212, %214 : vector<2x8x32xf32>
    %cst_113 = arith.constant 0.000000e+00 : f32
    %216 = vector.broadcast %cst_113 : f32 to vector<2x8x32xf32>
    %217 = arith.maximumf %215, %216 : vector<2x8x32xf32>
    %218 = arith.truncf %217 : vector<2x8x32xf32> to vector<2x8x32xbf16>
    %219 = vector.shape_cast %218 : vector<2x8x32xbf16> to vector<16x32xbf16>
    %c4_114 = arith.constant 4 : index
    %c0_115 = arith.constant 0 : index
    %c0_116 = arith.constant 0 : index
    %220 = vector.load %arg6[%c4_114, %c0_115, %c0_116] : memref<5x32x32xbf16, #tpu.memory_space<vmem>>, vector<1x32x32xbf16>
    %221 = vector.shape_cast %220 : vector<1x32x32xbf16> to vector<32x32xbf16>
    %cst_117 = arith.constant dense<0.000000e+00> : vector<16x32xf32>
    %222 = tpu.matmul %219, %221, %cst_117 {dimension_numbers = #tpu.dot_dimension_numbers<[1], [0], [0], [1], [0, 0, 1, 1], [], []>} : vector<16x32xbf16>, vector<32x32xbf16>, vector<16x32xf32> -> vector<16x32xf32>
    %223 = vector.extract_strided_slice %203 {offsets = [32, 0], sizes = [32, 32], strides = [1, 1]} : vector<64x32xbf16> to vector<32x32xbf16>
    %cst_118 = arith.constant dense<0.000000e+00> : vector<2x32xf32>
    %224 = tpu.matmul %197, %223, %cst_118 {dimension_numbers = #tpu.dot_dimension_numbers<[1], [0], [0], [1], [0, 0, 1, 1], [], []>} : vector<2x32xbf16>, vector<32x32xbf16>, vector<2x32xf32> -> vector<2x32xf32>
    %c4_119 = arith.constant 4 : index
    %c0_120 = arith.constant 0 : index
    %c0_121 = arith.constant 0 : index
    %225 = vector.load %arg7[%c4_119, %c0_120, %c0_121] : memref<5x1x32xf32, #tpu.memory_space<vmem>>, vector<1x1x32xf32>
    %226 = vector.shape_cast %225 : vector<1x1x32xf32> to vector<1x32xf32>
    %227 = vector.broadcast %226 : vector<1x32xf32> to vector<2x32xf32>
    %228 = arith.addf %224, %227 : vector<2x32xf32>
    %229 = vector.extract_strided_slice %203 {offsets = [0, 0], sizes = [32, 32], strides = [1, 1]} : vector<64x32xbf16> to vector<32x32xbf16>
    %cst_122 = arith.constant dense<0.000000e+00> : vector<16x32xf32>
    %230 = tpu.matmul %193, %229, %cst_122 {dimension_numbers = #tpu.dot_dimension_numbers<[1], [0], [0], [1], [0, 0, 1, 1], [], []>} : vector<16x32xbf16>, vector<32x32xbf16>, vector<16x32xf32> -> vector<16x32xf32>
    %231 = arith.addf %230, %222 : vector<16x32xf32>
    %232 = vector.shape_cast %231 : vector<16x32xf32> to vector<2x8x32xf32>
    %233 = vector.shape_cast %228 : vector<2x32xf32> to vector<2x1x32xf32>
    %234 = vector.broadcast %233 : vector<2x1x32xf32> to vector<2x8x32xf32>
    %235 = arith.addf %232, %234 : vector<2x8x32xf32>
    %236 = vector.shape_cast %235 : vector<2x8x32xf32> to vector<16x32xf32>
    %237 = vector.shape_cast %236 : vector<16x32xf32> to vector<2x8x32xf32>
    %cst_123 = arith.constant dense<0xFF800000> : vector<2x32xf32>
    %238 = vector.multi_reduction <maximumf>, %237, %cst_123 [1] : vector<2x8x32xf32> to vector<2x32xf32>
    %cst_124 = arith.constant 0.000000e+00 : f32
    %239 = vector.broadcast %cst_124 : f32 to vector<2x32xf32>
    %240 = arith.maximumf %238, %239 : vector<2x32xf32>
    %241 = arith.truncf %240 : vector<2x32xf32> to vector<2x32xbf16>
    %c0_125 = arith.constant 0 : index
    %c0_126 = arith.constant 0 : index
    %242 = vector.load %arg9[%c0_125, %c0_126] : memref<32x128xbf16, #tpu.memory_space<vmem>>, vector<32x128xbf16>
    %cst_127 = arith.constant dense<0.000000e+00> : vector<2x128xf32>
    %243 = tpu.matmul %241, %242, %cst_127 {dimension_numbers = #tpu.dot_dimension_numbers<[1], [0], [0], [1], [0, 0, 1, 1], [], []>} : vector<2x32xbf16>, vector<32x128xbf16>, vector<2x128xf32> -> vector<2x128xf32>
    %c0_128 = arith.constant 0 : index
    %c0_129 = arith.constant 0 : index
    %244 = vector.load %arg10[%c0_128, %c0_129] : memref<1x128xf32, #tpu.memory_space<vmem>>, vector<1x128xf32>
    %245 = vector.broadcast %244 : vector<1x128xf32> to vector<2x128xf32>
    %246 = arith.addf %243, %245 : vector<2x128xf32>
    %c0_130 = arith.constant 0 : index
    %c0_131 = arith.constant 0 : index
    %c0_132 = arith.constant 0 : index
    %247 = vector.load %arg11[%c0_130, %c0_131, %c0_132] : memref<1x2x128xf32, #tpu.memory_space<vmem>>, vector<1x2x128xf32>
    %248 = vector.shape_cast %247 : vector<1x2x128xf32> to vector<2x128xf32>
    %249 = vector.shape_cast %246 : vector<2x128xf32> to vector<1x2x128xf32>
    tpu.vector_store %arg11[%c0_130, %c0_131, %c0_132], %249 {strides = array<i32>} : memref<1x2x128xf32, #tpu.memory_space<vmem>>, vector<1x2x128xf32>,
    return
  }
  func.func @transform_0(%arg0: i32) -> (i32, i32, i32) {
    %c0_i32 = arith.constant 0 : i32
    %c0_i32_0 = arith.constant 0 : i32
    %c0_i32_1 = arith.constant 0 : i32
    return %arg0, %c0_i32, %c0_i32_0 : i32, i32, i32
  }
  func.func @transform_1(%arg0: i32) -> (i32, i32) {
    %c0_i32 = arith.constant 0 : i32
    %c0_i32_0 = arith.constant 0 : i32
    %c0_i32_1 = arith.constant 0 : i32
    return %c0_i32, %c0_i32_0 : i32, i32
  }
  func.func @transform_2(%arg0: i32) -> (i32, i32) {
    %c0_i32 = arith.constant 0 : i32
    %c0_i32_0 = arith.constant 0 : i32
    %c0_i32_1 = arith.constant 0 : i32
    return %c0_i32, %c0_i32_0 : i32, i32
  }
  func.func @transform_3(%arg0: i32) -> (i32, i32, i32) {
    %c0_i32 = arith.constant 0 : i32
    %c0_i32_0 = arith.constant 0 : i32
    %c0_i32_1 = arith.constant 0 : i32
    %c0_i32_2 = arith.constant 0 : i32
    return %c0_i32, %c0_i32_0, %c0_i32_1 : i32, i32, i32
  }
  func.func @transform_4(%arg0: i32) -> (i32, i32, i32) {
    %c0_i32 = arith.constant 0 : i32
    %c0_i32_0 = arith.constant 0 : i32
    %c0_i32_1 = arith.constant 0 : i32
    %c0_i32_2 = arith.constant 0 : i32
    return %c0_i32, %c0_i32_0, %c0_i32_1 : i32, i32, i32
  }
  func.func @transform_5(%arg0: i32) -> (i32, i32, i32) {
    %c0_i32 = arith.constant 0 : i32
    %c0_i32_0 = arith.constant 0 : i32
    %c0_i32_1 = arith.constant 0 : i32
    %c0_i32_2 = arith.constant 0 : i32
    return %c0_i32, %c0_i32_0, %c0_i32_1 : i32, i32, i32
  }
  func.func @transform_6(%arg0: i32) -> (i32, i32, i32) {
    %c0_i32 = arith.constant 0 : i32
    %c0_i32_0 = arith.constant 0 : i32
    %c0_i32_1 = arith.constant 0 : i32
    %c0_i32_2 = arith.constant 0 : i32
    return %c0_i32, %c0_i32_0, %c0_i32_1 : i32, i32, i32
  }
  func.func @transform_7(%arg0: i32) -> (i32, i32, i32) {
    %c0_i32 = arith.constant 0 : i32
    %c0_i32_0 = arith.constant 0 : i32
    %c0_i32_1 = arith.constant 0 : i32
    %c0_i32_2 = arith.constant 0 : i32
    return %c0_i32, %c0_i32_0, %c0_i32_1 : i32, i32, i32
  }
  func.func @transform_8(%arg0: i32) -> (i32, i32) {
    %c0_i32 = arith.constant 0 : i32
    %c0_i32_0 = arith.constant 0 : i32
    %c0_i32_1 = arith.constant 0 : i32
    return %c0_i32, %c0_i32_0 : i32, i32
  }
  func.func @transform_9(%arg0: i32) -> (i32, i32) {
    %c0_i32 = arith.constant 0 : i32
    %c0_i32_0 = arith.constant 0 : i32
    %c0_i32_1 = arith.constant 0 : i32
    return %c0_i32, %c0_i32_0 : i32, i32
  }
  func.func @transform_10(%arg0: i32) -> (i32, i32, i32) {
    %c0_i32 = arith.constant 0 : i32
    %c0_i32_0 = arith.constant 0 : i32
    %c0_i32_1 = arith.constant 0 : i32
    return %arg0, %c0_i32, %c0_i32_0 : i32, i32, i32
  }
}

</mosaic_0001>

<llo_original>
// kernel: tpu_custom_call.1
$region0: #{tpu_custom_call.1}
  #allocation0 [shape = 'u32[]', space=smem, size = 0x4, offset = 0x4, fixed_abs, tag = 'smem constant byte address 0x4 - core index']
  #allocation1 [shape = 'u32[144,128]{1,0:T(1,128)}', space=vmem, size = 0x12000, scoped, tag = 'internal scratch']
  %s0 = inlined_call_operand.vmem [shape: f32[2,8,4], index: 0, kind: input, shape index: {}]
  %s1 = inlined_call_operand.vmem [shape: f32[4,64], index: 1, kind: input, shape index: {}]
  %s2 = inlined_call_operand.vmem [shape: f32[1,64], index: 2, kind: input, shape index: {}]
  %s3 = inlined_call_operand.vmem [shape: bf16[5,64,32], index: 3, kind: input, shape index: {}]
  %s4 = inlined_call_operand.vmem [shape: f32[5,1,32], index: 4, kind: input, shape index: {}]
  %s5 = inlined_call_operand.vmem [shape: bf16[5,32,32], index: 5, kind: input, shape index: {}]
  %s6 = inlined_call_operand.vmem [shape: f32[5,1,32], index: 6, kind: input, shape index: {}]
  %s7 = inlined_call_operand.vmem [shape: bf16[5,64,32], index: 7, kind: input, shape index: {}]
  %s8 = inlined_call_operand.vmem [shape: bf16[32,128], index: 8, kind: input, shape index: {}]
  %s9 = inlined_call_operand.vmem [shape: f32[1,128], index: 9, kind: input, shape index: {}]
  %s10 = inlined_call_operand.hbm [shape: f32[1,2,128], index: 10, kind: output, shape index: {}]
  %s11 = sld [smem:[#allocation0]]
  $region50: #{tpu_custom_call.1} parent=0
    _
  %s13 = ssub.s32 1, %s11
  %s14 = scalar_select 0, %s13, %s11
  $region1: #{tpu_custom_call.1} parent=0
    #allocation2 [shape = 'u8[1024]{0}', space=vmem, size = 0x400, scoped, tag = 'output window, operand 0, single buffered']
    #allocation3 [shape = 's32[1]{0}', space=sflag, size = 0x4, scoped, tag = 'scoped memory for tpu_custom_call.1']
    %15 = vsyncpa [#allocation3], 0
    // Predicated region
    $region2: #{tpu_custom_call.1} parent=1 // pred_check
      _
    $region3: #{tpu_custom_call.1} parent=1 // pred_check_branch
      %17 = sbr.rel (0) target = $region5
    $region4: #{tpu_custom_call.1} parent=1 // pred_region
      _
    $region5: #{tpu_custom_call.1} parent=1 // pred_fallthru
      _
    // Predicated region
    $region6: #{tpu_custom_call.1} parent=1 // pred_check
      _
    $region7: #{tpu_custom_call.1} parent=1 // pred_check_branch
      %19 = sbr.rel (0) target = $region9
    $region8: #{tpu_custom_call.1} parent=1 // pred_region
      _
    $region9: #{tpu_custom_call.1} parent=1 // pred_fallthru
      _
    // Predicated region
    $region10: #{tpu_custom_call.1} parent=1 // pred_check
      _
    $region11: #{tpu_custom_call.1} parent=1 // pred_check_branch
      %21 = sbr.rel (0) target = $region13
    $region12: #{tpu_custom_call.1} parent=1 // pred_region
      _
    $region13: #{tpu_custom_call.1} parent=1 // pred_fallthru
      _
    // Predicated region
    $region14: #{tpu_custom_call.1} parent=1 // pred_check
      _
    $region15: #{tpu_custom_call.1} parent=1 // pred_check_branch
      %23 = sbr.rel (0) target = $region17
    $region16: #{tpu_custom_call.1} parent=1 // pred_region
      _
    $region17: #{tpu_custom_call.1} parent=1 // pred_fallthru
      _
    // Predicated region
    $region18: #{tpu_custom_call.1} parent=1 // pred_check
      _
    $region19: #{tpu_custom_call.1} parent=1 // pred_check_branch
      %25 = sbr.rel (0) target = $region21
    $region20: #{tpu_custom_call.1} parent=1 // pred_region
      _
    $region21: #{tpu_custom_call.1} parent=1 // pred_fallthru
      _
    // Predicated region
    $region22: #{tpu_custom_call.1} parent=1 // pred_check
      _
    $region23: #{tpu_custom_call.1} parent=1 // pred_check_branch
      %27 = sbr.rel (0) target = $region25
    $region24: #{tpu_custom_call.1} parent=1 // pred_region
      _
    $region25: #{tpu_custom_call.1} parent=1 // pred_fallthru
      _
    // Predicated region
    $region26: #{tpu_custom_call.1} parent=1 // pred_check
      _
    $region27: #{tpu_custom_call.1} parent=1 // pred_check_branch
      %29 = sbr.rel (0) target = $region29
    $region28: #{tpu_custom_call.1} parent=1 // pred_region
      _
    $region29: #{tpu_custom_call.1} parent=1 // pred_fallthru
      _
    // Predicated region
    $region30: #{tpu_custom_call.1} parent=1 // pred_check
      _
    $region31: #{tpu_custom_call.1} parent=1 // pred_check_branch
      %31 = sbr.rel (0) target = $region33
    $region32: #{tpu_custom_call.1} parent=1 // pred_region
      _
    $region33: #{tpu_custom_call.1} parent=1 // pred_fallthru
      _
    // Predicated region
    $region34: #{tpu_custom_call.1} parent=1 // pred_check
      _
    $region35: #{tpu_custom_call.1} parent=1 // pred_check_branch
      %33 = sbr.rel (0) target = $region37
    $region36: #{tpu_custom_call.1} parent=1 // pred_region
      _
    $region37: #{tpu_custom_call.1} parent=1 // pred_fallthru
      _
    // Predicated region
    $region38: #{tpu_custom_call.1} parent=1 // pred_check
      _
    $region39: #{tpu_custom_call.1} parent=1 // pred_check_branch
      %35 = sbr.rel (0) target = $region41
    $region40: #{tpu_custom_call.1} parent=1 // pred_region
      _
    $region41: #{tpu_custom_call.1} parent=1 // pred_fallthru
      _
    %v37 = vld [vmem:[%s0] sm:$0xff]
    %v38 = vld [vmem:[%s0 + $0x8] sm:$0xff]
    %v39 = vld [vmem:[%s1] sm:$0x1]
    %41 = vset.pattern.permute.xlu0 0
    %42 = vperm.xlu0 %41, %v37
    %v43 = vpop.permute.xlu0 %42
    %46 = vset.pattern.permute.xlu0 0
    %47 = vperm.xlu0 %46, %v38
    %v48 = vpop.permute.xlu0 %47
    %v50 = vlaneseq
    %v51 = vshrl.u32 %v50, 7
    %v52 = vsub.s32 0, %v51
    %v53 = vrot.slane %v39, %v52
    %v54 = vmul.f32 %v43, %v53
    %v55 = vmul.f32 %v48, %v53
    %v56 = vld [vmem:[%s1 + $0x1] sm:$0x1]
    %57 = vset.pattern.permute.xlu0 1
    %58 = vperm.xlu0 %57, %v37
    %v59 = vpop.permute.xlu0 %58
    %61 = vset.pattern.permute.xlu0 1
    %62 = vperm.xlu0 %61, %v38
    %v63 = vpop.permute.xlu0 %62
    %v65 = vlaneseq
    %v66 = vshrl.u32 %v65, 7
    %v67 = vsub.s32 0, %v66
    %v68 = vrot.slane %v56, %v67
    %v69 = vmul.f32 %v59, %v68
    %v70 = vmul.f32 %v63, %v68
    %v71 = vadd.f32 %v54, %v69
    %v72 = vadd.f32 %v55, %v70
    %v73 = vld [vmem:[%s1 + $0x2] sm:$0x1]
    %74 = vset.pattern.permute.xlu0 2
    %75 = vperm.xlu0 %74, %v37
    %v76 = vpop.permute.xlu0 %75
    %78 = vset.pattern.permute.xlu0 2
    %79 = vperm.xlu0 %78, %v38
    %v80 = vpop.permute.xlu0 %79
    %v82 = vlaneseq
    %v83 = vshrl.u32 %v82, 7
    %v84 = vsub.s32 0, %v83
    %v85 = vrot.slane %v73, %v84
    %v86 = vmul.f32 %v76, %v85
    %v87 = vmul.f32 %v80, %v85
    %v88 = vadd.f32 %v71, %v86
    %v89 = vadd.f32 %v72, %v87
    %v90 = vld [vmem:[%s1 + $0x3] sm:$0x1]
    %91 = vset.pattern.permute.xlu0 3
    %92 = vperm.xlu0 %91, %v37
    %v93 = vpop.permute.xlu0 %92
    %95 = vset.pattern.permute.xlu0 3
    %96 = vperm.xlu0 %95, %v38
    %v97 = vpop.permute.xlu0 %96
    %v99 = vlaneseq
    %v100 = vshrl.u32 %v99, 7
    %v101 = vsub.s32 0, %v100
    %v102 = vrot.slane %v90, %v101
    %v103 = vmul.f32 %v93, %v102
    %v104 = vmul.f32 %v97, %v102
    %v105 = vadd.f32 %v88, %v103
    %v106 = vadd.f32 %v89, %v104
    %v107 = vld [vmem:[%s2] sm:$0x1]
    %v109 = vlaneseq
    %v110 = vshrl.u32 %v109, 7
    %v111 = vsub.s32 0, %v110
    %v112 = vrot.slane %v107, %v111
    %v114 = vadd.f32 %v105, %v112
    %v115 = vadd.f32 %v106, %v112
    %v116 = vpack.c.bf16 %v115, %v114
    %v117 = vmax.f32 %v114, 0.0
    %v118 = vmax.f32 %v115, 0.0
    %v119 = vpack.c.bf16 %v118, %v117
    %v120 = vld [vmem:[%s3] sm:$0xf]
    %v121 = vld [vmem:[%s3 + $0x4] sm:$0xf]
    %v122 = vld [vmem:[%s3 + $0x8] sm:$0xf]
    %v123 = vld [vmem:[%s3 + $0xc] sm:$0xf]
    %v124 = vld [vmem:[%s3 + $0x10] sm:$0xf]
    %v125 = vld [vmem:[%s3 + $0x14] sm:$0xf]
    %v126 = vld [vmem:[%s3 + $0x18] sm:$0xf]
    %v127 = vld [vmem:[%s3 + $0x1c] sm:$0xf]
    %v128 = vld [vmem:[%s4] sm:$0x1]
    %v130 = vlaneseq
    %v131 = vshrl.u32 %v130, 7
    %v132 = vsub.s32 0, %v131
    %v133 = vrot.slane %v128, %v132
    %v143 = vunpack.c.l.b16 %v120
    %v144 = vunpack.c.l.b16 %v121
    %v145 = vunpack.c.l.b16 %v122
    %v146 = vunpack.c.l.b16 %v123
    %v147 = vunpack.c.l.b16 %v124
    %v148 = vunpack.c.l.b16 %v125
    %v149 = vunpack.c.l.b16 %v126
    %v150 = vunpack.c.l.b16 %v127
    %v151 = vpack.c.b16 %v144, %v143
    %v152 = vpack.c.b16 %v146, %v145
    %v153 = vpack.c.b16 %v148, %v147
    %v154 = vpack.c.b16 %v150, %v149
    %vm159 = vcmask 523264
    %v161 = vsel %vm159, %v119, 0
    %163 = vmatprep.subr.bf16.mxu0 0
    %164 = vmatpush1.bf16.msra.mxu0 0
    %165 = vmatprep.subr.bf16.mxu0 0
    %166 = vmatpush1.bf16.msra.mxu0 0
    %167 = vmatprep.subr.bf16.mxu0 0
    %168 = vmatpush1.bf16.msra.mxu0 0
    %169 = vmatprep.subr.bf16.mxu0 0
    %170 = vmatpush1.bf16.msra.mxu0 0
    %171 = vmatprep.subr.bf16.mxu0 0
    %172 = vmatpush1.bf16.msra.mxu0 %v154
    %173 = vmatprep.subr.bf16.mxu0 0
    %174 = vmatpush1.bf16.msra.mxu0 %v153
    %175 = vmatprep.subr.bf16.mxu0 0
    %176 = vmatpush1.bf16.msra.mxu0 %v152
    %177 = vmatprep.subr.bf16.mxu0 0
    %178 = vmatpush1.bf16.msra.mxu0 %v151
    %179 = vmatprep.subr.bf16.mxu0 0
    %180 = vmatpush2.bf16.msra.mxu0 0
    %181 = vmatprep.subr.bf16.mxu0 0
    %182 = vmatpush2.bf16.msra.mxu0 0
    %183 = vmatprep.subr.bf16.mxu0 0
    %184 = vmatpush2.bf16.msra.mxu0 0
    %185 = vmatprep.subr.bf16.mxu0 0
    %186 = vmatpush2.bf16.msra.mxu0 0
    %187 = vmatprep.subr.bf16.mxu0 0
    %188 = vmatpush2.bf16.msra.mxu0 0
    %189 = vmatprep.subr.bf16.mxu0 0
    %190 = vmatpush2.bf16.msra.mxu0 0
    %191 = vmatprep.subr.bf16.mxu0 0
    %192 = vmatpush2.bf16.msra.mxu0 0
    %193 = vmatprep.subr.bf16.mxu0 0
    %194 = vmatpush2.bf16.msra.mxu0 0
    %195 = vmatprep.mubr.bf16.mxu0 0
    %196 = vmatmul.mubr.bf16.gmra.mxu0 %v161
    %v197 = vpop.f32.mrf.mxu0
    %v198 = vadd.f32 %v133, %v197
    %v199 = vpop.f32.mrf.mxu0
    %v200 = vpop.f32.mrf.mxu0
    %v201 = vadd.f32 %v133, %v200
    %v202 = vpop.f32.mrf.mxu0
    %203 = vdwg.mxu0
    %v204 = vmax.f32 %v198, 0.0
    %v205 = vmax.f32 %v201, 0.0
    %v206 = vpack.c.bf16 %v205, %v204
    %v207 = vld [vmem:[%s5] sm:$0xf]
    %v208 = vld [vmem:[%s5 + $0x4] sm:$0xf]
    %v209 = vld [vmem:[%s5 + $0x8] sm:$0xf]
    %v210 = vld [vmem:[%s5 + $0xc] sm:$0xf]
    %v215 = vunpack.c.l.b16 %v207
    %v216 = vunpack.c.l.b16 %v208
    %v217 = vunpack.c.l.b16 %v209
    %v218 = vunpack.c.l.b16 %v210
    %v219 = vpack.c.b16 %v216, %v215
    %v220 = vpack.c.b16 %v218, %v217
    %vm223 = vcmask 261120
    %v225 = vsel %vm223, %v206, 0
    %227 = vmatprep.subr.bf16.mxu0 0
    %228 = vmatpush1.bf16.msra.mxu0 0
    %229 = vmatprep.subr.bf16.mxu0 0
    %230 = vmatpush1.bf16.msra.mxu0 0
    %231 = vmatprep.subr.bf16.mxu0 0
    %232 = vmatpush1.bf16.msra.mxu0 0
    %233 = vmatprep.subr.bf16.mxu0 0
    %234 = vmatpush1.bf16.msra.mxu0 0
    %235 = vmatprep.subr.bf16.mxu0 0
    %236 = vmatpush1.bf16.msra.mxu0 0
    %237 = vmatprep.subr.bf16.mxu0 0
    %238 = vmatpush1.bf16.msra.mxu0 0
    %239 = vmatprep.subr.bf16.mxu0 0
    %240 = vmatpush1.bf16.msra.mxu0 %v220
    %241 = vmatprep.subr.bf16.mxu0 0
    %242 = vmatpush1.bf16.msra.mxu0 %v219
    %243 = vmatprep.subr.bf16.mxu0 0
    %244 = vmatpush2.bf16.msra.mxu0 0
    %245 = vmatprep.subr.bf16.mxu0 0
    %246 = vmatpush2.bf16.msra.mxu0 0
    %247 = vmatprep.subr.bf16.mxu0 0
    %248 = vmatpush2.bf16.msra.mxu0 0
    %249 = vmatprep.subr.bf16.mxu0 0
    %250 = vmatpush2.bf16.msra.mxu0 0
    %251 = vmatprep.subr.bf16.mxu0 0
    %252 = vmatpush2.bf16.msra.mxu0 0
    %253 = vmatprep.subr.bf16.mxu0 0
    %254 = vmatpush2.bf16.msra.mxu0 0
    %255 = vmatprep.subr.bf16.mxu0 0
    %256 = vmatpush2.bf16.msra.mxu0 0
    %257 = vmatprep.subr.bf16.mxu0 0
    %258 = vmatpush2.bf16.msra.mxu0 0
    %259 = vmatprep.mubr.bf16.mxu0 0
    %260 = vmatmul.mubr.bf16.gmra.mxu0 %v225
    %v261 = vpop.f32.mrf.mxu0
    %v262 = vadd.f32 0.0, %v261
    %v263 = vpop.f32.mrf.mxu0
    %v264 = vpop.f32.mrf.mxu0
    %v265 = vadd.f32 0.0, %v264
    %v266 = vpop.f32.mrf.mxu0
    %267 = vdwg.mxu0
    %v268 = vld [vmem:[%s7] sm:$0xf]
    %v269 = vld [vmem:[%s7 + $0x4] sm:$0xf]
    %v270 = vld [vmem:[%s7 + $0x8] sm:$0xf]
    %v271 = vld [vmem:[%s7 + $0xc] sm:$0xf]
    %v272 = vld [vmem:[%s7 + $0x10] sm:$0xf]
    %v273 = vld [vmem:[%s7 + $0x14] sm:$0xf]
    %v274 = vld [vmem:[%s7 + $0x18] sm:$0xf]
    %v275 = vld [vmem:[%s7 + $0x1c] sm:$0xf]
    %v284 = vunpack.c.l.b16 %v268
    %v285 = vunpack.c.l.b16 %v269
    %v286 = vunpack.c.l.b16 %v270
    %v287 = vunpack.c.l.b16 %v271
    %v288 = vunpack.c.l.b16 %v272
    %v289 = vunpack.c.l.b16 %v273
    %v290 = vunpack.c.l.b16 %v274
    %v291 = vunpack.c.l.b16 %v275
    %v292 = vpack.c.b16 %v285, %v284
    %v293 = vpack.c.b16 %v287, %v286
    %v294 = vpack.c.b16 %v289, %v288
    %v295 = vpack.c.b16 %v291, %v290
    %v301 = vsel %vm159, %v116, 0
    %303 = vmatprep.subr.bf16.mxu0 0
    %304 = vmatpush1.bf16.msra.mxu0 0
    %305 = vmatprep.subr.bf16.mxu0 0
    %306 = vmatpush1.bf16.msra.mxu0 0
    %307 = vmatprep.subr.bf16.mxu0 0
    %308 = vmatpush1.bf16.msra.mxu0 0
    %309 = vmatprep.subr.bf16.mxu0 0
    %310 = vmatpush1.bf16.msra.mxu0 0
    %311 = vmatprep.subr.bf16.mxu0 0
    %312 = vmatpush1.bf16.msra.mxu0 %v295
    %313 = vmatprep.subr.bf16.mxu0 0
    %314 = vmatpush1.bf16.msra.mxu0 %v294
    %315 = vmatprep.subr.bf16.mxu0 0
    %316 = vmatpush1.bf16.msra.mxu0 %v293
    %317 = vmatprep.subr.bf16.mxu0 0
    %318 = vmatpush1.bf16.msra.mxu0 %v292
    %319 = vmatprep.subr.bf16.mxu0 0
    %320 = vmatpush2.bf16.msra.mxu0 0
    %321 = vmatprep.subr.bf16.mxu0 0
    %322 = vmatpush2.bf16.msra.mxu0 0
    %323 = vmatprep.subr.bf16.mxu0 0
    %324 = vmatpush2.bf16.msra.mxu0 0
    %325 = vmatprep.subr.bf16.mxu0 0
    %326 = vmatpush2.bf16.msra.mxu0 0
    %327 = vmatprep.subr.bf16.mxu0 0
    %328 = vmatpush2.bf16.msra.mxu0 0
    %329 = vmatprep.subr.bf16.mxu0 0
    %330 = vmatpush2.bf16.msra.mxu0 0
    %331 = vmatprep.subr.bf16.mxu0 0
    %332 = vmatpush2.bf16.msra.mxu0 0
    %333 = vmatprep.subr.bf16.mxu0 0
    %334 = vmatpush2.bf16.msra.mxu0 0
    %335 = vmatprep.mubr.bf16.mxu0 0
    %336 = vmatmul.mubr.bf16.gmra.mxu0 %v301
    %v337 = vpop.f32.mrf.mxu0
    %v338 = vadd.f32 %v262, %v337
    %v339 = vpop.f32.mrf.mxu0
    %v340 = vpop.f32.mrf.mxu0
    %v341 = vadd.f32 %v265, %v340
    %v342 = vpop.f32.mrf.mxu0
    %343 = vdwg.mxu0
    %v344 = vld [vmem:[%s6] sm:$0x1]
    %v346 = vlaneseq
    %v347 = vshrl.u32 %v346, 7
    %v348 = vsub.s32 0, %v347
    %v349 = vrot.slane %v344, %v348
    %v351 = vadd.f32 %v338, %v349
    %v352 = vadd.f32 %v341, %v349
    %v353 = vsel %vm223, %v351, -inf
    %v354 = vrot.slane %v353, 4
    %v355 = vmax.f32 %v353, %v354
    %v356 = vrot.slane %v355, 2
    %v357 = vmax.f32 %v355, %v356
    %v358 = vrot.slane %v357, 1
    %v359 = vmax.f32 %v357, %v358
    %v360 = vsel %vm223, %v352, -inf
    %v361 = vrot.slane %v360, 4
    %v362 = vmax.f32 %v360, %v361
    %v363 = vrot.slane %v362, 2
    %v364 = vmax.f32 %v362, %v363
    %v365 = vrot.slane %v364, 1
    %v366 = vmax.f32 %v364, %v365
    %v367 = vpack.c.bf16 %v352, %v351
    %v368 = vmax.f32 %v351, 0.0
    %v369 = vmax.f32 %v352, 0.0
    %v370 = vpack.c.bf16 %v369, %v368
    %v371 = vpack.c.bf16 %v359, %v359
    %v372 = vpack.c.bf16 %v366, %v366
    %v373 = vmax.bf16 %v371, 0
    %v374 = vmax.bf16 %v372, 0
    %s375 = scalar_lea.vmem %s3, 32
    %v376 = vld [vmem:[%s375] sm:$0xf]
    %v377 = vld [vmem:[%s375 + $0x4] sm:$0xf]
    %v378 = vld [vmem:[%s375 + $0x8] sm:$0xf]
    %v379 = vld [vmem:[%s375 + $0xc] sm:$0xf]
    %v380 = vld [vmem:[%s375 + $0x10] sm:$0xf]
    %v381 = vld [vmem:[%s375 + $0x14] sm:$0xf]
    %v382 = vld [vmem:[%s375 + $0x18] sm:$0xf]
    %v383 = vld [vmem:[%s375 + $0x1c] sm:$0xf]
    %s384 = scalar_lea.vmem %s7, 32
    %v385 = vld [vmem:[%s384] sm:$0xf]
    %v386 = vld [vmem:[%s384 + $0x4] sm:$0xf]
    %v387 = vld [vmem:[%s384 + $0x8] sm:$0xf]
    %v388 = vld [vmem:[%s384 + $0xc] sm:$0xf]
    %v389 = vld [vmem:[%s384 + $0x10] sm:$0xf]
    %v390 = vld [vmem:[%s384 + $0x14] sm:$0xf]
    %v391 = vld [vmem:[%s384 + $0x18] sm:$0xf]
    %v392 = vld [vmem:[%s384 + $0x1c] sm:$0xf]
    %s393 = scalar_lea.vmem %s4, 1
    %v394 = vld [vmem:[%s393] sm:$0x1]
    %v396 = vlaneseq
    %v397 = vshrl.u32 %v396, 7
    %v398 = vsub.s32 0, %v397
    %v399 = vrot.slane %v394, %v398
    %v403 = vunpack.c.l.b16 %v373
    %v404 = vunpack.c.l.b16 %v374
    %vm405 = vcmask 1041409
    %v406 = vsel %vm405, %v404, %v403
    %v407 = vpack.c.b16 %v406, %v406
    %v412 = vunpack.c.l.b16 %v380
    %v413 = vunpack.c.l.b16 %v381
    %v414 = vunpack.c.l.b16 %v382
    %v415 = vunpack.c.l.b16 %v383
    %v416 = vpack.c.b16 %v413, %v412
    %v417 = vpack.c.b16 %v415, %v414
    %v421 = vsel %vm223, %v407, 0
    %423 = vmatprep.subr.bf16.mxu0 0
    %424 = vmatpush1.bf16.msra.mxu0 0
    %425 = vmatprep.subr.bf16.mxu0 0
    %426 = vmatpush1.bf16.msra.mxu0 0
    %427 = vmatprep.subr.bf16.mxu0 0
    %428 = vmatpush1.bf16.msra.mxu0 0
    %429 = vmatprep.subr.bf16.mxu0 0
    %430 = vmatpush1.bf16.msra.mxu0 0
    %431 = vmatprep.subr.bf16.mxu0 0
    %432 = vmatpush1.bf16.msra.mxu0 0
    %433 = vmatprep.subr.bf16.mxu0 0
    %434 = vmatpush1.bf16.msra.mxu0 0
    %435 = vmatprep.subr.bf16.mxu0 0
    %436 = vmatpush1.bf16.msra.mxu0 %v417
    %437 = vmatprep.subr.bf16.mxu0 0
    %438 = vmatpush1.bf16.msra.mxu0 %v416
    %439 = vmatprep.subr.bf16.mxu0 0
    %440 = vmatpush2.bf16.msra.mxu0 0
    %441 = vmatprep.subr.bf16.mxu0 0
    %442 = vmatpush2.bf16.msra.mxu0 0
    %443 = vmatprep.subr.bf16.mxu0 0
    %444 = vmatpush2.bf16.msra.mxu0 0
    %445 = vmatprep.subr.bf16.mxu0 0
    %446 = vmatpush2.bf16.msra.mxu0 0
    %447 = vmatprep.subr.bf16.mxu0 0
    %448 = vmatpush2.bf16.msra.mxu0 0
    %449 = vmatprep.subr.bf16.mxu0 0
    %450 = vmatpush2.bf16.msra.mxu0 0
    %451 = vmatprep.subr.bf16.mxu0 0
    %452 = vmatpush2.bf16.msra.mxu0 0
    %453 = vmatprep.subr.bf16.mxu0 0
    %454 = vmatpush2.bf16.msra.mxu0 0
    %455 = vmatprep.mubr.bf16.mxu0 0
    %456 = vmatmul.mubr.bf16.gmra.mxu0 %v421
    %v457 = vpop.f32.mrf.mxu0
    %v458 = vadd.f32 %v399, %v457
    %v459 = vpop.f32.mrf.mxu0
    %v460 = vpop.f32.mrf.mxu0
    %v461 = vpop.f32.mrf.mxu0
    %462 = vdwg.mxu0
    %v467 = vunpack.c.l.b16 %v376
    %v468 = vunpack.c.l.b16 %v377
    %v469 = vunpack.c.l.b16 %v378
    %v470 = vunpack.c.l.b16 %v379
    %v471 = vpack.c.b16 %v468, %v467
    %v472 = vpack.c.b16 %v470, %v469
    %v476 = vsel %vm223, %v370, 0
    %478 = vmatprep.subr.bf16.mxu0 0
    %479 = vmatpush1.bf16.msra.mxu0 0
    %480 = vmatprep.subr.bf16.mxu0 0
    %481 = vmatpush1.bf16.msra.mxu0 0
    %482 = vmatprep.subr.bf16.mxu0 0
    %483 = vmatpush1.bf16.msra.mxu0 0
    %484 = vmatprep.subr.bf16.mxu0 0
    %485 = vmatpush1.bf16.msra.mxu0 0
    %486 = vmatprep.subr.bf16.mxu0 0
    %487 = vmatpush1.bf16.msra.mxu0 0
    %488 = vmatprep.subr.bf16.mxu0 0
    %489 = vmatpush1.bf16.msra.mxu0 0
    %490 = vmatprep.subr.bf16.mxu0 0
    %491 = vmatpush1.bf16.msra.mxu0 %v472
    %492 = vmatprep.subr.bf16.mxu0 0
    %493 = vmatpush1.bf16.msra.mxu0 %v471
    %494 = vmatprep.subr.bf16.mxu0 0
    %495 = vmatpush2.bf16.msra.mxu0 0
    %496 = vmatprep.subr.bf16.mxu0 0
    %497 = vmatpush2.bf16.msra.mxu0 0
    %498 = vmatprep.subr.bf16.mxu0 0
    %499 = vmatpush2.bf16.msra.mxu0 0
    %500 = vmatprep.subr.bf16.mxu0 0
    %501 = vmatpush2.bf16.msra.mxu0 0
    %502 = vmatprep.subr.bf16.mxu0 0
    %503 = vmatpush2.bf16.msra.mxu0 0
    %504 = vmatprep.subr.bf16.mxu0 0
    %505 = vmatpush2.bf16.msra.mxu0 0
    %506 = vmatprep.subr.bf16.mxu0 0
    %507 = vmatpush2.bf16.msra.mxu0 0
    %508 = vmatprep.subr.bf16.mxu0 0
    %509 = vmatpush2.bf16.msra.mxu0 0
    %510 = vmatprep.mubr.bf16.mxu0 0
    %511 = vmatmul.mubr.bf16.gmra.mxu0 %v476
    %v512 = vpop.f32.mrf.mxu0
    %v513 = vadd.f32 0.0, %v512
    %v514 = vpop.f32.mrf.mxu0
    %v515 = vpop.f32.mrf.mxu0
    %v516 = vadd.f32 0.0, %v515
    %v517 = vpop.f32.mrf.mxu0
    %518 = vdwg.mxu0
    %v521 = vunpack.c.l.s4 1966171168
    %v522 = vunpack.c.0.s8 %v521
    %v523 = vlaneseq
    %v524 = vshrl.u32 %v523, 7
    %v525 = vsub.s32 %v522, %v524
    %v526 = vrot.slane %v458, %v525
    %v527 = vcombine.high %v526, %v526
    %v529 = vunpack.c.l.s4 1966171168
    %v530 = vunpack.c.0.s8 %v529
    %v531 = vlaneseq
    %v532 = vshrl.u32 %v531, 7
    %v533 = vsub.s32 %v530, %v532
    %v534 = vrot.slane %v526, %v533
    %v536 = vunpack.c.l.s4 1966171168
    %v537 = vunpack.c.0.s8 %v536
    %v538 = vlaneseq
    %v539 = vshrl.u32 %v538, 7
    %v540 = vsub.s32 %v537, %v539
    %v541 = vrot.slane %v527, %v540
    %v542 = vlaneseq
    %v543 = vshrl.u32 %v542, 7
    %v544 = vsub.s32 0, %v543
    %v545 = vrot.slane %v534, %v544
    %v546 = vlaneseq
    %v547 = vshrl.u32 %v546, 7
    %v548 = vsub.s32 0, %v547
    %v549 = vrot.slane %v541, %v548
    %v552 = vadd.f32 %v513, %v545
    %v553 = vadd.f32 %v516, %v549
    %v554 = vmax.f32 %v552, 0.0
    %v555 = vmax.f32 %v553, 0.0
    %v556 = vpack.c.bf16 %v554, %v554
    %v557 = vpack.c.bf16 %v555, %v555
    %s558 = scalar_lea.vmem %s5, 16
    %v559 = vld [vmem:[%s558] sm:$0xf]
    %v560 = vld [vmem:[%s558 + $0x4] sm:$0xf]
    %v561 = vld [vmem:[%s558 + $0x8] sm:$0xf]
    %v562 = vld [vmem:[%s558 + $0xc] sm:$0xf]
    %v565 = vunpack.c.l.b16 %v556
    %v566 = vunpack.c.l.b16 %v557
    %v567 = vpack.c.b16 %v566, %v565
    %v572 = vunpack.c.l.b16 %v559
    %v573 = vunpack.c.l.b16 %v560
    %v574 = vunpack.c.l.b16 %v561
    %v575 = vunpack.c.l.b16 %v562
    %v576 = vpack.c.b16 %v573, %v572
    %v577 = vpack.c.b16 %v575, %v574
    %v581 = vsel %vm223, %v567, 0
    %583 = vmatprep.subr.bf16.mxu0 0
    %584 = vmatpush1.bf16.msra.mxu0 0
    %585 = vmatprep.subr.bf16.mxu0 0
    %586 = vmatpush1.bf16.msra.mxu0 0
    %587 = vmatprep.subr.bf16.mxu0 0
    %588 = vmatpush1.bf16.msra.mxu0 0
    %589 = vmatprep.subr.bf16.mxu0 0
    %590 = vmatpush1.bf16.msra.mxu0 0
    %591 = vmatprep.subr.bf16.mxu0 0
    %592 = vmatpush1.bf16.msra.mxu0 0
    %593 = vmatprep.subr.bf16.mxu0 0
    %594 = vmatpush1.bf16.msra.mxu0 0
    %595 = vmatprep.subr.bf16.mxu0 0
    %596 = vmatpush1.bf16.msra.mxu0 %v577
    %597 = vmatprep.subr.bf16.mxu0 0
    %598 = vmatpush1.bf16.msra.mxu0 %v576
    %599 = vmatprep.subr.bf16.mxu0 0
    %600 = vmatpush2.bf16.msra.mxu0 0
    %601 = vmatprep.subr.bf16.mxu0 0
    %602 = vmatpush2.bf16.msra.mxu0 0
    %603 = vmatprep.subr.bf16.mxu0 0
    %604 = vmatpush2.bf16.msra.mxu0 0
    %605 = vmatprep.subr.bf16.mxu0 0
    %606 = vmatpush2.bf16.msra.mxu0 0
    %607 = vmatprep.subr.bf16.mxu0 0
    %608 = vmatpush2.bf16.msra.mxu0 0
    %609 = vmatprep.subr.bf16.mxu0 0
    %610 = vmatpush2.bf16.msra.mxu0 0
    %611 = vmatprep.subr.bf16.mxu0 0
    %612 = vmatpush2.bf16.msra.mxu0 0
    %613 = vmatprep.subr.bf16.mxu0 0
    %614 = vmatpush2.bf16.msra.mxu0 0
    %615 = vmatprep.mubr.bf16.mxu0 0
    %616 = vmatmul.mubr.bf16.gmra.mxu0 %v581
    %v617 = vpop.f32.mrf.mxu0
    %v618 = vadd.f32 0.0, %v617
    %v619 = vpop.f32.mrf.mxu0
    %v620 = vpop.f32.mrf.mxu0
    %v621 = vadd.f32 0.0, %v620
    %v622 = vpop.f32.mrf.mxu0
    %623 = vdwg.mxu0
    %s624 = scalar_lea.vmem %s6, 1
    %v625 = vld [vmem:[%s624] sm:$0x1]
    %v627 = vlaneseq
    %v628 = vshrl.u32 %v627, 7
    %v629 = vsub.s32 0, %v628
    %v630 = vrot.slane %v625, %v629
    %v634 = vunpack.c.l.b16 %v371
    %v635 = vunpack.c.l.b16 %v372
    %v636 = vsel %vm405, %v635, %v634
    %v637 = vpack.c.b16 %v636, %v636
    %v642 = vunpack.c.l.b16 %v389
    %v643 = vunpack.c.l.b16 %v390
    %v644 = vunpack.c.l.b16 %v391
    %v645 = vunpack.c.l.b16 %v392
    %v646 = vpack.c.b16 %v643, %v642
    %v647 = vpack.c.b16 %v645, %v644
    %v651 = vsel %vm223, %v637, 0
    %653 = vmatprep.subr.bf16.mxu0 0
    %654 = vmatpush1.bf16.msra.mxu0 0
    %655 = vmatprep.subr.bf16.mxu0 0
    %656 = vmatpush1.bf16.msra.mxu0 0
    %657 = vmatprep.subr.bf16.mxu0 0
    %658 = vmatpush1.bf16.msra.mxu0 0
    %659 = vmatprep.subr.bf16.mxu0 0
    %660 = vmatpush1.bf16.msra.mxu0 0
    %661 = vmatprep.subr.bf16.mxu0 0
    %662 = vmatpush1.bf16.msra.mxu0 0
    %663 = vmatprep.subr.bf16.mxu0 0
    %664 = vmatpush1.bf16.msra.mxu0 0
    %665 = vmatprep.subr.bf16.mxu0 0
    %666 = vmatpush1.bf16.msra.mxu0 %v647
    %667 = vmatprep.subr.bf16.mxu0 0
    %668 = vmatpush1.bf16.msra.mxu0 %v646
    %669 = vmatprep.subr.bf16.mxu0 0
    %670 = vmatpush2.bf16.msra.mxu0 0
    %671 = vmatprep.subr.bf16.mxu0 0
    %672 = vmatpush2.bf16.msra.mxu0 0
    %673 = vmatprep.subr.bf16.mxu0 0
    %674 = vmatpush2.bf16.msra.mxu0 0
    %675 = vmatprep.subr.bf16.mxu0 0
    %676 = vmatpush2.bf16.msra.mxu0 0
    %677 = vmatprep.subr.bf16.mxu0 0
    %678 = vmatpush2.bf16.msra.mxu0 0
    %679 = vmatprep.subr.bf16.mxu0 0
    %680 = vmatpush2.bf16.msra.mxu0 0
    %681 = vmatprep.subr.bf16.mxu0 0
    %682 = vmatpush2.bf16.msra.mxu0 0
    %683 = vmatprep.subr.bf16.mxu0 0
    %684 = vmatpush2.bf16.msra.mxu0 0
    %685 = vmatprep.mubr.bf16.mxu0 0
    %686 = vmatmul.mubr.bf16.gmra.mxu0 %v651
    %v687 = vpop.f32.mrf.mxu0
    %v688 = vadd.f32 %v630, %v687
    %v689 = vpop.f32.mrf.mxu0
    %v690 = vpop.f32.mrf.mxu0
    %v691 = vpop.f32.mrf.mxu0
    %692 = vdwg.mxu0
    %v697 = vunpack.c.l.b16 %v385
    %v698 = vunpack.c.l.b16 %v386
    %v699 = vunpack.c.l.b16 %v387
    %v700 = vunpack.c.l.b16 %v388
    %v701 = vpack.c.b16 %v698, %v697
    %v702 = vpack.c.b16 %v700, %v699
    %v706 = vsel %vm223, %v367, 0
    %708 = vmatprep.subr.bf16.mxu0 0
    %709 = vmatpush1.bf16.msra.mxu0 0
    %710 = vmatprep.subr.bf16.mxu0 0
    %711 = vmatpush1.bf16.msra.mxu0 0
    %712 = vmatprep.subr.bf16.mxu0 0
    %713 = vmatpush1.bf16.msra.mxu0 0
    %714 = vmatprep.subr.bf16.mxu0 0
    %715 = vmatpush1.bf16.msra.mxu0 0
    %716 = vmatprep.subr.bf16.mxu0 0
    %717 = vmatpush1.bf16.msra.mxu0 0
    %718 = vmatprep.subr.bf16.mxu0 0
    %719 = vmatpush1.bf16.msra.mxu0 0
    %720 = vmatprep.subr.bf16.mxu0 0
    %721 = vmatpush1.bf16.msra.mxu0 %v702
    %722 = vmatprep.subr.bf16.mxu0 0
    %723 = vmatpush1.bf16.msra.mxu0 %v701
    %724 = vmatprep.subr.bf16.mxu0 0
    %725 = vmatpush2.bf16.msra.mxu0 0
    %726 = vmatprep.subr.bf16.mxu0 0
    %727 = vmatpush2.bf16.msra.mxu0 0
    %728 = vmatprep.subr.bf16.mxu0 0
    %729 = vmatpush2.bf16.msra.mxu0 0
    %730 = vmatprep.subr.bf16.mxu0 0
    %731 = vmatpush2.bf16.msra.mxu0 0
    %732 = vmatprep.subr.bf16.mxu0 0
    %733 = vmatpush2.bf16.msra.mxu0 0
    %734 = vmatprep.subr.bf16.mxu0 0
    %735 = vmatpush2.bf16.msra.mxu0 0
    %736 = vmatprep.subr.bf16.mxu0 0
    %737 = vmatpush2.bf16.msra.mxu0 0
    %738 = vmatprep.subr.bf16.mxu0 0
    %739 = vmatpush2.bf16.msra.mxu0 0
    %740 = vmatprep.mubr.bf16.mxu0 0
    %741 = vmatmul.mubr.bf16.gmra.mxu0 %v706
    %v742 = vpop.f32.mrf.mxu0
    %v743 = vadd.f32 %v618, %v742
    %v744 = vpop.f32.mrf.mxu0
    %v745 = vpop.f32.mrf.mxu0
    %v746 = vadd.f32 %v621, %v745
    %v747 = vpop.f32.mrf.mxu0
    %748 = vdwg.mxu0
    %v751 = vunpack.c.l.s4 1966171168
    %v752 = vunpack.c.0.s8 %v751
    %v753 = vlaneseq
    %v754 = vshrl.u32 %v753, 7
    %v755 = vsub.s32 %v752, %v754
    %v756 = vrot.slane %v688, %v755
    %v757 = vcombine.high %v756, %v756
    %v759 = vunpack.c.l.s4 1966171168
    %v760 = vunpack.c.0.s8 %v759
    %v761 = vlaneseq
    %v762 = vshrl.u32 %v761, 7
    %v763 = vsub.s32 %v760, %v762
    %v764 = vrot.slane %v756, %v763
    %v766 = vunpack.c.l.s4 1966171168
    %v767 = vunpack.c.0.s8 %v766
    %v768 = vlaneseq
    %v769 = vshrl.u32 %v768, 7
    %v770 = vsub.s32 %v767, %v769
    %v771 = vrot.slane %v757, %v770
    %v772 = vlaneseq
    %v773 = vshrl.u32 %v772, 7
    %v774 = vsub.s32 0, %v773
    %v775 = vrot.slane %v764, %v774
    %v776 = vlaneseq
    %v777 = vshrl.u32 %v776, 7
    %v778 = vsub.s32 0, %v777
    %v779 = vrot.slane %v771, %v778
    %v782 = vadd.f32 %v743, %v775
    %v783 = vadd.f32 %v746, %v779
    %v784 = vsel %vm223, %v782, -inf
    %v785 = vrot.slane %v784, 4
    %v786 = vmax.f32 %v784, %v785
    %v787 = vrot.slane %v786, 2
    %v788 = vmax.f32 %v786, %v787
    %v789 = vrot.slane %v788, 1
    %v790 = vmax.f32 %v788, %v789
    %v791 = vsel %vm223, %v783, -inf
    %v792 = vrot.slane %v791, 4
    %v793 = vmax.f32 %v791, %v792
    %v794 = vrot.slane %v793, 2
    %v795 = vmax.f32 %v793, %v794
    %v796 = vrot.slane %v795, 1
    %v797 = vmax.f32 %v795, %v796
    %v798 = vpack.c.bf16 %v783, %v782
    %v799 = vmax.f32 %v782, 0.0
    %v800 = vmax.f32 %v783, 0.0
    %v801 = vpack.c.bf16 %v800, %v799
    %v802 = vpack.c.bf16 %v790, %v790
    %v803 = vpack.c.bf16 %v797, %v797
    %v804 = vmax.bf16 %v802, 0
    %v805 = vmax.bf16 %v803, 0
    %s806 = scalar_lea.vmem %s3, 64
    %v807 = vld [vmem:[%s806] sm:$0xf]
    %v808 = vld [vmem:[%s806 + $0x4] sm:$0xf]
    %v809 = vld [vmem:[%s806 + $0x8] sm:$0xf]
    %v810 = vld [vmem:[%s806 + $0xc] sm:$0xf]
    %v811 = vld [vmem:[%s806 + $0x10] sm:$0xf]
    %v812 = vld [vmem:[%s806 + $0x14] sm:$0xf]
    %v813 = vld [vmem:[%s806 + $0x18] sm:$0xf]
    %v814 = vld [vmem:[%s806 + $0x1c] sm:$0xf]
    %s815 = scalar_lea.vmem %s7, 64
    %v816 = vld [vmem:[%s815] sm:$0xf]
    %v817 = vld [vmem:[%s815 + $0x4] sm:$0xf]
    %v818 = vld [vmem:[%s815 + $0x8] sm:$0xf]
    %v819 = vld [vmem:[%s815 + $0xc] sm:$0xf]
    %v820 = vld [vmem:[%s815 + $0x10] sm:$0xf]
    %v821 = vld [vmem:[%s815 + $0x14] sm:$0xf]
    %v822 = vld [vmem:[%s815 + $0x18] sm:$0xf]
    %v823 = vld [vmem:[%s815 + $0x1c] sm:$0xf]
    %s824 = scalar_lea.vmem %s4, 2
    %v825 = vld [vmem:[%s824] sm:$0x1]
    %v827 = vlaneseq
    %v828 = vshrl.u32 %v827, 7
    %v829 = vsub.s32 0, %v828
    %v830 = vrot.slane %v825, %v829
    %v834 = vunpack.c.l.b16 %v804
    %v835 = vunpack.c.l.b16 %v805
    %v836 = vsel %vm405, %v835, %v834
    %v837 = vpack.c.b16 %v836, %v836
    %v842 = vunpack.c.l.b16 %v811
    %v843 = vunpack.c.l.b16 %v812
    %v844 = vunpack.c.l.b16 %v813
    %v845 = vunpack.c.l.b16 %v814
    %v846 = vpack.c.b16 %v843, %v842
    %v847 = vpack.c.b16 %v845, %v844
    %v851 = vsel %vm223, %v837, 0
    %853 = vmatprep.subr.bf16.mxu0 0
    %854 = vmatpush1.bf16.msra.mxu0 0
    %855 = vmatprep.subr.bf16.mxu0 0
    %856 = vmatpush1.bf16.msra.mxu0 0
    %857 = vmatprep.subr.bf16.mxu0 0
    %858 = vmatpush1.bf16.msra.mxu0 0
    %859 = vmatprep.subr.bf16.mxu0 0
    %860 = vmatpush1.bf16.msra.mxu0 0
    %861 = vmatprep.subr.bf16.mxu0 0
    %862 = vmatpush1.bf16.msra.mxu0 0
    %863 = vmatprep.subr.bf16.mxu0 0
    %864 = vmatpush1.bf16.msra.mxu0 0
    %865 = vmatprep.subr.bf16.mxu0 0
    %866 = vmatpush1.bf16.msra.mxu0 %v847
    %867 = vmatprep.subr.bf16.mxu0 0
    %868 = vmatpush1.bf16.msra.mxu0 %v846
    %869 = vmatprep.subr.bf16.mxu0 0
    %870 = vmatpush2.bf16.msra.mxu0 0
    %871 = vmatprep.subr.bf16.mxu0 0
    %872 = vmatpush2.bf16.msra.mxu0 0
    %873 = vmatprep.subr.bf16.mxu0 0
    %874 = vmatpush2.bf16.msra.mxu0 0
    %875 = vmatprep.subr.bf16.mxu0 0
    %876 = vmatpush2.bf16.msra.mxu0 0
    %877 = vmatprep.subr.bf16.mxu0 0
    %878 = vmatpush2.bf16.msra.mxu0 0
    %879 = vmatprep.subr.bf16.mxu0 0
    %880 = vmatpush2.bf16.msra.mxu0 0
    %881 = vmatprep.subr.bf16.mxu0 0
    %882 = vmatpush2.bf16.msra.mxu0 0
    %883 = vmatprep.subr.bf16.mxu0 0
    %884 = vmatpush2.bf16.msra.mxu0 0
    %885 = vmatprep.mubr.bf16.mxu0 0
    %886 = vmatmul.mubr.bf16.gmra.mxu0 %v851
    %v887 = vpop.f32.mrf.mxu0
    %v888 = vadd.f32 %v830, %v887
    %v889 = vpop.f32.mrf.mxu0
    %v890 = vpop.f32.mrf.mxu0
    %v891 = vpop.f32.mrf.mxu0
    %892 = vdwg.mxu0
    %v897 = vunpack.c.l.b16 %v807
    %v898 = vunpack.c.l.b16 %v808
    %v899 = vunpack.c.l.b16 %v809
    %v900 = vunpack.c.l.b16 %v810
    %v901 = vpack.c.b16 %v898, %v897
    %v902 = vpack.c.b16 %v900, %v899
    %v906 = vsel %vm223, %v801, 0
    %908 = vmatprep.subr.bf16.mxu0 0
    %909 = vmatpush1.bf16.msra.mxu0 0
    %910 = vmatprep.subr.bf16.mxu0 0
    %911 = vmatpush1.bf16.msra.mxu0 0
    %912 = vmatprep.subr.bf16.mxu0 0
    %913 = vmatpush1.bf16.msra.mxu0 0
    %914 = vmatprep.subr.bf16.mxu0 0
    %915 = vmatpush1.bf16.msra.mxu0 0
    %916 = vmatprep.subr.bf16.mxu0 0
    %917 = vmatpush1.bf16.msra.mxu0 0
    %918 = vmatprep.subr.bf16.mxu0 0
    %919 = vmatpush1.bf16.msra.mxu0 0
    %920 = vmatprep.subr.bf16.mxu0 0
    %921 = vmatpush1.bf16.msra.mxu0 %v902
    %922 = vmatprep.subr.bf16.mxu0 0
    %923 = vmatpush1.bf16.msra.mxu0 %v901
    %924 = vmatprep.subr.bf16.mxu0 0
    %925 = vmatpush2.bf16.msra.mxu0 0
    %926 = vmatprep.subr.bf16.mxu0 0
    %927 = vmatpush2.bf16.msra.mxu0 0
    %928 = vmatprep.subr.bf16.mxu0 0
    %929 = vmatpush2.bf16.msra.mxu0 0
    %930 = vmatprep.subr.bf16.mxu0 0
    %931 = vmatpush2.bf16.msra.mxu0 0
    %932 = vmatprep.subr.bf16.mxu0 0
    %933 = vmatpush2.bf16.msra.mxu0 0
    %934 = vmatprep.subr.bf16.mxu0 0
    %935 = vmatpush2.bf16.msra.mxu0 0
    %936 = vmatprep.subr.bf16.mxu0 0
    %937 = vmatpush2.bf16.msra.mxu0 0
    %938 = vmatprep.subr.bf16.mxu0 0
    %939 = vmatpush2.bf16.msra.mxu0 0
    %940 = vmatprep.mubr.bf16.mxu0 0
    %941 = vmatmul.mubr.bf16.gmra.mxu0 %v906
    %v942 = vpop.f32.mrf.mxu0
    %v943 = vadd.f32 0.0, %v942
    %v944 = vpop.f32.mrf.mxu0
    %v945 = vpop.f32.mrf.mxu0
    %v946 = vadd.f32 0.0, %v945
    %v947 = vpop.f32.mrf.mxu0
    %948 = vdwg.mxu0
    %v951 = vunpack.c.l.s4 1966171168
    %v952 = vunpack.c.0.s8 %v951
    %v953 = vlaneseq
    %v954 = vshrl.u32 %v953, 7
    %v955 = vsub.s32 %v952, %v954
    %v956 = vrot.slane %v888, %v955
    %v957 = vcombine.high %v956, %v956
    %v959 = vunpack.c.l.s4 1966171168
    %v960 = vunpack.c.0.s8 %v959
    %v961 = vlaneseq
    %v962 = vshrl.u32 %v961, 7
    %v963 = vsub.s32 %v960, %v962
    %v964 = vrot.slane %v956, %v963
    %v966 = vunpack.c.l.s4 1966171168
    %v967 = vunpack.c.0.s8 %v966
    %v968 = vlaneseq
    %v969 = vshrl.u32 %v968, 7
    %v970 = vsub.s32 %v967, %v969
    %v971 = vrot.slane %v957, %v970
    %v972 = vlaneseq
    %v973 = vshrl.u32 %v972, 7
    %v974 = vsub.s32 0, %v973
    %v975 = vrot.slane %v964, %v974
    %v976 = vlaneseq
    %v977 = vshrl.u32 %v976, 7
    %v978 = vsub.s32 0, %v977
    %v979 = vrot.slane %v971, %v978
    %v982 = vadd.f32 %v943, %v975
    %v983 = vadd.f32 %v946, %v979
    %v984 = vmax.f32 %v982, 0.0
    %v985 = vmax.f32 %v983, 0.0
    %v986 = vpack.c.bf16 %v984, %v984
    %v987 = vpack.c.bf16 %v985, %v985
    %s988 = scalar_lea.vmem %s5, 32
    %v989 = vld [vmem:[%s988] sm:$0xf]
    %v990 = vld [vmem:[%s988 + $0x4] sm:$0xf]
    %v991 = vld [vmem:[%s988 + $0x8] sm:$0xf]
    %v992 = vld [vmem:[%s988 + $0xc] sm:$0xf]
    %v995 = vunpack.c.l.b16 %v986
    %v996 = vunpack.c.l.b16 %v987
    %v997 = vpack.c.b16 %v996, %v995
    %v1002 = vunpack.c.l.b16 %v989
    %v1003 = vunpack.c.l.b16 %v990
    %v1004 = vunpack.c.l.b16 %v991
    %v1005 = vunpack.c.l.b16 %v992
    %v1006 = vpack.c.b16 %v1003, %v1002
    %v1007 = vpack.c.b16 %v1005, %v1004
    %v1011 = vsel %vm223, %v997, 0
    %1013 = vmatprep.subr.bf16.mxu0 0
    %1014 = vmatpush1.bf16.msra.mxu0 0
    %1015 = vmatprep.subr.bf16.mxu0 0
    %1016 = vmatpush1.bf16.msra.mxu0 0
    %1017 = vmatprep.subr.bf16.mxu0 0
    %1018 = vmatpush1.bf16.msra.mxu0 0
    %1019 = vmatprep.subr.bf16.mxu0 0
    %1020 = vmatpush1.bf16.msra.mxu0 0
    %1021 = vmatprep.subr.bf16.mxu0 0
    %1022 = vmatpush1.bf16.msra.mxu0 0
    %1023 = vmatprep.subr.bf16.mxu0 0
    %1024 = vmatpush1.bf16.msra.mxu0 0
    %1025 = vmatprep.subr.bf16.mxu0 0
    %1026 = vmatpush1.bf16.msra.mxu0 %v1007
    %1027 = vmatprep.subr.bf16.mxu0 0
    %1028 = vmatpush1.bf16.msra.mxu0 %v1006
    %1029 = vmatprep.subr.bf16.mxu0 0
    %1030 = vmatpush2.bf16.msra.mxu0 0
    %1031 = vmatprep.subr.bf16.mxu0 0
    %1032 = vmatpush2.bf16.msra.mxu0 0
    %1033 = vmatprep.subr.bf16.mxu0 0
    %1034 = vmatpush2.bf16.msra.mxu0 0
    %1035 = vmatprep.subr.bf16.mxu0 0
    %1036 = vmatpush2.bf16.msra.mxu0 0
    %1037 = vmatprep.subr.bf16.mxu0 0
    %1038 = vmatpush2.bf16.msra.mxu0 0
    %1039 = vmatprep.subr.bf16.mxu0 0
    %1040 = vmatpush2.bf16.msra.mxu0 0
    %1041 = vmatprep.subr.bf16.mxu0 0
    %1042 = vmatpush2.bf16.msra.mxu0 0
    %1043 = vmatprep.subr.bf16.mxu0 0
    %1044 = vmatpush2.bf16.msra.mxu0 0
    %1045 = vmatprep.mubr.bf16.mxu0 0
    %1046 = vmatmul.mubr.bf16.gmra.mxu0 %v1011
    %v1047 = vpop.f32.mrf.mxu0
    %v1048 = vadd.f32 0.0, %v1047
    %v1049 = vpop.f32.mrf.mxu0
    %v1050 = vpop.f32.mrf.mxu0
    %v1051 = vadd.f32 0.0, %v1050
    %v1052 = vpop.f32.mrf.mxu0
    %1053 = vdwg.mxu0
    %s1054 = scalar_lea.vmem %s6, 2
    %v1055 = vld [vmem:[%s1054] sm:$0x1]
    %v1057 = vlaneseq
    %v1058 = vshrl.u32 %v1057, 7
    %v1059 = vsub.s32 0, %v1058
    %v1060 = vrot.slane %v1055, %v1059
    %v1064 = vunpack.c.l.b16 %v802
    %v1065 = vunpack.c.l.b16 %v803
    %v1066 = vsel %vm405, %v1065, %v1064
    %v1067 = vpack.c.b16 %v1066, %v1066
    %v1072 = vunpack.c.l.b16 %v820
    %v1073 = vunpack.c.l.b16 %v821
    %v1074 = vunpack.c.l.b16 %v822
    %v1075 = vunpack.c.l.b16 %v823
    %v1076 = vpack.c.b16 %v1073, %v1072
    %v1077 = vpack.c.b16 %v1075, %v1074
    %v1081 = vsel %vm223, %v1067, 0
    %1083 = vmatprep.subr.bf16.mxu0 0
    %1084 = vmatpush1.bf16.msra.mxu0 0
    %1085 = vmatprep.subr.bf16.mxu0 0
    %1086 = vmatpush1.bf16.msra.mxu0 0
    %1087 = vmatprep.subr.bf16.mxu0 0
    %1088 = vmatpush1.bf16.msra.mxu0 0
    %1089 = vmatprep.subr.bf16.mxu0 0
    %1090 = vmatpush1.bf16.msra.mxu0 0
    %1091 = vmatprep.subr.bf16.mxu0 0
    %1092 = vmatpush1.bf16.msra.mxu0 0
    %1093 = vmatprep.subr.bf16.mxu0 0
    %1094 = vmatpush1.bf16.msra.mxu0 0
    %1095 = vmatprep.subr.bf16.mxu0 0
    %1096 = vmatpush1.bf16.msra.mxu0 %v1077
    %1097 = vmatprep.subr.bf16.mxu0 0
    %1098 = vmatpush1.bf16.msra.mxu0 %v1076
    %1099 = vmatprep.subr.bf16.mxu0 0
    %1100 = vmatpush2.bf16.msra.mxu0 0
    %1101 = vmatprep.subr.bf16.mxu0 0
    %1102 = vmatpush2.bf16.msra.mxu0 0
    %1103 = vmatprep.subr.bf16.mxu0 0
    %1104 = vmatpush2.bf16.msra.mxu0 0
    %1105 = vmatprep.subr.bf16.mxu0 0
    %1106 = vmatpush2.bf16.msra.mxu0 0
    %1107 = vmatprep.subr.bf16.mxu0 0
    %1108 = vmatpush2.bf16.msra.mxu0 0
    %1109 = vmatprep.subr.bf16.mxu0 0
    %1110 = vmatpush2.bf16.msra.mxu0 0
    %1111 = vmatprep.subr.bf16.mxu0 0
    %1112 = vmatpush2.bf16.msra.mxu0 0
    %1113 = vmatprep.subr.bf16.mxu0 0
    %1114 = vmatpush2.bf16.msra.mxu0 0
    %1115 = vmatprep.mubr.bf16.mxu0 0
    %1116 = vmatmul.mubr.bf16.gmra.mxu0 %v1081
    %v1117 = vpop.f32.mrf.mxu0
    %v1118 = vadd.f32 %v1060, %v1117
    %v1119 = vpop.f32.mrf.mxu0
    %v1120 = vpop.f32.mrf.mxu0
    %v1121 = vpop.f32.mrf.mxu0
    %1122 = vdwg.mxu0
    %v1127 = vunpack.c.l.b16 %v816
    %v1128 = vunpack.c.l.b16 %v817
    %v1129 = vunpack.c.l.b16 %v818
    %v1130 = vunpack.c.l.b16 %v819
    %v1131 = vpack.c.b16 %v1128, %v1127
    %v1132 = vpack.c.b16 %v1130, %v1129
    %v1136 = vsel %vm223, %v798, 0
    %1138 = vmatprep.subr.bf16.mxu0 0
    %1139 = vmatpush1.bf16.msra.mxu0 0
    %1140 = vmatprep.subr.bf16.mxu0 0
    %1141 = vmatpush1.bf16.msra.mxu0 0
    %1142 = vmatprep.subr.bf16.mxu0 0
    %1143 = vmatpush1.bf16.msra.mxu0 0
    %1144 = vmatprep.subr.bf16.mxu0 0
    %1145 = vmatpush1.bf16.msra.mxu0 0
    %1146 = vmatprep.subr.bf16.mxu0 0
    %1147 = vmatpush1.bf16.msra.mxu0 0
    %1148 = vmatprep.subr.bf16.mxu0 0
    %1149 = vmatpush1.bf16.msra.mxu0 0
    %1150 = vmatprep.subr.bf16.mxu0 0
    %1151 = vmatpush1.bf16.msra.mxu0 %v1132
    %1152 = vmatprep.subr.bf16.mxu0 0
    %1153 = vmatpush1.bf16.msra.mxu0 %v1131
    %1154 = vmatprep.subr.bf16.mxu0 0
    %1155 = vmatpush2.bf16.msra.mxu0 0
    %1156 = vmatprep.subr.bf16.mxu0 0
    %1157 = vmatpush2.bf16.msra.mxu0 0
    %1158 = vmatprep.subr.bf16.mxu0 0
    %1159 = vmatpush2.bf16.msra.mxu0 0
    %1160 = vmatprep.subr.bf16.mxu0 0
    %1161 = vmatpush2.bf16.msra.mxu0 0
    %1162 = vmatprep.subr.bf16.mxu0 0
    %1163 = vmatpush2.bf16.msra.mxu0 0
    %1164 = vmatprep.subr.bf16.mxu0 0
    %1165 = vmatpush2.bf16.msra.mxu0 0
    %1166 = vmatprep.subr.bf16.mxu0 0
    %1167 = vmatpush2.bf16.msra.mxu0 0
    %1168 = vmatprep.subr.bf16.mxu0 0
    %1169 = vmatpush2.bf16.msra.mxu0 0
    %1170 = vmatprep.mubr.bf16.mxu0 0
    %1171 = vmatmul.mubr.bf16.gmra.mxu0 %v1136
    %v1172 = vpop.f32.mrf.mxu0
    %v1173 = vadd.f32 %v1048, %v1172
    %v1174 = vpop.f32.mrf.mxu0
    %v1175 = vpop.f32.mrf.mxu0
    %v1176 = vadd.f32 %v1051, %v1175
    %v1177 = vpop.f32.mrf.mxu0
    %1178 = vdwg.mxu0
    %v1181 = vunpack.c.l.s4 1966171168
    %v1182 = vunpack.c.0.s8 %v1181
    %v1183 = vlaneseq
    %v1184 = vshrl.u32 %v1183, 7
    %v1185 = vsub.s32 %v1182, %v1184
    %v1186 = vrot.slane %v1118, %v1185
    %v1187 = vcombine.high %v1186, %v1186
    %v1189 = vunpack.c.l.s4 1966171168
    %v1190 = vunpack.c.0.s8 %v1189
    %v1191 = vlaneseq
    %v1192 = vshrl.u32 %v1191, 7
    %v1193 = vsub.s32 %v1190, %v1192
    %v1194 = vrot.slane %v1186, %v1193
    %v1196 = vunpack.c.l.s4 1966171168
    %v1197 = vunpack.c.0.s8 %v1196
    %v1198 = vlaneseq
    %v1199 = vshrl.u32 %v1198, 7
    %v1200 = vsub.s32 %v1197, %v1199
    %v1201 = vrot.slane %v1187, %v1200
    %v1202 = vlaneseq
    %v1203 = vshrl.u32 %v1202, 7
    %v1204 = vsub.s32 0, %v1203
    %v1205 = vrot.slane %v1194, %v1204
    %v1206 = vlaneseq
    %v1207 = vshrl.u32 %v1206, 7
    %v1208 = vsub.s32 0, %v1207
    %v1209 = vrot.slane %v1201, %v1208
    %v1212 = vadd.f32 %v1173, %v1205
    %v1213 = vadd.f32 %v1176, %v1209
    %v1214 = vsel %vm223, %v1212, -inf
    %v1215 = vrot.slane %v1214, 4
    %v1216 = vmax.f32 %v1214, %v1215
    %v1217 = vrot.slane %v1216, 2
    %v1218 = vmax.f32 %v1216, %v1217
    %v1219 = vrot.slane %v1218, 1
    %v1220 = vmax.f32 %v1218, %v1219
    %v1221 = vsel %vm223, %v1213, -inf
    %v1222 = vrot.slane %v1221, 4
    %v1223 = vmax.f32 %v1221, %v1222
    %v1224 = vrot.slane %v1223, 2
    %v1225 = vmax.f32 %v1223, %v1224
    %v1226 = vrot.slane %v1225, 1
    %v1227 = vmax.f32 %v1225, %v1226
    %v1228 = vpack.c.bf16 %v1213, %v1212
    %v1229 = vmax.f32 %v1212, 0.0
    %v1230 = vmax.f32 %v1213, 0.0
    %v1231 = vpack.c.bf16 %v1230, %v1229
    %v1232 = vpack.c.bf16 %v1220, %v1220
    %v1233 = vpack.c.bf16 %v1227, %v1227
    %v1234 = vmax.bf16 %v1232, 0
    %v1235 = vmax.bf16 %v1233, 0
    %s1236 = scalar_lea.vmem %s3, 96
    %v1237 = vld [vmem:[%s1236] sm:$0xf]
    %v1238 = vld [vmem:[%s1236 + $0x4] sm:$0xf]
    %v1239 = vld [vmem:[%s1236 + $0x8] sm:$0xf]
    %v1240 = vld [vmem:[%s1236 + $0xc] sm:$0xf]
    %v1241 = vld [vmem:[%s1236 + $0x10] sm:$0xf]
    %v1242 = vld [vmem:[%s1236 + $0x14] sm:$0xf]
    %v1243 = vld [vmem:[%s1236 + $0x18] sm:$0xf]
    %v1244 = vld [vmem:[%s1236 + $0x1c] sm:$0xf]
    %s1245 = scalar_lea.vmem %s7, 96
    %v1246 = vld [vmem:[%s1245] sm:$0xf]
    %v1247 = vld [vmem:[%s1245 + $0x4] sm:$0xf]
    %v1248 = vld [vmem:[%s1245 + $0x8] sm:$0xf]
    %v1249 = vld [vmem:[%s1245 + $0xc] sm:$0xf]
    %v1250 = vld [vmem:[%s1245 + $0x10] sm:$0xf]
    %v1251 = vld [vmem:[%s1245 + $0x14] sm:$0xf]
    %v1252 = vld [vmem:[%s1245 + $0x18] sm:$0xf]
    %v1253 = vld [vmem:[%s1245 + $0x1c] sm:$0xf]
    %s1254 = scalar_lea.vmem %s4, 3
    %v1255 = vld [vmem:[%s1254] sm:$0x1]
    %v1257 = vlaneseq
    %v1258 = vshrl.u32 %v1257, 7
    %v1259 = vsub.s32 0, %v1258
    %v1260 = vrot.slane %v1255, %v1259
    %v1264 = vunpack.c.l.b16 %v1234
    %v1265 = vunpack.c.l.b16 %v1235
    %v1266 = vsel %vm405, %v1265, %v1264
    %v1267 = vpack.c.b16 %v1266, %v1266
    %v1272 = vunpack.c.l.b16 %v1241
    %v1273 = vunpack.c.l.b16 %v1242
    %v1274 = vunpack.c.l.b16 %v1243
    %v1275 = vunpack.c.l.b16 %v1244
    %v1276 = vpack.c.b16 %v1273, %v1272
    %v1277 = vpack.c.b16 %v1275, %v1274
    %v1281 = vsel %vm223, %v1267, 0
    %1283 = vmatprep.subr.bf16.mxu0 0
    %1284 = vmatpush1.bf16.msra.mxu0 0
    %1285 = vmatprep.subr.bf16.mxu0 0
    %1286 = vmatpush1.bf16.msra.mxu0 0
    %1287 = vmatprep.subr.bf16.mxu0 0
    %1288 = vmatpush1.bf16.msra.mxu0 0
    %1289 = vmatprep.subr.bf16.mxu0 0
    %1290 = vmatpush1.bf16.msra.mxu0 0
    %1291 = vmatprep.subr.bf16.mxu0 0
    %1292 = vmatpush1.bf16.msra.mxu0 0
    %1293 = vmatprep.subr.bf16.mxu0 0
    %1294 = vmatpush1.bf16.msra.mxu0 0
    %1295 = vmatprep.subr.bf16.mxu0 0
    %1296 = vmatpush1.bf16.msra.mxu0 %v1277
    %1297 = vmatprep.subr.bf16.mxu0 0
    %1298 = vmatpush1.bf16.msra.mxu0 %v1276
    %1299 = vmatprep.subr.bf16.mxu0 0
    %1300 = vmatpush2.bf16.msra.mxu0 0
    %1301 = vmatprep.subr.bf16.mxu0 0
    %1302 = vmatpush2.bf16.msra.mxu0 0
    %1303 = vmatprep.subr.bf16.mxu0 0
    %1304 = vmatpush2.bf16.msra.mxu0 0
    %1305 = vmatprep.subr.bf16.mxu0 0
    %1306 = vmatpush2.bf16.msra.mxu0 0
    %1307 = vmatprep.subr.bf16.mxu0 0
    %1308 = vmatpush2.bf16.msra.mxu0 0
    %1309 = vmatprep.subr.bf16.mxu0 0
    %1310 = vmatpush2.bf16.msra.mxu0 0
    %1311 = vmatprep.subr.bf16.mxu0 0
    %1312 = vmatpush2.bf16.msra.mxu0 0
    %1313 = vmatprep.subr.bf16.mxu0 0
    %1314 = vmatpush2.bf16.msra.mxu0 0
    %1315 = vmatprep.mubr.bf16.mxu0 0
    %1316 = vmatmul.mubr.bf16.gmra.mxu0 %v1281
    %v1317 = vpop.f32.mrf.mxu0
    %v1318 = vadd.f32 %v1260, %v1317
    %v1319 = vpop.f32.mrf.mxu0
    %v1320 = vpop.f32.mrf.mxu0
    %v1321 = vpop.f32.mrf.mxu0
    %1322 = vdwg.mxu0
    %v1327 = vunpack.c.l.b16 %v1237
    %v1328 = vunpack.c.l.b16 %v1238
    %v1329 = vunpack.c.l.b16 %v1239
    %v1330 = vunpack.c.l.b16 %v1240
    %v1331 = vpack.c.b16 %v1328, %v1327
    %v1332 = vpack.c.b16 %v1330, %v1329
    %v1336 = vsel %vm223, %v1231, 0
    %1338 = vmatprep.subr.bf16.mxu0 0
    %1339 = vmatpush1.bf16.msra.mxu0 0
    %1340 = vmatprep.subr.bf16.mxu0 0
    %1341 = vmatpush1.bf16.msra.mxu0 0
    %1342 = vmatprep.subr.bf16.mxu0 0
    %1343 = vmatpush1.bf16.msra.mxu0 0
    %1344 = vmatprep.subr.bf16.mxu0 0
    %1345 = vmatpush1.bf16.msra.mxu0 0
    %1346 = vmatprep.subr.bf16.mxu0 0
    %1347 = vmatpush1.bf16.msra.mxu0 0
    %1348 = vmatprep.subr.bf16.mxu0 0
    %1349 = vmatpush1.bf16.msra.mxu0 0
    %1350 = vmatprep.subr.bf16.mxu0 0
    %1351 = vmatpush1.bf16.msra.mxu0 %v1332
    %1352 = vmatprep.subr.bf16.mxu0 0
    %1353 = vmatpush1.bf16.msra.mxu0 %v1331
    %1354 = vmatprep.subr.bf16.mxu0 0
    %1355 = vmatpush2.bf16.msra.mxu0 0
    %1356 = vmatprep.subr.bf16.mxu0 0
    %1357 = vmatpush2.bf16.msra.mxu0 0
    %1358 = vmatprep.subr.bf16.mxu0 0
    %1359 = vmatpush2.bf16.msra.mxu0 0
    %1360 = vmatprep.subr.bf16.mxu0 0
    %1361 = vmatpush2.bf16.msra.mxu0 0
    %1362 = vmatprep.subr.bf16.mxu0 0
    %1363 = vmatpush2.bf16.msra.mxu0 0
    %1364 = vmatprep.subr.bf16.mxu0 0
    %1365 = vmatpush2.bf16.msra.mxu0 0
    %1366 = vmatprep.subr.bf16.mxu0 0
    %1367 = vmatpush2.bf16.msra.mxu0 0
    %1368 = vmatprep.subr.bf16.mxu0 0
    %1369 = vmatpush2.bf16.msra.mxu0 0
    %1370 = vmatprep.mubr.bf16.mxu0 0
    %1371 = vmatmul.mubr.bf16.gmra.mxu0 %v1336
    %v1372 = vpop.f32.mrf.mxu0
    %v1373 = vadd.f32 0.0, %v1372
    %v1374 = vpop.f32.mrf.mxu0
    %v1375 = vpop.f32.mrf.mxu0
    %v1376 = vadd.f32 0.0, %v1375
    %v1377 = vpop.f32.mrf.mxu0
    %1378 = vdwg.mxu0
    %v1381 = vunpack.c.l.s4 1966171168
    %v1382 = vunpack.c.0.s8 %v1381
    %v1383 = vlaneseq
    %v1384 = vshrl.u32 %v1383, 7
    %v1385 = vsub.s32 %v1382, %v1384
    %v1386 = vrot.slane %v1318, %v1385
    %v1387 = vcombine.high %v1386, %v1386
    %v1389 = vunpack.c.l.s4 1966171168
    %v1390 = vunpack.c.0.s8 %v1389
    %v1391 = vlaneseq
    %v1392 = vshrl.u32 %v1391, 7
    %v1393 = vsub.s32 %v1390, %v1392
    %v1394 = vrot.slane %v1386, %v1393
    %v1396 = vunpack.c.l.s4 1966171168
    %v1397 = vunpack.c.0.s8 %v1396
    %v1398 = vlaneseq
    %v1399 = vshrl.u32 %v1398, 7
    %v1400 = vsub.s32 %v1397, %v1399
    %v1401 = vrot.slane %v1387, %v1400
    %v1402 = vlaneseq
    %v1403 = vshrl.u32 %v1402, 7
    %v1404 = vsub.s32 0, %v1403
    %v1405 = vrot.slane %v1394, %v1404
    %v1406 = vlaneseq
    %v1407 = vshrl.u32 %v1406, 7
    %v1408 = vsub.s32 0, %v1407
    %v1409 = vrot.slane %v1401, %v1408
    %v1412 = vadd.f32 %v1373, %v1405
    %v1413 = vadd.f32 %v1376, %v1409
    %v1414 = vmax.f32 %v1412, 0.0
    %v1415 = vmax.f32 %v1413, 0.0
    %v1416 = vpack.c.bf16 %v1414, %v1414
    %v1417 = vpack.c.bf16 %v1415, %v1415
    %s1418 = scalar_lea.vmem %s5, 48
    %v1419 = vld [vmem:[%s1418] sm:$0xf]
    %v1420 = vld [vmem:[%s1418 + $0x4] sm:$0xf]
    %v1421 = vld [vmem:[%s1418 + $0x8] sm:$0xf]
    %v1422 = vld [vmem:[%s1418 + $0xc] sm:$0xf]
    %v1425 = vunpack.c.l.b16 %v1416
    %v1426 = vunpack.c.l.b16 %v1417
    %v1427 = vpack.c.b16 %v1426, %v1425
    %v1432 = vunpack.c.l.b16 %v1419
    %v1433 = vunpack.c.l.b16 %v1420
    %v1434 = vunpack.c.l.b16 %v1421
    %v1435 = vunpack.c.l.b16 %v1422
    %v1436 = vpack.c.b16 %v1433, %v1432
    %v1437 = vpack.c.b16 %v1435, %v1434
    %v1441 = vsel %vm223, %v1427, 0
    %1443 = vmatprep.subr.bf16.mxu0 0
    %1444 = vmatpush1.bf16.msra.mxu0 0
    %1445 = vmatprep.subr.bf16.mxu0 0
    %1446 = vmatpush1.bf16.msra.mxu0 0
    %1447 = vmatprep.subr.bf16.mxu0 0
    %1448 = vmatpush1.bf16.msra.mxu0 0
    %1449 = vmatprep.subr.bf16.mxu0 0
    %1450 = vmatpush1.bf16.msra.mxu0 0
    %1451 = vmatprep.subr.bf16.mxu0 0
    %1452 = vmatpush1.bf16.msra.mxu0 0
    %1453 = vmatprep.subr.bf16.mxu0 0
    %1454 = vmatpush1.bf16.msra.mxu0 0
    %1455 = vmatprep.subr.bf16.mxu0 0
    %1456 = vmatpush1.bf16.msra.mxu0 %v1437
    %1457 = vmatprep.subr.bf16.mxu0 0
    %1458 = vmatpush1.bf16.msra.mxu0 %v1436
    %1459 = vmatprep.subr.bf16.mxu0 0
    %1460 = vmatpush2.bf16.msra.mxu0 0
    %1461 = vmatprep.subr.bf16.mxu0 0
    %1462 = vmatpush2.bf16.msra.mxu0 0
    %1463 = vmatprep.subr.bf16.mxu0 0
    %1464 = vmatpush2.bf16.msra.mxu0 0
    %1465 = vmatprep.subr.bf16.mxu0 0
    %1466 = vmatpush2.bf16.msra.mxu0 0
    %1467 = vmatprep.subr.bf16.mxu0 0
    %1468 = vmatpush2.bf16.msra.mxu0 0
    %1469 = vmatprep.subr.bf16.mxu0 0
    %1470 = vmatpush2.bf16.msra.mxu0 0
    %1471 = vmatprep.subr.bf16.mxu0 0
    %1472 = vmatpush2.bf16.msra.mxu0 0
    %1473 = vmatprep.subr.bf16.mxu0 0
    %1474 = vmatpush2.bf16.msra.mxu0 0
    %1475 = vmatprep.mubr.bf16.mxu0 0
    %1476 = vmatmul.mubr.bf16.gmra.mxu0 %v1441
    %v1477 = vpop.f32.mrf.mxu0
    %v1478 = vadd.f32 0.0, %v1477
    %v1479 = vpop.f32.mrf.mxu0
    %v1480 = vpop.f32.mrf.mxu0
    %v1481 = vadd.f32 0.0, %v1480
    %v1482 = vpop.f32.mrf.mxu0
    %1483 = vdwg.mxu0
    %s1484 = scalar_lea.vmem %s6, 3
    %v1485 = vld [vmem:[%s1484] sm:$0x1]
    %v1487 = vlaneseq
    %v1488 = vshrl.u32 %v1487, 7
    %v1489 = vsub.s32 0, %v1488
    %v1490 = vrot.slane %v1485, %v1489
    %v1494 = vunpack.c.l.b16 %v1232
    %v1495 = vunpack.c.l.b16 %v1233
    %v1496 = vsel %vm405, %v1495, %v1494
    %v1497 = vpack.c.b16 %v1496, %v1496
    %v1502 = vunpack.c.l.b16 %v1250
    %v1503 = vunpack.c.l.b16 %v1251
    %v1504 = vunpack.c.l.b16 %v1252
    %v1505 = vunpack.c.l.b16 %v1253
    %v1506 = vpack.c.b16 %v1503, %v1502
    %v1507 = vpack.c.b16 %v1505, %v1504
    %v1511 = vsel %vm223, %v1497, 0
    %1513 = vmatprep.subr.bf16.mxu0 0
    %1514 = vmatpush1.bf16.msra.mxu0 0
    %1515 = vmatprep.subr.bf16.mxu0 0
    %1516 = vmatpush1.bf16.msra.mxu0 0
    %1517 = vmatprep.subr.bf16.mxu0 0
    %1518 = vmatpush1.bf16.msra.mxu0 0
    %1519 = vmatprep.subr.bf16.mxu0 0
    %1520 = vmatpush1.bf16.msra.mxu0 0
    %1521 = vmatprep.subr.bf16.mxu0 0
    %1522 = vmatpush1.bf16.msra.mxu0 0
    %1523 = vmatprep.subr.bf16.mxu0 0
    %1524 = vmatpush1.bf16.msra.mxu0 0
    %1525 = vmatprep.subr.bf16.mxu0 0
    %1526 = vmatpush1.bf16.msra.mxu0 %v1507
    %1527 = vmatprep.subr.bf16.mxu0 0
    %1528 = vmatpush1.bf16.msra.mxu0 %v1506
    %1529 = vmatprep.subr.bf16.mxu0 0
    %1530 = vmatpush2.bf16.msra.mxu0 0
    %1531 = vmatprep.subr.bf16.mxu0 0
    %1532 = vmatpush2.bf16.msra.mxu0 0
    %1533 = vmatprep.subr.bf16.mxu0 0
    %1534 = vmatpush2.bf16.msra.mxu0 0
    %1535 = vmatprep.subr.bf16.mxu0 0
    %1536 = vmatpush2.bf16.msra.mxu0 0
    %1537 = vmatprep.subr.bf16.mxu0 0
    %1538 = vmatpush2.bf16.msra.mxu0 0
    %1539 = vmatprep.subr.bf16.mxu0 0
    %1540 = vmatpush2.bf16.msra.mxu0 0
    %1541 = vmatprep.subr.bf16.mxu0 0
    %1542 = vmatpush2.bf16.msra.mxu0 0
    %1543 = vmatprep.subr.bf16.mxu0 0
    %1544 = vmatpush2.bf16.msra.mxu0 0
    %1545 = vmatprep.mubr.bf16.mxu0 0
    %1546 = vmatmul.mubr.bf16.gmra.mxu0 %v1511
    %v1547 = vpop.f32.mrf.mxu0
    %v1548 = vadd.f32 %v1490, %v1547
    %v1549 = vpop.f32.mrf.mxu0
    %v1550 = vpop.f32.mrf.mxu0
    %v1551 = vpop.f32.mrf.mxu0
    %1552 = vdwg.mxu0
    %v1557 = vunpack.c.l.b16 %v1246
    %v1558 = vunpack.c.l.b16 %v1247
    %v1559 = vunpack.c.l.b16 %v1248
    %v1560 = vunpack.c.l.b16 %v1249
    %v1561 = vpack.c.b16 %v1558, %v1557
    %v1562 = vpack.c.b16 %v1560, %v1559
    %v1566 = vsel %vm223, %v1228, 0
    %1568 = vmatprep.subr.bf16.mxu0 0
    %1569 = vmatpush1.bf16.msra.mxu0 0
    %1570 = vmatprep.subr.bf16.mxu0 0
    %1571 = vmatpush1.bf16.msra.mxu0 0
    %1572 = vmatprep.subr.bf16.mxu0 0
    %1573 = vmatpush1.bf16.msra.mxu0 0
    %1574 = vmatprep.subr.bf16.mxu0 0
    %1575 = vmatpush1.bf16.msra.mxu0 0
    %1576 = vmatprep.subr.bf16.mxu0 0
    %1577 = vmatpush1.bf16.msra.mxu0 0
    %1578 = vmatprep.subr.bf16.mxu0 0
    %1579 = vmatpush1.bf16.msra.mxu0 0
    %1580 = vmatprep.subr.bf16.mxu0 0
    %1581 = vmatpush1.bf16.msra.mxu0 %v1562
    %1582 = vmatprep.subr.bf16.mxu0 0
    %1583 = vmatpush1.bf16.msra.mxu0 %v1561
    %1584 = vmatprep.subr.bf16.mxu0 0
    %1585 = vmatpush2.bf16.msra.mxu0 0
    %1586 = vmatprep.subr.bf16.mxu0 0
    %1587 = vmatpush2.bf16.msra.mxu0 0
    %1588 = vmatprep.subr.bf16.mxu0 0
    %1589 = vmatpush2.bf16.msra.mxu0 0
    %1590 = vmatprep.subr.bf16.mxu0 0
    %1591 = vmatpush2.bf16.msra.mxu0 0
    %1592 = vmatprep.subr.bf16.mxu0 0
    %1593 = vmatpush2.bf16.msra.mxu0 0
    %1594 = vmatprep.subr.bf16.mxu0 0
    %1595 = vmatpush2.bf16.msra.mxu0 0
    %1596 = vmatprep.subr.bf16.mxu0 0
    %1597 = vmatpush2.bf16.msra.mxu0 0
    %1598 = vmatprep.subr.bf16.mxu0 0
    %1599 = vmatpush2.bf16.msra.mxu0 0
    %1600 = vmatprep.mubr.bf16.mxu0 0
    %1601 = vmatmul.mubr.bf16.gmra.mxu0 %v1566
    %v1602 = vpop.f32.mrf.mxu0
    %v1603 = vadd.f32 %v1478, %v1602
    %v1604 = vpop.f32.mrf.mxu0
    %v1605 = vpop.f32.mrf.mxu0
    %v1606 = vadd.f32 %v1481, %v1605
    %v1607 = vpop.f32.mrf.mxu0
    %1608 = vdwg.mxu0
    %v1611 = vunpack.c.l.s4 1966171168
    %v1612 = vunpack.c.0.s8 %v1611
    %v1613 = vlaneseq
    %v1614 = vshrl.u32 %v1613, 7
    %v1615 = vsub.s32 %v1612, %v1614
    %v1616 = vrot.slane %v1548, %v1615
    %v1617 = vcombine.high %v1616, %v1616
    %v1619 = vunpack.c.l.s4 1966171168
    %v1620 = vunpack.c.0.s8 %v1619
    %v1621 = vlaneseq
    %v1622 = vshrl.u32 %v1621, 7
    %v1623 = vsub.s32 %v1620, %v1622
    %v1624 = vrot.slane %v1616, %v1623
    %v1626 = vunpack.c.l.s4 1966171168
    %v1627 = vunpack.c.0.s8 %v1626
    %v1628 = vlaneseq
    %v1629 = vshrl.u32 %v1628, 7
    %v1630 = vsub.s32 %v1627, %v1629
    %v1631 = vrot.slane %v1617, %v1630
    %v1632 = vlaneseq
    %v1633 = vshrl.u32 %v1632, 7
    %v1634 = vsub.s32 0, %v1633
    %v1635 = vrot.slane %v1624, %v1634
    %v1636 = vlaneseq
    %v1637 = vshrl.u32 %v1636, 7
    %v1638 = vsub.s32 0, %v1637
    %v1639 = vrot.slane %v1631, %v1638
    %v1642 = vadd.f32 %v1603, %v1635
    %v1643 = vadd.f32 %v1606, %v1639
    %v1644 = vsel %vm223, %v1642, -inf
    %v1645 = vrot.slane %v1644, 4
    %v1646 = vmax.f32 %v1644, %v1645
    %v1647 = vrot.slane %v1646, 2
    %v1648 = vmax.f32 %v1646, %v1647
    %v1649 = vrot.slane %v1648, 1
    %v1650 = vmax.f32 %v1648, %v1649
    %v1651 = vsel %vm223, %v1643, -inf
    %v1652 = vrot.slane %v1651, 4
    %v1653 = vmax.f32 %v1651, %v1652
    %v1654 = vrot.slane %v1653, 2
    %v1655 = vmax.f32 %v1653, %v1654
    %v1656 = vrot.slane %v1655, 1
    %v1657 = vmax.f32 %v1655, %v1656
    %v1658 = vpack.c.bf16 %v1643, %v1642
    %v1659 = vmax.f32 %v1642, 0.0
    %v1660 = vmax.f32 %v1643, 0.0
    %v1661 = vpack.c.bf16 %v1660, %v1659
    %v1662 = vpack.c.bf16 %v1650, %v1650
    %v1663 = vpack.c.bf16 %v1657, %v1657
    %v1664 = vmax.bf16 %v1662, 0
    %v1665 = vmax.bf16 %v1663, 0
    %s1666 = scalar_lea.vmem %s3, 128
    %v1667 = vld [vmem:[%s1666] sm:$0xf]
    %v1668 = vld [vmem:[%s1666 + $0x4] sm:$0xf]
    %v1669 = vld [vmem:[%s1666 + $0x8] sm:$0xf]
    %v1670 = vld [vmem:[%s1666 + $0xc] sm:$0xf]
    %v1671 = vld [vmem:[%s1666 + $0x10] sm:$0xf]
    %v1672 = vld [vmem:[%s1666 + $0x14] sm:$0xf]
    %v1673 = vld [vmem:[%s1666 + $0x18] sm:$0xf]
    %v1674 = vld [vmem:[%s1666 + $0x1c] sm:$0xf]
    %s1675 = scalar_lea.vmem %s7, 128
    %v1676 = vld [vmem:[%s1675] sm:$0xf]
    %v1677 = vld [vmem:[%s1675 + $0x4] sm:$0xf]
    %v1678 = vld [vmem:[%s1675 + $0x8] sm:$0xf]
    %v1679 = vld [vmem:[%s1675 + $0xc] sm:$0xf]
    %v1680 = vld [vmem:[%s1675 + $0x10] sm:$0xf]
    %v1681 = vld [vmem:[%s1675 + $0x14] sm:$0xf]
    %v1682 = vld [vmem:[%s1675 + $0x18] sm:$0xf]
    %v1683 = vld [vmem:[%s1675 + $0x1c] sm:$0xf]
    %s1684 = scalar_lea.vmem %s4, 4
    %v1685 = vld [vmem:[%s1684] sm:$0x1]
    %v1687 = vlaneseq
    %v1688 = vshrl.u32 %v1687, 7
    %v1689 = vsub.s32 0, %v1688
    %v1690 = vrot.slane %v1685, %v1689
    %v1694 = vunpack.c.l.b16 %v1664
    %v1695 = vunpack.c.l.b16 %v1665
    %v1696 = vsel %vm405, %v1695, %v1694
    %v1697 = vpack.c.b16 %v1696, %v1696
    %v1702 = vunpack.c.l.b16 %v1671
    %v1703 = vunpack.c.l.b16 %v1672
    %v1704 = vunpack.c.l.b16 %v1673
    %v1705 = vunpack.c.l.b16 %v1674
    %v1706 = vpack.c.b16 %v1703, %v1702
    %v1707 = vpack.c.b16 %v1705, %v1704
    %v1711 = vsel %vm223, %v1697, 0
    %1713 = vmatprep.subr.bf16.mxu0 0
    %1714 = vmatpush1.bf16.msra.mxu0 0
    %1715 = vmatprep.subr.bf16.mxu0 0
    %1716 = vmatpush1.bf16.msra.mxu0 0
    %1717 = vmatprep.subr.bf16.mxu0 0
    %1718 = vmatpush1.bf16.msra.mxu0 0
    %1719 = vmatprep.subr.bf16.mxu0 0
    %1720 = vmatpush1.bf16.msra.mxu0 0
    %1721 = vmatprep.subr.bf16.mxu0 0
    %1722 = vmatpush1.bf16.msra.mxu0 0
    %1723 = vmatprep.subr.bf16.mxu0 0
    %1724 = vmatpush1.bf16.msra.mxu0 0
    %1725 = vmatprep.subr.bf16.mxu0 0
    %1726 = vmatpush1.bf16.msra.mxu0 %v1707
    %1727 = vmatprep.subr.bf16.mxu0 0
    %1728 = vmatpush1.bf16.msra.mxu0 %v1706
    %1729 = vmatprep.subr.bf16.mxu0 0
    %1730 = vmatpush2.bf16.msra.mxu0 0
    %1731 = vmatprep.subr.bf16.mxu0 0
    %1732 = vmatpush2.bf16.msra.mxu0 0
    %1733 = vmatprep.subr.bf16.mxu0 0
    %1734 = vmatpush2.bf16.msra.mxu0 0
    %1735 = vmatprep.subr.bf16.mxu0 0
    %1736 = vmatpush2.bf16.msra.mxu0 0
    %1737 = vmatprep.subr.bf16.mxu0 0
    %1738 = vmatpush2.bf16.msra.mxu0 0
    %1739 = vmatprep.subr.bf16.mxu0 0
    %1740 = vmatpush2.bf16.msra.mxu0 0
    %1741 = vmatprep.subr.bf16.mxu0 0
    %1742 = vmatpush2.bf16.msra.mxu0 0
    %1743 = vmatprep.subr.bf16.mxu0 0
    %1744 = vmatpush2.bf16.msra.mxu0 0
    %1745 = vmatprep.mubr.bf16.mxu0 0
    %1746 = vmatmul.mubr.bf16.gmra.mxu0 %v1711
    %v1747 = vpop.f32.mrf.mxu0
    %v1748 = vadd.f32 %v1690, %v1747
    %v1749 = vpop.f32.mrf.mxu0
    %v1750 = vpop.f32.mrf.mxu0
    %v1751 = vpop.f32.mrf.mxu0
    %1752 = vdwg.mxu0
    %v1757 = vunpack.c.l.b16 %v1667
    %v1758 = vunpack.c.l.b16 %v1668
    %v1759 = vunpack.c.l.b16 %v1669
    %v1760 = vunpack.c.l.b16 %v1670
    %v1761 = vpack.c.b16 %v1758, %v1757
    %v1762 = vpack.c.b16 %v1760, %v1759
    %v1766 = vsel %vm223, %v1661, 0
    %1768 = vmatprep.subr.bf16.mxu0 0
    %1769 = vmatpush1.bf16.msra.mxu0 0
    %1770 = vmatprep.subr.bf16.mxu0 0
    %1771 = vmatpush1.bf16.msra.mxu0 0
    %1772 = vmatprep.subr.bf16.mxu0 0
    %1773 = vmatpush1.bf16.msra.mxu0 0
    %1774 = vmatprep.subr.bf16.mxu0 0
    %1775 = vmatpush1.bf16.msra.mxu0 0
    %1776 = vmatprep.subr.bf16.mxu0 0
    %1777 = vmatpush1.bf16.msra.mxu0 0
    %1778 = vmatprep.subr.bf16.mxu0 0
    %1779 = vmatpush1.bf16.msra.mxu0 0
    %1780 = vmatprep.subr.bf16.mxu0 0
    %1781 = vmatpush1.bf16.msra.mxu0 %v1762
    %1782 = vmatprep.subr.bf16.mxu0 0
    %1783 = vmatpush1.bf16.msra.mxu0 %v1761
    %1784 = vmatprep.subr.bf16.mxu0 0
    %1785 = vmatpush2.bf16.msra.mxu0 0
    %1786 = vmatprep.subr.bf16.mxu0 0
    %1787 = vmatpush2.bf16.msra.mxu0 0
    %1788 = vmatprep.subr.bf16.mxu0 0
    %1789 = vmatpush2.bf16.msra.mxu0 0
    %1790 = vmatprep.subr.bf16.mxu0 0
    %1791 = vmatpush2.bf16.msra.mxu0 0
    %1792 = vmatprep.subr.bf16.mxu0 0
    %1793 = vmatpush2.bf16.msra.mxu0 0
    %1794 = vmatprep.subr.bf16.mxu0 0
    %1795 = vmatpush2.bf16.msra.mxu0 0
    %1796 = vmatprep.subr.bf16.mxu0 0
    %1797 = vmatpush2.bf16.msra.mxu0 0
    %1798 = vmatprep.subr.bf16.mxu0 0
    %1799 = vmatpush2.bf16.msra.mxu0 0
    %1800 = vmatprep.mubr.bf16.mxu0 0
    %1801 = vmatmul.mubr.bf16.gmra.mxu0 %v1766
    %v1802 = vpop.f32.mrf.mxu0
    %v1803 = vadd.f32 0.0, %v1802
    %v1804 = vpop.f32.mrf.mxu0
    %v1805 = vpop.f32.mrf.mxu0
    %v1806 = vadd.f32 0.0, %v1805
    %v1807 = vpop.f32.mrf.mxu0
    %1808 = vdwg.mxu0
    %v1811 = vunpack.c.l.s4 1966171168
    %v1812 = vunpack.c.0.s8 %v1811
    %v1813 = vlaneseq
    %v1814 = vshrl.u32 %v1813, 7
    %v1815 = vsub.s32 %v1812, %v1814
    %v1816 = vrot.slane %v1748, %v1815
    %v1817 = vcombine.high %v1816, %v1816
    %v1819 = vunpack.c.l.s4 1966171168
    %v1820 = vunpack.c.0.s8 %v1819
    %v1821 = vlaneseq
    %v1822 = vshrl.u32 %v1821, 7
    %v1823 = vsub.s32 %v1820, %v1822
    %v1824 = vrot.slane %v1816, %v1823
    %v1826 = vunpack.c.l.s4 1966171168
    %v1827 = vunpack.c.0.s8 %v1826
    %v1828 = vlaneseq
    %v1829 = vshrl.u32 %v1828, 7
    %v1830 = vsub.s32 %v1827, %v1829
    %v1831 = vrot.slane %v1817, %v1830
    %v1832 = vlaneseq
    %v1833 = vshrl.u32 %v1832, 7
    %v1834 = vsub.s32 0, %v1833
    %v1835 = vrot.slane %v1824, %v1834
    %v1836 = vlaneseq
    %v1837 = vshrl.u32 %v1836, 7
    %v1838 = vsub.s32 0, %v1837
    %v1839 = vrot.slane %v1831, %v1838
    %v1842 = vadd.f32 %v1803, %v1835
    %v1843 = vadd.f32 %v1806, %v1839
    %v1844 = vmax.f32 %v1842, 0.0
    %v1845 = vmax.f32 %v1843, 0.0
    %v1846 = vpack.c.bf16 %v1844, %v1844
    %v1847 = vpack.c.bf16 %v1845, %v1845
    %s1848 = scalar_lea.vmem %s5, 64
    %v1849 = vld [vmem:[%s1848] sm:$0xf]
    %v1850 = vld [vmem:[%s1848 + $0x4] sm:$0xf]
    %v1851 = vld [vmem:[%s1848 + $0x8] sm:$0xf]
    %v1852 = vld [vmem:[%s1848 + $0xc] sm:$0xf]
    %v1855 = vunpack.c.l.b16 %v1846
    %v1856 = vunpack.c.l.b16 %v1847
    %v1857 = vpack.c.b16 %v1856, %v1855
    %v1862 = vunpack.c.l.b16 %v1849
    %v1863 = vunpack.c.l.b16 %v1850
    %v1864 = vunpack.c.l.b16 %v1851
    %v1865 = vunpack.c.l.b16 %v1852
    %v1866 = vpack.c.b16 %v1863, %v1862
    %v1867 = vpack.c.b16 %v1865, %v1864
    %v1871 = vsel %vm223, %v1857, 0
    %1873 = vmatprep.subr.bf16.mxu0 0
    %1874 = vmatpush1.bf16.msra.mxu0 0
    %1875 = vmatprep.subr.bf16.mxu0 0
    %1876 = vmatpush1.bf16.msra.mxu0 0
    %1877 = vmatprep.subr.bf16.mxu0 0
    %1878 = vmatpush1.bf16.msra.mxu0 0
    %1879 = vmatprep.subr.bf16.mxu0 0
    %1880 = vmatpush1.bf16.msra.mxu0 0
    %1881 = vmatprep.subr.bf16.mxu0 0
    %1882 = vmatpush1.bf16.msra.mxu0 0
    %1883 = vmatprep.subr.bf16.mxu0 0
    %1884 = vmatpush1.bf16.msra.mxu0 0
    %1885 = vmatprep.subr.bf16.mxu0 0
    %1886 = vmatpush1.bf16.msra.mxu0 %v1867
    %1887 = vmatprep.subr.bf16.mxu0 0
    %1888 = vmatpush1.bf16.msra.mxu0 %v1866
    %1889 = vmatprep.subr.bf16.mxu0 0
    %1890 = vmatpush2.bf16.msra.mxu0 0
    %1891 = vmatprep.subr.bf16.mxu0 0
    %1892 = vmatpush2.bf16.msra.mxu0 0
    %1893 = vmatprep.subr.bf16.mxu0 0
    %1894 = vmatpush2.bf16.msra.mxu0 0
    %1895 = vmatprep.subr.bf16.mxu0 0
    %1896 = vmatpush2.bf16.msra.mxu0 0
    %1897 = vmatprep.subr.bf16.mxu0 0
    %1898 = vmatpush2.bf16.msra.mxu0 0
    %1899 = vmatprep.subr.bf16.mxu0 0
    %1900 = vmatpush2.bf16.msra.mxu0 0
    %1901 = vmatprep.subr.bf16.mxu0 0
    %1902 = vmatpush2.bf16.msra.mxu0 0
    %1903 = vmatprep.subr.bf16.mxu0 0
    %1904 = vmatpush2.bf16.msra.mxu0 0
    %1905 = vmatprep.mubr.bf16.mxu0 0
    %1906 = vmatmul.mubr.bf16.gmra.mxu0 %v1871
    %v1907 = vpop.f32.mrf.mxu0
    %v1908 = vadd.f32 0.0, %v1907
    %v1909 = vpop.f32.mrf.mxu0
    %v1910 = vpop.f32.mrf.mxu0
    %v1911 = vadd.f32 0.0, %v1910
    %v1912 = vpop.f32.mrf.mxu0
    %1913 = vdwg.mxu0
    %s1914 = scalar_lea.vmem %s6, 4
    %v1915 = vld [vmem:[%s1914] sm:$0x1]
    %v1917 = vlaneseq
    %v1918 = vshrl.u32 %v1917, 7
    %v1919 = vsub.s32 0, %v1918
    %v1920 = vrot.slane %v1915, %v1919
    %v1924 = vunpack.c.l.b16 %v1662
    %v1925 = vunpack.c.l.b16 %v1663
    %v1926 = vsel %vm405, %v1925, %v1924
    %v1927 = vpack.c.b16 %v1926, %v1926
    %v1932 = vunpack.c.l.b16 %v1680
    %v1933 = vunpack.c.l.b16 %v1681
    %v1934 = vunpack.c.l.b16 %v1682
    %v1935 = vunpack.c.l.b16 %v1683
    %v1936 = vpack.c.b16 %v1933, %v1932
    %v1937 = vpack.c.b16 %v1935, %v1934
    %v1941 = vsel %vm223, %v1927, 0
    %1943 = vmatprep.subr.bf16.mxu0 0
    %1944 = vmatpush1.bf16.msra.mxu0 0
    %1945 = vmatprep.subr.bf16.mxu0 0
    %1946 = vmatpush1.bf16.msra.mxu0 0
    %1947 = vmatprep.subr.bf16.mxu0 0
    %1948 = vmatpush1.bf16.msra.mxu0 0
    %1949 = vmatprep.subr.bf16.mxu0 0
    %1950 = vmatpush1.bf16.msra.mxu0 0
    %1951 = vmatprep.subr.bf16.mxu0 0
    %1952 = vmatpush1.bf16.msra.mxu0 0
    %1953 = vmatprep.subr.bf16.mxu0 0
    %1954 = vmatpush1.bf16.msra.mxu0 0
    %1955 = vmatprep.subr.bf16.mxu0 0
    %1956 = vmatpush1.bf16.msra.mxu0 %v1937
    %1957 = vmatprep.subr.bf16.mxu0 0
    %1958 = vmatpush1.bf16.msra.mxu0 %v1936
    %1959 = vmatprep.subr.bf16.mxu0 0
    %1960 = vmatpush2.bf16.msra.mxu0 0
    %1961 = vmatprep.subr.bf16.mxu0 0
    %1962 = vmatpush2.bf16.msra.mxu0 0
    %1963 = vmatprep.subr.bf16.mxu0 0
    %1964 = vmatpush2.bf16.msra.mxu0 0
    %1965 = vmatprep.subr.bf16.mxu0 0
    %1966 = vmatpush2.bf16.msra.mxu0 0
    %1967 = vmatprep.subr.bf16.mxu0 0
    %1968 = vmatpush2.bf16.msra.mxu0 0
    %1969 = vmatprep.subr.bf16.mxu0 0
    %1970 = vmatpush2.bf16.msra.mxu0 0
    %1971 = vmatprep.subr.bf16.mxu0 0
    %1972 = vmatpush2.bf16.msra.mxu0 0
    %1973 = vmatprep.subr.bf16.mxu0 0
    %1974 = vmatpush2.bf16.msra.mxu0 0
    %1975 = vmatprep.mubr.bf16.mxu0 0
    %1976 = vmatmul.mubr.bf16.gmra.mxu0 %v1941
    %v1977 = vpop.f32.mrf.mxu0
    %v1978 = vadd.f32 %v1920, %v1977
    %v1979 = vpop.f32.mrf.mxu0
    %v1980 = vpop.f32.mrf.mxu0
    %v1981 = vpop.f32.mrf.mxu0
    %1982 = vdwg.mxu0
    %v1987 = vunpack.c.l.b16 %v1676
    %v1988 = vunpack.c.l.b16 %v1677
    %v1989 = vunpack.c.l.b16 %v1678
    %v1990 = vunpack.c.l.b16 %v1679
    %v1991 = vpack.c.b16 %v1988, %v1987
    %v1992 = vpack.c.b16 %v1990, %v1989
    %v1996 = vsel %vm223, %v1658, 0
    %1998 = vmatprep.subr.bf16.mxu0 0
    %1999 = vmatpush1.bf16.msra.mxu0 0
    %2000 = vmatprep.subr.bf16.mxu0 0
    %2001 = vmatpush1.bf16.msra.mxu0 0
    %2002 = vmatprep.subr.bf16.mxu0 0
    %2003 = vmatpush1.bf16.msra.mxu0 0
    %2004 = vmatprep.subr.bf16.mxu0 0
    %2005 = vmatpush1.bf16.msra.mxu0 0
    %2006 = vmatprep.subr.bf16.mxu0 0
    %2007 = vmatpush1.bf16.msra.mxu0 0
    %2008 = vmatprep.subr.bf16.mxu0 0
    %2009 = vmatpush1.bf16.msra.mxu0 0
    %2010 = vmatprep.subr.bf16.mxu0 0
    %2011 = vmatpush1.bf16.msra.mxu0 %v1992
    %2012 = vmatprep.subr.bf16.mxu0 0
    %2013 = vmatpush1.bf16.msra.mxu0 %v1991
    %2014 = vmatprep.subr.bf16.mxu0 0
    %2015 = vmatpush2.bf16.msra.mxu0 0
    %2016 = vmatprep.subr.bf16.mxu0 0
    %2017 = vmatpush2.bf16.msra.mxu0 0
    %2018 = vmatprep.subr.bf16.mxu0 0
    %2019 = vmatpush2.bf16.msra.mxu0 0
    %2020 = vmatprep.subr.bf16.mxu0 0
    %2021 = vmatpush2.bf16.msra.mxu0 0
    %2022 = vmatprep.subr.bf16.mxu0 0
    %2023 = vmatpush2.bf16.msra.mxu0 0
    %2024 = vmatprep.subr.bf16.mxu0 0
    %2025 = vmatpush2.bf16.msra.mxu0 0
    %2026 = vmatprep.subr.bf16.mxu0 0
    %2027 = vmatpush2.bf16.msra.mxu0 0
    %2028 = vmatprep.subr.bf16.mxu0 0
    %2029 = vmatpush2.bf16.msra.mxu0 0
    %2030 = vmatprep.mubr.bf16.mxu0 0
    %2031 = vmatmul.mubr.bf16.gmra.mxu0 %v1996
    %v2032 = vpop.f32.mrf.mxu0
    %v2033 = vadd.f32 %v1908, %v2032
    %v2034 = vpop.f32.mrf.mxu0
    %v2035 = vpop.f32.mrf.mxu0
    %v2036 = vadd.f32 %v1911, %v2035
    %v2037 = vpop.f32.mrf.mxu0
    %2038 = vdwg.mxu0
    %v2041 = vunpack.c.l.s4 1966171168
    %v2042 = vunpack.c.0.s8 %v2041
    %v2043 = vlaneseq
    %v2044 = vshrl.u32 %v2043, 7
    %v2045 = vsub.s32 %v2042, %v2044
    %v2046 = vrot.slane %v1978, %v2045
    %v2047 = vcombine.high %v2046, %v2046
    %v2049 = vunpack.c.l.s4 1966171168
    %v2050 = vunpack.c.0.s8 %v2049
    %v2051 = vlaneseq
    %v2052 = vshrl.u32 %v2051, 7
    %v2053 = vsub.s32 %v2050, %v2052
    %v2054 = vrot.slane %v2046, %v2053
    %v2056 = vunpack.c.l.s4 1966171168
    %v2057 = vunpack.c.0.s8 %v2056
    %v2058 = vlaneseq
    %v2059 = vshrl.u32 %v2058, 7
    %v2060 = vsub.s32 %v2057, %v2059
    %v2061 = vrot.slane %v2047, %v2060
    %v2062 = vlaneseq
    %v2063 = vshrl.u32 %v2062, 7
    %v2064 = vsub.s32 0, %v2063
    %v2065 = vrot.slane %v2054, %v2064
    %v2066 = vlaneseq
    %v2067 = vshrl.u32 %v2066, 7
    %v2068 = vsub.s32 0, %v2067
    %v2069 = vrot.slane %v2061, %v2068
    %v2072 = vadd.f32 %v2033, %v2065
    %v2073 = vadd.f32 %v2036, %v2069
    %v2074 = vsel %vm223, %v2072, -inf
    %v2075 = vrot.slane %v2074, 4
    %v2076 = vmax.f32 %v2074, %v2075
    %v2077 = vrot.slane %v2076, 2
    %v2078 = vmax.f32 %v2076, %v2077
    %v2079 = vrot.slane %v2078, 1
    %v2080 = vmax.f32 %v2078, %v2079
    %v2081 = vsel %vm223, %v2073, -inf
    %v2082 = vrot.slane %v2081, 4
    %v2083 = vmax.f32 %v2081, %v2082
    %v2084 = vrot.slane %v2083, 2
    %v2085 = vmax.f32 %v2083, %v2084
    %v2086 = vrot.slane %v2085, 1
    %v2087 = vmax.f32 %v2085, %v2086
    %v2088 = vmax.f32 %v2080, 0.0
    %v2089 = vmax.f32 %v2087, 0.0
    %v2090 = vpack.c.bf16 %v2088, %v2088
    %v2091 = vpack.c.bf16 %v2089, %v2089
    %v2092 = vld [vmem:[%s8] sm:$0xf]
    %v2093 = vld [vmem:[%s8 + $0x4] sm:$0xf]
    %v2094 = vld [vmem:[%s8 + $0x8] sm:$0xf]
    %v2095 = vld [vmem:[%s8 + $0xc] sm:$0xf]
    %v2096 = vld [vmem:[%s9] sm:$0x1]
    %v2098 = vlaneseq
    %v2099 = vshrl.u32 %v2098, 7
    %v2100 = vsub.s32 0, %v2099
    %v2101 = vrot.slane %v2096, %v2100
    %v2105 = vunpack.c.l.b16 %v2090
    %v2106 = vunpack.c.l.b16 %v2091
    %v2107 = vsel %vm405, %v2106, %v2105
    %v2108 = vpack.c.b16 %v2107, %v2107
    %v2113 = vunpack.c.l.b16 %v2092
    %v2114 = vunpack.c.l.b16 %v2093
    %v2115 = vunpack.c.l.b16 %v2094
    %v2116 = vunpack.c.l.b16 %v2095
    %v2117 = vpack.c.b16 %v2114, %v2113
    %v2118 = vpack.c.b16 %v2116, %v2115
    %v2122 = vsel %vm223, %v2108, 0
    %2124 = vmatprep.subr.bf16.mxu0 0
    %2125 = vmatpush1.bf16.msra.mxu0 0
    %2126 = vmatprep.subr.bf16.mxu0 0
    %2127 = vmatpush1.bf16.msra.mxu0 0
    %2128 = vmatprep.subr.bf16.mxu0 0
    %2129 = vmatpush1.bf16.msra.mxu0 0
    %2130 = vmatprep.subr.bf16.mxu0 0
    %2131 = vmatpush1.bf16.msra.mxu0 0
    %2132 = vmatprep.subr.bf16.mxu0 0
    %2133 = vmatpush1.bf16.msra.mxu0 0
    %2134 = vmatprep.subr.bf16.mxu0 0
    %2135 = vmatpush1.bf16.msra.mxu0 0
    %2136 = vmatprep.subr.bf16.mxu0 0
    %2137 = vmatpush1.bf16.msra.mxu0 %v2118
    %2138 = vmatprep.subr.bf16.mxu0 0
    %2139 = vmatpush1.bf16.msra.mxu0 %v2117
    %2140 = vmatprep.subr.bf16.mxu0 0
    %2141 = vmatpush2.bf16.msra.mxu0 0
    %2142 = vmatprep.subr.bf16.mxu0 0
    %2143 = vmatpush2.bf16.msra.mxu0 0
    %2144 = vmatprep.subr.bf16.mxu0 0
    %2145 = vmatpush2.bf16.msra.mxu0 0
    %2146 = vmatprep.subr.bf16.mxu0 0
    %2147 = vmatpush2.bf16.msra.mxu0 0
    %2148 = vmatprep.subr.bf16.mxu0 0
    %2149 = vmatpush2.bf16.msra.mxu0 0
    %2150 = vmatprep.subr.bf16.mxu0 0
    %2151 = vmatpush2.bf16.msra.mxu0 0
    %2152 = vmatprep.subr.bf16.mxu0 0
    %2153 = vmatpush2.bf16.msra.mxu0 0
    %2154 = vmatprep.subr.bf16.mxu0 0
    %2155 = vmatpush2.bf16.msra.mxu0 0
    %2156 = vmatprep.mubr.bf16.mxu0 0
    %2157 = vmatmul.mubr.bf16.gmra.mxu0 %v2122
    %v2158 = vpop.f32.mrf.mxu0
    %v2159 = vadd.f32 %v2101, %v2158
    %v2160 = vpop.f32.mrf.mxu0
    %v2161 = vpop.f32.mrf.mxu0
    %v2162 = vpop.f32.mrf.mxu0
    %2163 = vdwg.mxu0
    %2164 = vst [vmem:[#allocation2] sm:$0x3] %v2159
    // Predicated region
    $region42: #{tpu_custom_call.1} parent=1 // pred_check
      _
    $region43: #{tpu_custom_call.1} parent=1 // pred_check_branch
      %2166 = sbr.rel (0) target = $region45
    $region44: #{tpu_custom_call.1} parent=1 // pred_region
      %s2168 = ssub.s32 32, 32
      %2169 = vsyncadd [#allocation3], %s2168
      %s2171 = sshll.u32 [#allocation2], 4
      %s2172 = int_to_ptr.vmem [resolvable:$true] %s2171
      %2174 = dma.vmem_to_hbm [thread:$0]  %s2172, 32, %s10, [#allocation3]
    $region45: #{tpu_custom_call.1} parent=1 // pred_fallthru
      _
    // Predicated region
    $region46: #{tpu_custom_call.1} parent=1 // pred_check
      _
    $region47: #{tpu_custom_call.1} parent=1 // pred_check_branch
      %2176 = sbr.rel (0) target = $region49
    $region48: #{tpu_custom_call.1} parent=1 // pred_region
      %2177 = dma.done [#allocation3], 32
    $region49: #{tpu_custom_call.1} parent=1 // pred_fallthru
      _
    %2178 = vsyncpa [#allocation3], 1

// kernel: tpu_custom_call.1
$region0: #{tpu_custom_call.1}
  #allocation0 [shape = 'u32[]', space=smem, size = 0x4, offset = 0x4, fixed_abs, tag = 'smem constant byte address 0x4 - core index']
  #allocation1 [shape = 'u32[144,128]{1,0:T(1,128)}', space=vmem, size = 0x12000, scoped, tag = 'internal scratch']
  %s0 = inlined_call_operand.vmem [shape: f32[2,8,4], index: 0, kind: input, shape index: {}]
  %s1 = inlined_call_operand.vmem [shape: f32[4,64], index: 1, kind: input, shape index: {}]
  %s2 = inlined_call_operand.vmem [shape: f32[1,64], index: 2, kind: input, shape index: {}]
  %s3 = inlined_call_operand.vmem [shape: bf16[5,64,32], index: 3, kind: input, shape index: {}]
  %s4 = inlined_call_operand.vmem [shape: f32[5,1,32], index: 4, kind: input, shape index: {}]
  %s5 = inlined_call_operand.vmem [shape: bf16[5,32,32], index: 5, kind: input, shape index: {}]
  %s6 = inlined_call_operand.vmem [shape: f32[5,1,32], index: 6, kind: input, shape index: {}]
  %s7 = inlined_call_operand.vmem [shape: bf16[5,64,32], index: 7, kind: input, shape index: {}]
  %s8 = inlined_call_operand.vmem [shape: bf16[32,128], index: 8, kind: input, shape index: {}]
  %s9 = inlined_call_operand.vmem [shape: f32[1,128], index: 9, kind: input, shape index: {}]
  %s10 = inlined_call_operand.hbm [shape: f32[1,2,128], index: 10, kind: output, shape index: {}]
  %s11 = sld [smem:[#allocation0]]
  $region50: #{tpu_custom_call.1} parent=0
    _
  %s13 = ssub.s32 1, %s11
  %s14 = scalar_select 0, %s13, %s11
  $region1: #{tpu_custom_call.1} parent=0
    #allocation2 [shape = 'u8[1024]{0}', space=vmem, size = 0x400, scoped, tag = 'output window, operand 0, single buffered']
    #allocation3 [shape = 's32[1]{0}', space=sflag, size = 0x4, scoped, tag = 'scoped memory for tpu_custom_call.1']
    %15 = vsyncpa [#allocation3], 0
    // Predicated region
    $region2: #{tpu_custom_call.1} parent=1 // pred_check
      _
    $region3: #{tpu_custom_call.1} parent=1 // pred_check_branch
      %17 = sbr.rel (0) target = $region5
    $region4: #{tpu_custom_call.1} parent=1 // pred_region
      _
    $region5: #{tpu_custom_call.1} parent=1 // pred_fallthru
      _
    // Predicated region
    $region6: #{tpu_custom_call.1} parent=1 // pred_check
      _
    $region7: #{tpu_custom_call.1} parent=1 // pred_check_branch
      %19 = sbr.rel (0) target = $region9
    $region8: #{tpu_custom_call.1} parent=1 // pred_region
      _
    $region9: #{tpu_custom_call.1} parent=1 // pred_fallthru
      _
    // Predicated region
    $region10: #{tpu_custom_call.1} parent=1 // pred_check
      _
    $region11: #{tpu_custom_call.1} parent=1 // pred_check_branch
      %21 = sbr.rel (0) target = $region13
    $region12: #{tpu_custom_call.1} parent=1 // pred_region
      _
    $region13: #{tpu_custom_call.1} parent=1 // pred_fallthru
      _
    // Predicated region
    $region14: #{tpu_custom_call.1} parent=1 // pred_check
      _
    $region15: #{tpu_custom_call.1} parent=1 // pred_check_branch
      %23 = sbr.rel (0) target = $region17
    $region16: #{tpu_custom_call.1} parent=1 // pred_region
      _
    $region17: #{tpu_custom_call.1} parent=1 // pred_fallthru
      _
    // Predicated region
    $region18: #{tpu_custom_call.1} parent=1 // pred_check
      _
    $region19: #{tpu_custom_call.1} parent=1 // pred_check_branch
      %25 = sbr.rel (0) target = $region21
    $region20: #{tpu_custom_call.1} parent=1 // pred_region
      _
    $region21: #{tpu_custom_call.1} parent=1 // pred_fallthru
      _
    // Predicated region
    $region22: #{tpu_custom_call.1} parent=1 // pred_check
      _
    $region23: #{tpu_custom_call.1} parent=1 // pred_check_branch
      %27 = sbr.rel (0) target = $region25
    $region24: #{tpu_custom_call.1} parent=1 // pred_region
      _
    $region25: #{tpu_custom_call.1} parent=1 // pred_fallthru
      _
    // Predicated region
    $region26: #{tpu_custom_call.1} parent=1 // pred_check
      _
    $region27: #{tpu_custom_call.1} parent=1 // pred_check_branch
      %29 = sbr.rel (0) target = $region29
    $region28: #{tpu_custom_call.1} parent=1 // pred_region
      _
    $region29: #{tpu_custom_call.1} parent=1 // pred_fallthru
      _
    // Predicated region
    $region30: #{tpu_custom_call.1} parent=1 // pred_check
      _
    $region31: #{tpu_custom_call.1} parent=1 // pred_check_branch
      %31 = sbr.rel (0) target = $region33
    $region32: #{tpu_custom_call.1} parent=1 // pred_region
      _
    $region33: #{tpu_custom_call.1} parent=1 // pred_fallthru
      _
    // Predicated region
    $region34: #{tpu_custom_call.1} parent=1 // pred_check
      _
    $region35: #{tpu_custom_call.1} parent=1 // pred_check_branch
      %33 = sbr.rel (0) target = $region37
    $region36: #{tpu_custom_call.1} parent=1 // pred_region
      _
    $region37: #{tpu_custom_call.1} parent=1 // pred_fallthru
      _
    // Predicated region
    $region38: #{tpu_custom_call.1} parent=1 // pred_check
      _
    $region39: #{tpu_custom_call.1} parent=1 // pred_check_branch
      %35 = sbr.rel (0) target = $region41
    $region40: #{tpu_custom_call.1} parent=1 // pred_region
      _
    $region41: #{tpu_custom_call.1} parent=1 // pred_fallthru
      _
    %v37 = vld [vmem:[%s0] sm:$0xff]
    %v38 = vld [vmem:[%s0 + $0x8] sm:$0xff]
    %v39 = vld [vmem:[%s1] sm:$0x1]
    %41 = vset.pattern.permute.xlu0 0
    %42 = vperm.xlu0 %41, %v37
    %v43 = vpop.permute.xlu0 %42
    %46 = vset.pattern.permute.xlu0 0
    %47 = vperm.xlu0 %46, %v38
    %v48 = vpop.permute.xlu0 %47
    %v50 = vlaneseq
    %v51 = vshrl.u32 %v50, 7
    %v52 = vsub.s32 0, %v51
    %v53 = vrot.slane %v39, %v52
    %v54 = vmul.f32 %v43, %v53
    %v55 = vmul.f32 %v48, %v53
    %v56 = vld [vmem:[%s1 + $0x1] sm:$0x1]
    %57 = vset.pattern.permute.xlu0 1
    %58 = vperm.xlu0 %57, %v37
    %v59 = vpop.permute.xlu0 %58
    %61 = vset.pattern.permute.xlu0 1
    %62 = vperm.xlu0 %61, %v38
    %v63 = vpop.permute.xlu0 %62
    %v65 = vlaneseq
    %v66 = vshrl.u32 %v65, 7
    %v67 = vsub.s32 0, %v66
    %v68 = vrot.slane %v56, %v67
    %v69 = vmul.f32 %v59, %v68
    %v70 = vmul.f32 %v63, %v68
    %v71 = vadd.f32 %v54, %v69
    %v72 = vadd.f32 %v55, %v70
    %v73 = vld [vmem:[%s1 + $0x2] sm:$0x1]
    %74 = vset.pattern.permute.xlu0 2
    %75 = vperm.xlu0 %74, %v37
    %v76 = vpop.permute.xlu0 %75
    %78 = vset.pattern.permute.xlu0 2
    %79 = vperm.xlu0 %78, %v38
    %v80 = vpop.permute.xlu0 %79
    %v82 = vlaneseq
    %v83 = vshrl.u32 %v82, 7
    %v84 = vsub.s32 0, %v83
    %v85 = vrot.slane %v73, %v84
    %v86 = vmul.f32 %v76, %v85
    %v87 = vmul.f32 %v80, %v85
    %v88 = vadd.f32 %v71, %v86
    %v89 = vadd.f32 %v72, %v87
    %v90 = vld [vmem:[%s1 + $0x3] sm:$0x1]
    %91 = vset.pattern.permute.xlu0 3
    %92 = vperm.xlu0 %91, %v37
    %v93 = vpop.permute.xlu0 %92
    %95 = vset.pattern.permute.xlu0 3
    %96 = vperm.xlu0 %95, %v38
    %v97 = vpop.permute.xlu0 %96
    %v99 = vlaneseq
    %v100 = vshrl.u32 %v99, 7
    %v101 = vsub.s32 0, %v100
    %v102 = vrot.slane %v90, %v101
    %v103 = vmul.f32 %v93, %v102
    %v104 = vmul.f32 %v97, %v102
    %v105 = vadd.f32 %v88, %v103
    %v106 = vadd.f32 %v89, %v104
    %v107 = vld [vmem:[%s2] sm:$0x1]
    %v109 = vlaneseq
    %v110 = vshrl.u32 %v109, 7
    %v111 = vsub.s32 0, %v110
    %v112 = vrot.slane %v107, %v111
    %v114 = vadd.f32 %v105, %v112
    %v115 = vadd.f32 %v106, %v112
    %v116 = vpack.c.bf16 %v115, %v114
    %v117 = vmax.f32 %v114, 0.0
    %v118 = vmax.f32 %v115, 0.0
    %v119 = vpack.c.bf16 %v118, %v117
    %v120 = vld [vmem:[%s3] sm:$0xf]
    %v121 = vld [vmem:[%s3 + $0x4] sm:$0xf]
    %v122 = vld [vmem:[%s3 + $0x8] sm:$0xf]
    %v123 = vld [vmem:[%s3 + $0xc] sm:$0xf]
    %v124 = vld [vmem:[%s3 + $0x10] sm:$0xf]
    %v125 = vld [vmem:[%s3 + $0x14] sm:$0xf]
    %v126 = vld [vmem:[%s3 + $0x18] sm:$0xf]
    %v127 = vld [vmem:[%s3 + $0x1c] sm:$0xf]
    %v128 = vld [vmem:[%s4] sm:$0x1]
    %v130 = vlaneseq
    %v131 = vshrl.u32 %v130, 7
    %v132 = vsub.s32 0, %v131
    %v133 = vrot.slane %v128, %v132
    %v143 = vunpack.c.l.b16 %v120
    %v144 = vunpack.c.l.b16 %v121
    %v145 = vunpack.c.l.b16 %v122
    %v146 = vunpack.c.l.b16 %v123
    %v147 = vunpack.c.l.b16 %v124
    %v148 = vunpack.c.l.b16 %v125
    %v149 = vunpack.c.l.b16 %v126
    %v150 = vunpack.c.l.b16 %v127
    %v151 = vpack.c.b16 %v144, %v143
    %v152 = vpack.c.b16 %v146, %v145
    %v153 = vpack.c.b16 %v148, %v147
    %v154 = vpack.c.b16 %v150, %v149
    %vm159 = vcmask 523264
    %v161 = vsel %vm159, %v119, 0
    %163 = vmatprep.subr.bf16.mxu0 0
    %164 = vmatpush1.bf16.msra.mxu0 0
    %165 = vmatprep.subr.bf16.mxu0 0
    %166 = vmatpush1.bf16.msra.mxu0 0
    %167 = vmatprep.subr.bf16.mxu0 0
    %168 = vmatpush1.bf16.msra.mxu0 0
    %169 = vmatprep.subr.bf16.mxu0 0
    %170 = vmatpush1.bf16.msra.mxu0 0
    %171 = vmatprep.subr.bf16.mxu0 0
    %172 = vmatpush1.bf16.msra.mxu0 %v154
    %173 = vmatprep.subr.bf16.mxu0 0
    %174 = vmatpush1.bf16.msra.mxu0 %v153
    %175 = vmatprep.subr.bf16.mxu0 0
    %176 = vmatpush1.bf16.msra.mxu0 %v152
    %177 = vmatprep.subr.bf16.mxu0 0
    %178 = vmatpush1.bf16.msra.mxu0 %v151
    %179 = vmatprep.subr.bf16.mxu0 0
    %180 = vmatpush2.bf16.msra.mxu0 0
    %181 = vmatprep.subr.bf16.mxu0 0
    %182 = vmatpush2.bf16.msra.mxu0 0
    %183 = vmatprep.subr.bf16.mxu0 0
    %184 = vmatpush2.bf16.msra.mxu0 0
    %185 = vmatprep.subr.bf16.mxu0 0
    %186 = vmatpush2.bf16.msra.mxu0 0
    %187 = vmatprep.subr.bf16.mxu0 0
    %188 = vmatpush2.bf16.msra.mxu0 0
    %189 = vmatprep.subr.bf16.mxu0 0
    %190 = vmatpush2.bf16.msra.mxu0 0
    %191 = vmatprep.subr.bf16.mxu0 0
    %192 = vmatpush2.bf16.msra.mxu0 0
    %193 = vmatprep.subr.bf16.mxu0 0
    %194 = vmatpush2.bf16.msra.mxu0 0
    %195 = vmatprep.mubr.bf16.mxu0 0
    %196 = vmatmul.mubr.bf16.gmra.mxu0 %v161
    %v197 = vpop.f32.mrf.mxu0
    %v198 = vadd.f32 %v133, %v197
    %v199 = vpop.f32.mrf.mxu0
    %v200 = vpop.f32.mrf.mxu0
    %v201 = vadd.f32 %v133, %v200
    %v202 = vpop.f32.mrf.mxu0
    %203 = vdwg.mxu0
    %v204 = vmax.f32 %v198, 0.0
    %v205 = vmax.f32 %v201, 0.0
    %v206 = vpack.c.bf16 %v205, %v204
    %v207 = vld [vmem:[%s5] sm:$0xf]
    %v208 = vld [vmem:[%s5 + $0x4] sm:$0xf]
    %v209 = vld [vmem:[%s5 + $0x8] sm:$0xf]
    %v210 = vld [vmem:[%s5 + $0xc] sm:$0xf]
    %v215 = vunpack.c.l.b16 %v207
    %v216 = vunpack.c.l.b16 %v208
    %v217 = vunpack.c.l.b16 %v209
    %v218 = vunpack.c.l.b16 %v210
    %v219 = vpack.c.b16 %v216, %v215
    %v220 = vpack.c.b16 %v218, %v217
    %vm223 = vcmask 261120
    %v225 = vsel %vm223, %v206, 0
    %227 = vmatprep.subr.bf16.mxu0 0
    %228 = vmatpush1.bf16.msra.mxu0 0
    %229 = vmatprep.subr.bf16.mxu0 0
    %230 = vmatpush1.bf16.msra.mxu0 0
    %231 = vmatprep.subr.bf16.mxu0 0
    %232 = vmatpush1.bf16.msra.mxu0 0
    %233 = vmatprep.subr.bf16.mxu0 0
    %234 = vmatpush1.bf16.msra.mxu0 0
    %235 = vmatprep.subr.bf16.mxu0 0
    %236 = vmatpush1.bf16.msra.mxu0 0
    %237 = vmatprep.subr.bf16.mxu0 0
    %238 = vmatpush1.bf16.msra.mxu0 0
    %239 = vmatprep.subr.bf16.mxu0 0
    %240 = vmatpush1.bf16.msra.mxu0 %v220
    %241 = vmatprep.subr.bf16.mxu0 0
    %242 = vmatpush1.bf16.msra.mxu0 %v219
    %243 = vmatprep.subr.bf16.mxu0 0
    %244 = vmatpush2.bf16.msra.mxu0 0
    %245 = vmatprep.subr.bf16.mxu0 0
    %246 = vmatpush2.bf16.msra.mxu0 0
    %247 = vmatprep.subr.bf16.mxu0 0
    %248 = vmatpush2.bf16.msra.mxu0 0
    %249 = vmatprep.subr.bf16.mxu0 0
    %250 = vmatpush2.bf16.msra.mxu0 0
    %251 = vmatprep.subr.bf16.mxu0 0
    %252 = vmatpush2.bf16.msra.mxu0 0
    %253 = vmatprep.subr.bf16.mxu0 0
    %254 = vmatpush2.bf16.msra.mxu0 0
    %255 = vmatprep.subr.bf16.mxu0 0
    %256 = vmatpush2.bf16.msra.mxu0 0
    %257 = vmatprep.subr.bf16.mxu0 0
    %258 = vmatpush2.bf16.msra.mxu0 0
    %259 = vmatprep.mubr.bf16.mxu0 0
    %260 = vmatmul.mubr.bf16.gmra.mxu0 %v225
    %v261 = vpop.f32.mrf.mxu0
    %v262 = vadd.f32 0.0, %v261
    %v263 = vpop.f32.mrf.mxu0
    %v264 = vpop.f32.mrf.mxu0
    %v265 = vadd.f32 0.0, %v264
    %v266 = vpop.f32.mrf.mxu0
    %267 = vdwg.mxu0
    %v268 = vld [vmem:[%s7] sm:$0xf]
    %v269 = vld [vmem:[%s7 + $0x4] sm:$0xf]
    %v270 = vld [vmem:[%s7 + $0x8] sm:$0xf]
    %v271 = vld [vmem:[%s7 + $0xc] sm:$0xf]
    %v272 = vld [vmem:[%s7 + $0x10] sm:$0xf]
    %v273 = vld [vmem:[%s7 + $0x14] sm:$0xf]
    %v274 = vld [vmem:[%s7 + $0x18] sm:$0xf]
    %v275 = vld [vmem:[%s7 + $0x1c] sm:$0xf]
    %v284 = vunpack.c.l.b16 %v268
    %v285 = vunpack.c.l.b16 %v269
    %v286 = vunpack.c.l.b16 %v270
    %v287 = vunpack.c.l.b16 %v271
    %v288 = vunpack.c.l.b16 %v272
    %v289 = vunpack.c.l.b16 %v273
    %v290 = vunpack.c.l.b16 %v274
    %v291 = vunpack.c.l.b16 %v275
    %v292 = vpack.c.b16 %v285, %v284
    %v293 = vpack.c.b16 %v287, %v286
    %v294 = vpack.c.b16 %v289, %v288
    %v295 = vpack.c.b16 %v291, %v290
    %v301 = vsel %vm159, %v116, 0
    %303 = vmatprep.subr.bf16.mxu0 0
    %304 = vmatpush1.bf16.msra.mxu0 0
    %305 = vmatprep.subr.bf16.mxu0 0
    %306 = vmatpush1.bf16.msra.mxu0 0
    %307 = vmatprep.subr.bf16.mxu0 0
    %308 = vmatpush1.bf16.msra.mxu0 0
    %309 = vmatprep.subr.bf16.mxu0 0
    %310 = vmatpush1.bf16.msra.mxu0 0
    %311 = vmatprep.subr.bf16.mxu0 0
    %312 = vmatpush1.bf16.msra.mxu0 %v295
    %313 = vmatprep.subr.bf16.mxu0 0
    %314 = vmatpush1.bf16.msra.mxu0 %v294
    %315 = vmatprep.subr.bf16.mxu0 0
    %316 = vmatpush1.bf16.msra.mxu0 %v293
    %317 = vmatprep.subr.bf16.mxu0 0
    %318 = vmatpush1.bf16.msra.mxu0 %v292
    %319 = vmatprep.subr.bf16.mxu0 0
    %320 = vmatpush2.bf16.msra.mxu0 0
    %321 = vmatprep.subr.bf16.mxu0 0
    %322 = vmatpush2.bf16.msra.mxu0 0
    %323 = vmatprep.subr.bf16.mxu0 0
    %324 = vmatpush2.bf16.msra.mxu0 0
    %325 = vmatprep.subr.bf16.mxu0 0
    %326 = vmatpush2.bf16.msra.mxu0 0
    %327 = vmatprep.subr.bf16.mxu0 0
    %328 = vmatpush2.bf16.msra.mxu0 0
    %329 = vmatprep.subr.bf16.mxu0 0
    %330 = vmatpush2.bf16.msra.mxu0 0
    %331 = vmatprep.subr.bf16.mxu0 0
    %332 = vmatpush2.bf16.msra.mxu0 0
    %333 = vmatprep.subr.bf16.mxu0 0
    %334 = vmatpush2.bf16.msra.mxu0 0
    %335 = vmatprep.mubr.bf16.mxu0 0
    %336 = vmatmul.mubr.bf16.gmra.mxu0 %v301
    %v337 = vpop.f32.mrf.mxu0
    %v338 = vadd.f32 %v262, %v337
    %v339 = vpop.f32.mrf.mxu0
    %v340 = vpop.f32.mrf.mxu0
    %v341 = vadd.f32 %v265, %v340
    %v342 = vpop.f32.mrf.mxu0
    %343 = vdwg.mxu0
    %v344 = vld [vmem:[%s6] sm:$0x1]
    %v346 = vlaneseq
    %v347 = vshrl.u32 %v346, 7
    %v348 = vsub.s32 0, %v347
    %v349 = vrot.slane %v344, %v348
    %v351 = vadd.f32 %v338, %v349
    %v352 = vadd.f32 %v341, %v349
    %v353 = vsel %vm223, %v351, -inf
    %v354 = vrot.slane %v353, 4
    %v355 = vmax.f32 %v353, %v354
    %v356 = vrot.slane %v355, 2
    %v357 = vmax.f32 %v355, %v356
    %v358 = vrot.slane %v357, 1
    %v359 = vmax.f32 %v357, %v358
    %v360 = vsel %vm223, %v352, -inf
    %v361 = vrot.slane %v360, 4
    %v362 = vmax.f32 %v360, %v361
    %v363 = vrot.slane %v362, 2
    %v364 = vmax.f32 %v362, %v363
    %v365 = vrot.slane %v364, 1
    %v366 = vmax.f32 %v364, %v365
    %v367 = vpack.c.bf16 %v352, %v351
    %v368 = vmax.f32 %v351, 0.0
    %v369 = vmax.f32 %v352, 0.0
    %v370 = vpack.c.bf16 %v369, %v368
    %v371 = vpack.c.bf16 %v359, %v359
    %v372 = vpack.c.bf16 %v366, %v366
    %v373 = vmax.bf16 %v371, 0
    %v374 = vmax.bf16 %v372, 0
    %s375 = scalar_lea.vmem %s3, 32
    %v376 = vld [vmem:[%s375] sm:$0xf]
    %v377 = vld [vmem:[%s375 + $0x4] sm:$0xf]
    %v378 = vld [vmem:[%s375 + $0x8] sm:$0xf]
    %v379 = vld [vmem:[%s375 + $0xc] sm:$0xf]
    %v380 = vld [vmem:[%s375 + $0x10] sm:$0xf]
    %v381 = vld [vmem:[%s375 + $0x14] sm:$0xf]
    %v382 = vld [vmem:[%s375 + $0x18] sm:$0xf]
    %v383 = vld [vmem:[%s375 + $0x1c] sm:$0xf]
    %s384 = scalar_lea.vmem %s7, 32
    %v385 = vld [vmem:[%s384] sm:$0xf]
    %v386 = vld [vmem:[%s384 + $0x4] sm:$0xf]
    %v387 = vld [vmem:[%s384 + $0x8] sm:$0xf]
    %v388 = vld [vmem:[%s384 + $0xc] sm:$0xf]
    %v389 = vld [vmem:[%s384 + $0x10] sm:$0xf]
    %v390 = vld [vmem:[%s384 + $0x14] sm:$0xf]
    %v391 = vld [vmem:[%s384 + $0x18] sm:$0xf]
    %v392 = vld [vmem:[%s384 + $0x1c] sm:$0xf]
    %s393 = scalar_lea.vmem %s4, 1
    %v394 = vld [vmem:[%s393] sm:$0x1]
    %v396 = vlaneseq
    %v397 = vshrl.u32 %v396, 7
    %v398 = vsub.s32 0, %v397
    %v399 = vrot.slane %v394, %v398
    %v403 = vunpack.c.l.b16 %v373
    %v404 = vunpack.c.l.b16 %v374
    %vm405 = vcmask 1041409
    %v406 = vsel %vm405, %v404, %v403
    %v407 = vpack.c.b16 %v406, %v406
    %v412 = vunpack.c.l.b16 %v380
    %v413 = vunpack.c.l.b16 %v381
    %v414 = vunpack.c.l.b16 %v382
    %v415 = vunpack.c.l.b16 %v383
    %v416 = vpack.c.b16 %v413, %v412
    %v417 = vpack.c.b16 %v415, %v414
    %v421 = vsel %vm223, %v407, 0
    %423 = vmatprep.subr.bf16.mxu0 0
    %424 = vmatpush1.bf16.msra.mxu0 0
    %425 = vmatprep.subr.bf16.mxu0 0
    %426 = vmatpush1.bf16.msra.mxu0 0
    %427 = vmatprep.subr.bf16.mxu0 0
    %428 = vmatpush1.bf16.msra.mxu0 0
    %429 = vmatprep.subr.bf16.mxu0 0
    %430 = vmatpush1.bf16.msra.mxu0 0
    %431 = vmatprep.subr.bf16.mxu0 0
    %432 = vmatpush1.bf16.msra.mxu0 0
    %433 = vmatprep.subr.bf16.mxu0 0
    %434 = vmatpush1.bf16.msra.mxu0 0
    %435 = vmatprep.subr.bf16.mxu0 0
    %436 = vmatpush1.bf16.msra.mxu0 %v417
    %437 = vmatprep.subr.bf16.mxu0 0
    %438 = vmatpush1.bf16.msra.mxu0 %v416
    %439 = vmatprep.subr.bf16.mxu0 0
    %440 = vmatpush2.bf16.msra.mxu0 0
    %441 = vmatprep.subr.bf16.mxu0 0
    %442 = vmatpush2.bf16.msra.mxu0 0
    %443 = vmatprep.subr.bf16.mxu0 0
    %444 = vmatpush2.bf16.msra.mxu0 0
    %445 = vmatprep.subr.bf16.mxu0 0
    %446 = vmatpush2.bf16.msra.mxu0 0
    %447 = vmatprep.subr.bf16.mxu0 0
    %448 = vmatpush2.bf16.msra.mxu0 0
    %449 = vmatprep.subr.bf16.mxu0 0
    %450 = vmatpush2.bf16.msra.mxu0 0
    %451 = vmatprep.subr.bf16.mxu0 0
    %452 = vmatpush2.bf16.msra.mxu0 0
    %453 = vmatprep.subr.bf16.mxu0 0
    %454 = vmatpush2.bf16.msra.mxu0 0
    %455 = vmatprep.mubr.bf16.mxu0 0
    %456 = vmatmul.mubr.bf16.gmra.mxu0 %v421
    %v457 = vpop.f32.mrf.mxu0
    %v458 = vadd.f32 %v399, %v457
    %v459 = vpop.f32.mrf.mxu0
    %v460 = vpop.f32.mrf.mxu0
    %v461 = vpop.f32.mrf.mxu0
    %462 = vdwg.mxu0
    %v467 = vunpack.c.l.b16 %v376
    %v468 = vunpack.c.l.b16 %v377
    %v469 = vunpack.c.l.b16 %v378
    %v470 = vunpack.c.l.b16 %v379
    %v471 = vpack.c.b16 %v468, %v467
    %v472 = vpack.c.b16 %v470, %v469
    %v476 = vsel %vm223, %v370, 0
    %478 = vmatprep.subr.bf16.mxu0 0
    %479 = vmatpush1.bf16.msra.mxu0 0
    %480 = vmatprep.subr.bf16.mxu0 0
    %481 = vmatpush1.bf16.msra.mxu0 0
    %482 = vmatprep.subr.bf16.mxu0 0
    %483 = vmatpush1.bf16.msra.mxu0 0
    %484 = vmatprep.subr.bf16.mxu0 0
    %485 = vmatpush1.bf16.msra.mxu0 0
    %486 = vmatprep.subr.bf16.mxu0 0
    %487 = vmatpush1.bf16.msra.mxu0 0
    %488 = vmatprep.subr.bf16.mxu0 0
    %489 = vmatpush1.bf16.msra.mxu0 0
    %490 = vmatprep.subr.bf16.mxu0 0
    %491 = vmatpush1.bf16.msra.mxu0 %v472
    %492 = vmatprep.subr.bf16.mxu0 0
    %493 = vmatpush1.bf16.msra.mxu0 %v471
    %494 = vmatprep.subr.bf16.mxu0 0
    %495 = vmatpush2.bf16.msra.mxu0 0
    %496 = vmatprep.subr.bf16.mxu0 0
    %497 = vmatpush2.bf16.msra.mxu0 0
    %498 = vmatprep.subr.bf16.mxu0 0
    %499 = vmatpush2.bf16.msra.mxu0 0
    %500 = vmatprep.subr.bf16.mxu0 0
    %501 = vmatpush2.bf16.msra.mxu0 0
    %502 = vmatprep.subr.bf16.mxu0 0
    %503 = vmatpush2.bf16.msra.mxu0 0
    %504 = vmatprep.subr.bf16.mxu0 0
    %505 = vmatpush2.bf16.msra.mxu0 0
    %506 = vmatprep.subr.bf16.mxu0 0
    %507 = vmatpush2.bf16.msra.mxu0 0
    %508 = vmatprep.subr.bf16.mxu0 0
    %509 = vmatpush2.bf16.msra.mxu0 0
    %510 = vmatprep.mubr.bf16.mxu0 0
    %511 = vmatmul.mubr.bf16.gmra.mxu0 %v476
    %v512 = vpop.f32.mrf.mxu0
    %v513 = vadd.f32 0.0, %v512
    %v514 = vpop.f32.mrf.mxu0
    %v515 = vpop.f32.mrf.mxu0
    %v516 = vadd.f32 0.0, %v515
    %v517 = vpop.f32.mrf.mxu0
    %518 = vdwg.mxu0
    %v521 = vunpack.c.l.s4 1966171168
    %v522 = vunpack.c.0.s8 %v521
    %v523 = vlaneseq
    %v524 = vshrl.u32 %v523, 7
    %v525 = vsub.s32 %v522, %v524
    %v526 = vrot.slane %v458, %v525
    %v527 = vcombine.high %v526, %v526
    %v529 = vunpack.c.l.s4 1966171168
    %v530 = vunpack.c.0.s8 %v529
    %v531 = vlaneseq
    %v532 = vshrl.u32 %v531, 7
    %v533 = vsub.s32 %v530, %v532
    %v534 = vrot.slane %v526, %v533
    %v536 = vunpack.c.l.s4 1966171168
    %v537 = vunpack.c.0.s8 %v536
    %v538 = vlaneseq
    %v539 = vshrl.u32 %v538, 7
    %v540 = vsub.s32 %v537, %v539
    %v541 = vrot.slane %v527, %v540
    %v542 = vlaneseq
    %v543 = vshrl.u32 %v542, 7
    %v544 = vsub.s32 0, %v543
    %v545 = vrot.slane %v534, %v544
    %v546 = vlaneseq
    %v547 = vshrl.u32 %v546, 7
    %v548 = vsub.s32 0, %v547
    %v549 = vrot.slane %v541, %v548
    %v552 = vadd.f32 %v513, %v545
    %v553 = vadd.f32 %v516, %v549
    %v554 = vmax.f32 %v552, 0.0
    %v555 = vmax.f32 %v553, 0.0
    %v556 = vpack.c.bf16 %v554, %v554
    %v557 = vpack.c.bf16 %v555, %v555
    %s558 = scalar_lea.vmem %s5, 16
    %v559 = vld [vmem:[%s558] sm:$0xf]
    %v560 = vld [vmem:[%s558 + $0x4] sm:$0xf]
    %v561 = vld [vmem:[%s558 + $0x8] sm:$0xf]
    %v562 = vld [vmem:[%s558 + $0xc] sm:$0xf]
    %v565 = vunpack.c.l.b16 %v556
    %v566 = vunpack.c.l.b16 %v557
    %v567 = vpack.c.b16 %v566, %v565
    %v572 = vunpack.c.l.b16 %v559
    %v573 = vunpack.c.l.b16 %v560
    %v574 = vunpack.c.l.b16 %v561
    %v575 = vunpack.c.l.b16 %v562
    %v576 = vpack.c.b16 %v573, %v572
    %v577 = vpack.c.b16 %v575, %v574
    %v581 = vsel %vm223, %v567, 0
    %583 = vmatprep.subr.bf16.mxu0 0
    %584 = vmatpush1.bf16.msra.mxu0 0
    %585 = vmatprep.subr.bf16.mxu0 0
    %586 = vmatpush1.bf16.msra.mxu0 0
    %587 = vmatprep.subr.bf16.mxu0 0
    %588 = vmatpush1.bf16.msra.mxu0 0
    %589 = vmatprep.subr.bf16.mxu0 0
    %590 = vmatpush1.bf16.msra.mxu0 0
    %591 = vmatprep.subr.bf16.mxu0 0
    %592 = vmatpush1.bf16.msra.mxu0 0
    %593 = vmatprep.subr.bf16.mxu0 0
    %594 = vmatpush1.bf16.msra.mxu0 0
    %595 = vmatprep.subr.bf16.mxu0 0
    %596 = vmatpush1.bf16.msra.mxu0 %v577
    %597 = vmatprep.subr.bf16.mxu0 0
    %598 = vmatpush1.bf16.msra.mxu0 %v576
    %599 = vmatprep.subr.bf16.mxu0 0
    %600 = vmatpush2.bf16.msra.mxu0 0
    %601 = vmatprep.subr.bf16.mxu0 0
    %602 = vmatpush2.bf16.msra.mxu0 0
    %603 = vmatprep.subr.bf16.mxu0 0
    %604 = vmatpush2.bf16.msra.mxu0 0
    %605 = vmatprep.subr.bf16.mxu0 0
    %606 = vmatpush2.bf16.msra.mxu0 0
    %607 = vmatprep.subr.bf16.mxu0 0
    %608 = vmatpush2.bf16.msra.mxu0 0
    %609 = vmatprep.subr.bf16.mxu0 0
    %610 = vmatpush2.bf16.msra.mxu0 0
    %611 = vmatprep.subr.bf16.mxu0 0
    %612 = vmatpush2.bf16.msra.mxu0 0
    %613 = vmatprep.subr.bf16.mxu0 0
    %614 = vmatpush2.bf16.msra.mxu0 0
    %615 = vmatprep.mubr.bf16.mxu0 0
    %616 = vmatmul.mubr.bf16.gmra.mxu0 %v581
    %v617 = vpop.f32.mrf.mxu0
    %v618 = vadd.f32 0.0, %v617
    %v619 = vpop.f32.mrf.mxu0
    %v620 = vpop.f32.mrf.mxu0
    %v621 = vadd.f32 0.0, %v620
    %v622 = vpop.f32.mrf.mxu0
    %623 = vdwg.mxu0
    %s624 = scalar_lea.vmem %s6, 1
    %v625 = vld [vmem:[%s624] sm:$0x1]
    %v627 = vlaneseq
    %v628 = vshrl.u32 %v627, 7
    %v629 = vsub.s32 0, %v628
    %v630 = vrot.slane %v625, %v629
    %v634 = vunpack.c.l.b16 %v371
    %v635 = vunpack.c.l.b16 %v372
    %v636 = vsel %vm405, %v635, %v634
    %v637 = vpack.c.b16 %v636, %v636
    %v642 = vunpack.c.l.b16 %v389
    %v643 = vunpack.c.l.b16 %v390
    %v644 = vunpack.c.l.b16 %v391
    %v645 = vunpack.c.l.b16 %v392
    %v646 = vpack.c.b16 %v643, %v642
    %v647 = vpack.c.b16 %v645, %v644
    %v651 = vsel %vm223, %v637, 0
    %653 = vmatprep.subr.bf16.mxu0 0
    %654 = vmatpush1.bf16.msra.mxu0 0
    %655 = vmatprep.subr.bf16.mxu0 0
    %656 = vmatpush1.bf16.msra.mxu0 0
    %657 = vmatprep.subr.bf16.mxu0 0
    %658 = vmatpush1.bf16.msra.mxu0 0
    %659 = vmatprep.subr.bf16.mxu0 0
    %660 = vmatpush1.bf16.msra.mxu0 0
    %661 = vmatprep.subr.bf16.mxu0 0
    %662 = vmatpush1.bf16.msra.mxu0 0
    %663 = vmatprep.subr.bf16.mxu0 0
    %664 = vmatpush1.bf16.msra.mxu0 0
    %665 = vmatprep.subr.bf16.mxu0 0
    %666 = vmatpush1.bf16.msra.mxu0 %v647
    %667 = vmatprep.subr.bf16.mxu0 0
    %668 = vmatpush1.bf16.msra.mxu0 %v646
    %669 = vmatprep.subr.bf16.mxu0 0
    %670 = vmatpush2.bf16.msra.mxu0 0
    %671 = vmatprep.subr.bf16.mxu0 0
    %672 = vmatpush2.bf16.msra.mxu0 0
    %673 = vmatprep.subr.bf16.mxu0 0
    %674 = vmatpush2.bf16.msra.mxu0 0
    %675 = vmatprep.subr.bf16.mxu0 0
    %676 = vmatpush2.bf16.msra.mxu0 0
    %677 = vmatprep.subr.bf16.mxu0 0
    %678 = vmatpush2.bf16.msra.mxu0 0
    %679 = vmatprep.subr.bf16.mxu0 0
    %680 = vmatpush2.bf16.msra.mxu0 0
    %681 = vmatprep.subr.bf16.mxu0 0
    %682 = vmatpush2.bf16.msra.mxu0 0
    %683 = vmatprep.subr.bf16.mxu0 0
    %684 = vmatpush2.bf16.msra.mxu0 0
    %685 = vmatprep.mubr.bf16.mxu0 0
    %686 = vmatmul.mubr.bf16.gmra.mxu0 %v651
    %v687 = vpop.f32.mrf.mxu0
    %v688 = vadd.f32 %v630, %v687
    %v689 = vpop.f32.mrf.mxu0
    %v690 = vpop.f32.mrf.mxu0
    %v691 = vpop.f32.mrf.mxu0
    %692 = vdwg.mxu0
    %v697 = vunpack.c.l.b16 %v385
    %v698 = vunpack.c.l.b16 %v386
    %v699 = vunpack.c.l.b16 %v387
    %v700 = vunpack.c.l.b16 %v388
    %v701 = vpack.c.b16 %v698, %v697
    %v702 = vpack.c.b16 %v700, %v699
    %v706 = vsel %vm223, %v367, 0
    %708 = vmatprep.subr.bf16.mxu0 0
    %709 = vmatpush1.bf16.msra.mxu0 0
    %710 = vmatprep.subr.bf16.mxu0 0
    %711 = vmatpush1.bf16.msra.mxu0 0
    %712 = vmatprep.subr.bf16.mxu0 0
    %713 = vmatpush1.bf16.msra.mxu0 0
    %714 = vmatprep.subr.bf16.mxu0 0
    %715 = vmatpush1.bf16.msra.mxu0 0
    %716 = vmatprep.subr.bf16.mxu0 0
    %717 = vmatpush1.bf16.msra.mxu0 0
    %718 = vmatprep.subr.bf16.mxu0 0
    %719 = vmatpush1.bf16.msra.mxu0 0
    %720 = vmatprep.subr.bf16.mxu0 0
    %721 = vmatpush1.bf16.msra.mxu0 %v702
    %722 = vmatprep.subr.bf16.mxu0 0
    %723 = vmatpush1.bf16.msra.mxu0 %v701
    %724 = vmatprep.subr.bf16.mxu0 0
    %725 = vmatpush2.bf16.msra.mxu0 0
    %726 = vmatprep.subr.bf16.mxu0 0
    %727 = vmatpush2.bf16.msra.mxu0 0
    %728 = vmatprep.subr.bf16.mxu0 0
    %729 = vmatpush2.bf16.msra.mxu0 0
    %730 = vmatprep.subr.bf16.mxu0 0
    %731 = vmatpush2.bf16.msra.mxu0 0
    %732 = vmatprep.subr.bf16.mxu0 0
    %733 = vmatpush2.bf16.msra.mxu0 0
    %734 = vmatprep.subr.bf16.mxu0 0
    %735 = vmatpush2.bf16.msra.mxu0 0
    %736 = vmatprep.subr.bf16.mxu0 0
    %737 = vmatpush2.bf16.msra.mxu0 0
    %738 = vmatprep.subr.bf16.mxu0 0
    %739 = vmatpush2.bf16.msra.mxu0 0
    %740 = vmatprep.mubr.bf16.mxu0 0
    %741 = vmatmul.mubr.bf16.gmra.mxu0 %v706
    %v742 = vpop.f32.mrf.mxu0
    %v743 = vadd.f32 %v618, %v742
    %v744 = vpop.f32.mrf.mxu0
    %v745 = vpop.f32.mrf.mxu0
    %v746 = vadd.f32 %v621, %v745
    %v747 = vpop.f32.mrf.mxu0
    %748 = vdwg.mxu0
    %v751 = vunpack.c.l.s4 1966171168
    %v752 = vunpack.c.0.s8 %v751
    %v753 = vlaneseq
    %v754 = vshrl.u32 %v753, 7
    %v755 = vsub.s32 %v752, %v754
    %v756 = vrot.slane %v688, %v755
    %v757 = vcombine.high %v756, %v756
    %v759 = vunpack.c.l.s4 1966171168
    %v760 = vunpack.c.0.s8 %v759
    %v761 = vlaneseq
    %v762 = vshrl.u32 %v761, 7
    %v763 = vsub.s32 %v760, %v762
    %v764 = vrot.slane %v756, %v763
    %v766 = vunpack.c.l.s4 1966171168
    %v767 = vunpack.c.0.s8 %v766
    %v768 = vlaneseq
    %v769 = vshrl.u32 %v768, 7
    %v770 = vsub.s32 %v767, %v769
    %v771 = vrot.slane %v757, %v770
    %v772 = vlaneseq
    %v773 = vshrl.u32 %v772, 7
    %v774 = vsub.s32 0, %v773
    %v775 = vrot.slane %v764, %v774
    %v776 = vlaneseq
    %v777 = vshrl.u32 %v776, 7
    %v778 = vsub.s32 0, %v777
    %v779 = vrot.slane %v771, %v778
    %v782 = vadd.f32 %v743, %v775
    %v783 = vadd.f32 %v746, %v779
    %v784 = vsel %vm223, %v782, -inf
    %v785 = vrot.slane %v784, 4
    %v786 = vmax.f32 %v784, %v785
    %v787 = vrot.slane %v786, 2
    %v788 = vmax.f32 %v786, %v787
    %v789 = vrot.slane %v788, 1
    %v790 = vmax.f32 %v788, %v789
    %v791 = vsel %vm223, %v783, -inf
    %v792 = vrot.slane %v791, 4
    %v793 = vmax.f32 %v791, %v792
    %v794 = vrot.slane %v793, 2
    %v795 = vmax.f32 %v793, %v794
    %v796 = vrot.slane %v795, 1
    %v797 = vmax.f32 %v795, %v796
    %v798 = vpack.c.bf16 %v783, %v782
    %v799 = vmax.f32 %v782, 0.0
    %v800 = vmax.f32 %v783, 0.0
    %v801 = vpack.c.bf16 %v800, %v799
    %v802 = vpack.c.bf16 %v790, %v790
    %v803 = vpack.c.bf16 %v797, %v797
    %v804 = vmax.bf16 %v802, 0
    %v805 = vmax.bf16 %v803, 0
    %s806 = scalar_lea.vmem %s3, 64
    %v807 = vld [vmem:[%s806] sm:$0xf]
    %v808 = vld [vmem:[%s806 + $0x4] sm:$0xf]
    %v809 = vld [vmem:[%s806 + $0x8] sm:$0xf]
    %v810 = vld [vmem:[%s806 + $0xc] sm:$0xf]
    %v811 = vld [vmem:[%s806 + $0x10] sm:$0xf]
    %v812 = vld [vmem:[%s806 + $0x14] sm:$0xf]
    %v813 = vld [vmem:[%s806 + $0x18] sm:$0xf]
    %v814 = vld [vmem:[%s806 + $0x1c] sm:$0xf]
    %s815 = scalar_lea.vmem %s7, 64
    %v816 = vld [vmem:[%s815] sm:$0xf]
    %v817 = vld [vmem:[%s815 + $0x4] sm:$0xf]
    %v818 = vld [vmem:[%s815 + $0x8] sm:$0xf]
    %v819 = vld [vmem:[%s815 + $0xc] sm:$0xf]
    %v820 = vld [vmem:[%s815 + $0x10] sm:$0xf]
    %v821 = vld [vmem:[%s815 + $0x14] sm:$0xf]
    %v822 = vld [vmem:[%s815 + $0x18] sm:$0xf]
    %v823 = vld [vmem:[%s815 + $0x1c] sm:$0xf]
    %s824 = scalar_lea.vmem %s4, 2
    %v825 = vld [vmem:[%s824] sm:$0x1]
    %v827 = vlaneseq
    %v828 = vshrl.u32 %v827, 7
    %v829 = vsub.s32 0, %v828
    %v830 = vrot.slane %v825, %v829
    %v834 = vunpack.c.l.b16 %v804
    %v835 = vunpack.c.l.b16 %v805
    %v836 = vsel %vm405, %v835, %v834
    %v837 = vpack.c.b16 %v836, %v836
    %v842 = vunpack.c.l.b16 %v811
    %v843 = vunpack.c.l.b16 %v812
    %v844 = vunpack.c.l.b16 %v813
    %v845 = vunpack.c.l.b16 %v814
    %v846 = vpack.c.b16 %v843, %v842
    %v847 = vpack.c.b16 %v845, %v844
    %v851 = vsel %vm223, %v837, 0
    %853 = vmatprep.subr.bf16.mxu0 0
    %854 = vmatpush1.bf16.msra.mxu0 0
    %855 = vmatprep.subr.bf16.mxu0 0
    %856 = vmatpush1.bf16.msra.mxu0 0
    %857 = vmatprep.subr.bf16.mxu0 0
    %858 = vmatpush1.bf16.msra.mxu0 0
    %859 = vmatprep.subr.bf16.mxu0 0
    %860 = vmatpush1.bf16.msra.mxu0 0
    %861 = vmatprep.subr.bf16.mxu0 0
    %862 = vmatpush1.bf16.msra.mxu0 0
    %863 = vmatprep.subr.bf16.mxu0 0
    %864 = vmatpush1.bf16.msra.mxu0 0
    %865 = vmatprep.subr.bf16.mxu0 0
    %866 = vmatpush1.bf16.msra.mxu0 %v847
    %867 = vmatprep.subr.bf16.mxu0 0
    %868 = vmatpush1.bf16.msra.mxu0 %v846
    %869 = vmatprep.subr.bf16.mxu0 0
    %870 = vmatpush2.bf16.msra.mxu0 0
    %871 = vmatprep.subr.bf16.mxu0 0
    %872 = vmatpush2.bf16.msra.mxu0 0
    %873 = vmatprep.subr.bf16.mxu0 0
    %874 = vmatpush2.bf16.msra.mxu0 0
    %875 = vmatprep.subr.bf16.mxu0 0
    %876 = vmatpush2.bf16.msra.mxu0 0
    %877 = vmatprep.subr.bf16.mxu0 0
    %878 = vmatpush2.bf16.msra.mxu0 0
    %879 = vmatprep.subr.bf16.mxu0 0
    %880 = vmatpush2.bf16.msra.mxu0 0
    %881 = vmatprep.subr.bf16.mxu0 0
    %882 = vmatpush2.bf16.msra.mxu0 0
    %883 = vmatprep.subr.bf16.mxu0 0
    %884 = vmatpush2.bf16.msra.mxu0 0
    %885 = vmatprep.mubr.bf16.mxu0 0
    %886 = vmatmul.mubr.bf16.gmra.mxu0 %v851
    %v887 = vpop.f32.mrf.mxu0
    %v888 = vadd.f32 %v830, %v887
    %v889 = vpop.f32.mrf.mxu0
    %v890 = vpop.f32.mrf.mxu0
    %v891 = vpop.f32.mrf.mxu0
    %892 = vdwg.mxu0
    %v897 = vunpack.c.l.b16 %v807
    %v898 = vunpack.c.l.b16 %v808
    %v899 = vunpack.c.l.b16 %v809
    %v900 = vunpack.c.l.b16 %v810
    %v901 = vpack.c.b16 %v898, %v897
    %v902 = vpack.c.b16 %v900, %v899
    %v906 = vsel %vm223, %v801, 0
    %908 = vmatprep.subr.bf16.mxu0 0
    %909 = vmatpush1.bf16.msra.mxu0 0
    %910 = vmatprep.subr.bf16.mxu0 0
    %911 = vmatpush1.bf16.msra.mxu0 0
    %912 = vmatprep.subr.bf16.mxu0 0
    %913 = vmatpush1.bf16.msra.mxu0 0
    %914 = vmatprep.subr.bf16.mxu0 0
    %915 = vmatpush1.bf16.msra.mxu0 0
    %916 = vmatprep.subr.bf16.mxu0 0
    %917 = vmatpush1.bf16.msra.mxu0 0
    %918 = vmatprep.subr.bf16.mxu0 0
    %919 = vmatpush1.bf16.msra.mxu0 0
    %920 = vmatprep.subr.bf16.mxu0 0
    %921 = vmatpush1.bf16.msra.mxu0 %v902
    %922 = vmatprep.subr.bf16.mxu0 0
    %923 = vmatpush1.bf16.msra.mxu0 %v901
    %924 = vmatprep.subr.bf16.mxu0 0
    %925 = vmatpush2.bf16.msra.mxu0 0
    %926 = vmatprep.subr.bf16.mxu0 0
    %927 = vmatpush2.bf16.msra.mxu0 0
    %928 = vmatprep.subr.bf16.mxu0 0
    %929 = vmatpush2.bf16.msra.mxu0 0
    %930 = vmatprep.subr.bf16.mxu0 0
    %931 = vmatpush2.bf16.msra.mxu0 0
    %932 = vmatprep.subr.bf16.mxu0 0
    %933 = vmatpush2.bf16.msra.mxu0 0
    %934 = vmatprep.subr.bf16.mxu0 0
    %935 = vmatpush2.bf16.msra.mxu0 0
    %936 = vmatprep.subr.bf16.mxu0 0
    %937 = vmatpush2.bf16.msra.mxu0 0
    %938 = vmatprep.subr.bf16.mxu0 0
    %939 = vmatpush2.bf16.msra.mxu0 0
    %940 = vmatprep.mubr.bf16.mxu0 0
    %941 = vmatmul.mubr.bf16.gmra.mxu0 %v906
    %v942 = vpop.f32.mrf.mxu0
    %v943 = vadd.f32 0.0, %v942
    %v944 = vpop.f32.mrf.mxu0
    %v945 = vpop.f32.mrf.mxu0
    %v946 = vadd.f32 0.0, %v945
    %v947 = vpop.f32.mrf.mxu0
    %948 = vdwg.mxu0
    %v951 = vunpack.c.l.s4 1966171168
    %v952 = vunpack.c.0.s8 %v951
    %v953 = vlaneseq
    %v954 = vshrl.u32 %v953, 7
    %v955 = vsub.s32 %v952, %v954
    %v956 = vrot.slane %v888, %v955
    %v957 = vcombine.high %v956, %v956
    %v959 = vunpack.c.l.s4 1966171168
    %v960 = vunpack.c.0.s8 %v959
    %v961 = vlaneseq
    %v962 = vshrl.u32 %v961, 7
    %v963 = vsub.s32 %v960, %v962
    %v964 = vrot.slane %v956, %v963
    %v966 = vunpack.c.l.s4 1966171168
    %v967 = vunpack.c.0.s8 %v966
    %v968 = vlaneseq
    %v969 = vshrl.u32 %v968, 7
    %v970 = vsub.s32 %v967, %v969
    %v971 = vrot.slane %v957, %v970
    %v972 = vlaneseq
    %v973 = vshrl.u32 %v972, 7
    %v974 = vsub.s32 0, %v973
    %v975 = vrot.slane %v964, %v974
    %v976 = vlaneseq
    %v977 = vshrl.u32 %v976, 7
    %v978 = vsub.s32 0, %v977
    %v979 = vrot.slane %v971, %v978
    %v982 = vadd.f32 %v943, %v975
    %v983 = vadd.f32 %v946, %v979
    %v984 = vmax.f32 %v982, 0.0
    %v985 = vmax.f32 %v983, 0.0
    %v986 = vpack.c.bf16 %v984, %v984
    %v987 = vpack.c.bf16 %v985, %v985
    %s988 = scalar_lea.vmem %s5, 32
    %v989 = vld [vmem:[%s988] sm:$0xf]
    %v990 = vld [vmem:[%s988 + $0x4] sm:$0xf]
    %v991 = vld [vmem:[%s988 + $0x8] sm:$0xf]
    %v992 = vld [vmem:[%s988 + $0xc] sm:$0xf]
    %v995 = vunpack.c.l.b16 %v986
    %v996 = vunpack.c.l.b16 %v987
    %v997 = vpack.c.b16 %v996, %v995
    %v1002 = vunpack.c.l.b16 %v989
    %v1003 = vunpack.c.l.b16 %v990
    %v1004 = vunpack.c.l.b16 %v991
    %v1005 = vunpack.c.l.b16 %v992
    %v1006 = vpack.c.b16 %v1003, %v1002
    %v1007 = vpack.c.b16 %v1005, %v1004
    %v1011 = vsel %vm223, %v997, 0
    %1013 = vmatprep.subr.bf16.mxu0 0
    %1014 = vmatpush1.bf16.msra.mxu0 0
    %1015 = vmatprep.subr.bf16.mxu0 0
    %1016 = vmatpush1.bf16.msra.mxu0 0
    %1017 = vmatprep.subr.bf16.mxu0 0
    %1018 = vmatpush1.bf16.msra.mxu0 0
    %1019 = vmatprep.subr.bf16.mxu0 0
    %1020 = vmatpush1.bf16.msra.mxu0 0
    %1021 = vmatprep.subr.bf16.mxu0 0
    %1022 = vmatpush1.bf16.msra.mxu0 0
    %1023 = vmatprep.subr.bf16.mxu0 0
    %1024 = vmatpush1.bf16.msra.mxu0 0
    %1025 = vmatprep.subr.bf16.mxu0 0
    %1026 = vmatpush1.bf16.msra.mxu0 %v1007
    %1027 = vmatprep.subr.bf16.mxu0 0
    %1028 = vmatpush1.bf16.msra.mxu0 %v1006
    %1029 = vmatprep.subr.bf16.mxu0 0
    %1030 = vmatpush2.bf16.msra.mxu0 0
    %1031 = vmatprep.subr.bf16.mxu0 0
    %1032 = vmatpush2.bf16.msra.mxu0 0
    %1033 = vmatprep.subr.bf16.mxu0 0
    %1034 = vmatpush2.bf16.msra.mxu0 0
    %1035 = vmatprep.subr.bf16.mxu0 0
    %1036 = vmatpush2.bf16.msra.mxu0 0
    %1037 = vmatprep.subr.bf16.mxu0 0
    %1038 = vmatpush2.bf16.msra.mxu0 0
    %1039 = vmatprep.subr.bf16.mxu0 0
    %1040 = vmatpush2.bf16.msra.mxu0 0
    %1041 = vmatprep.subr.bf16.mxu0 0
    %1042 = vmatpush2.bf16.msra.mxu0 0
    %1043 = vmatprep.subr.bf16.mxu0 0
    %1044 = vmatpush2.bf16.msra.mxu0 0
    %1045 = vmatprep.mubr.bf16.mxu0 0
    %1046 = vmatmul.mubr.bf16.gmra.mxu0 %v1011
    %v1047 = vpop.f32.mrf.mxu0
    %v1048 = vadd.f32 0.0, %v1047
    %v1049 = vpop.f32.mrf.mxu0
    %v1050 = vpop.f32.mrf.mxu0
    %v1051 = vadd.f32 0.0, %v1050
    %v1052 = vpop.f32.mrf.mxu0
    %1053 = vdwg.mxu0
    %s1054 = scalar_lea.vmem %s6, 2
    %v1055 = vld [vmem:[%s1054] sm:$0x1]
    %v1057 = vlaneseq
    %v1058 = vshrl.u32 %v1057, 7
    %v1059 = vsub.s32 0, %v1058
    %v1060 = vrot.slane %v1055, %v1059
    %v1064 = vunpack.c.l.b16 %v802
    %v1065 = vunpack.c.l.b16 %v803
    %v1066 = vsel %vm405, %v1065, %v1064
    %v1067 = vpack.c.b16 %v1066, %v1066
    %v1072 = vunpack.c.l.b16 %v820
    %v1073 = vunpack.c.l.b16 %v821
    %v1074 = vunpack.c.l.b16 %v822
    %v1075 = vunpack.c.l.b16 %v823
    %v1076 = vpack.c.b16 %v1073, %v1072
    %v1077 = vpack.c.b16 %v1075, %v1074
    %v1081 = vsel %vm223, %v1067, 0
    %1083 = vmatprep.subr.bf16.mxu0 0
    %1084 = vmatpush1.bf16.msra.mxu0 0
    %1085 = vmatprep.subr.bf16.mxu0 0
    %1086 = vmatpush1.bf16.msra.mxu0 0
    %1087 = vmatprep.subr.bf16.mxu0 0
    %1088 = vmatpush1.bf16.msra.mxu0 0
    %1089 = vmatprep.subr.bf16.mxu0 0
    %1090 = vmatpush1.bf16.msra.mxu0 0
    %1091 = vmatprep.subr.bf16.mxu0 0
    %1092 = vmatpush1.bf16.msra.mxu0 0
    %1093 = vmatprep.subr.bf16.mxu0 0
    %1094 = vmatpush1.bf16.msra.mxu0 0
    %1095 = vmatprep.subr.bf16.mxu0 0
    %1096 = vmatpush1.bf16.msra.mxu0 %v1077
    %1097 = vmatprep.subr.bf16.mxu0 0
    %1098 = vmatpush1.bf16.msra.mxu0 %v1076
    %1099 = vmatprep.subr.bf16.mxu0 0
    %1100 = vmatpush2.bf16.msra.mxu0 0
    %1101 = vmatprep.subr.bf16.mxu0 0
    %1102 = vmatpush2.bf16.msra.mxu0 0
    %1103 = vmatprep.subr.bf16.mxu0 0
    %1104 = vmatpush2.bf16.msra.mxu0 0
    %1105 = vmatprep.subr.bf16.mxu0 0
    %1106 = vmatpush2.bf16.msra.mxu0 0
    %1107 = vmatprep.subr.bf16.mxu0 0
    %1108 = vmatpush2.bf16.msra.mxu0 0
    %1109 = vmatprep.subr.bf16.mxu0 0
    %1110 = vmatpush2.bf16.msra.mxu0 0
    %1111 = vmatprep.subr.bf16.mxu0 0
    %1112 = vmatpush2.bf16.msra.mxu0 0
    %1113 = vmatprep.subr.bf16.mxu0 0
    %1114 = vmatpush2.bf16.msra.mxu0 0
    %1115 = vmatprep.mubr.bf16.mxu0 0
    %1116 = vmatmul.mubr.bf16.gmra.mxu0 %v1081
    %v1117 = vpop.f32.mrf.mxu0
    %v1118 = vadd.f32 %v1060, %v1117
    %v1119 = vpop.f32.mrf.mxu0
    %v1120 = vpop.f32.mrf.mxu0
    %v1121 = vpop.f32.mrf.mxu0
    %1122 = vdwg.mxu0
    %v1127 = vunpack.c.l.b16 %v816
    %v1128 = vunpack.c.l.b16 %v817
    %v1129 = vunpack.c.l.b16 %v818
    %v1130 = vunpack.c.l.b16 %v819
    %v1131 = vpack.c.b16 %v1128, %v1127
    %v1132 = vpack.c.b16 %v1130, %v1129
    %v1136 = vsel %vm223, %v798, 0
    %1138 = vmatprep.subr.bf16.mxu0 0
    %1139 = vmatpush1.bf16.msra.mxu0 0
    %1140 = vmatprep.subr.bf16.mxu0 0
    %1141 = vmatpush1.bf16.msra.mxu0 0
    %1142 = vmatprep.subr.bf16.mxu0 0
    %1143 = vmatpush1.bf16.msra.mxu0 0
    %1144 = vmatprep.subr.bf16.mxu0 0
    %1145 = vmatpush1.bf16.msra.mxu0 0
    %1146 = vmatprep.subr.bf16.mxu0 0
    %1147 = vmatpush1.bf16.msra.mxu0 0
    %1148 = vmatprep.subr.bf16.mxu0 0
    %1149 = vmatpush1.bf16.msra.mxu0 0
    %1150 = vmatprep.subr.bf16.mxu0 0
    %1151 = vmatpush1.bf16.msra.mxu0 %v1132
    %1152 = vmatprep.subr.bf16.mxu0 0
    %1153 = vmatpush1.bf16.msra.mxu0 %v1131
    %1154 = vmatprep.subr.bf16.mxu0 0
    %1155 = vmatpush2.bf16.msra.mxu0 0
    %1156 = vmatprep.subr.bf16.mxu0 0
    %1157 = vmatpush2.bf16.msra.mxu0 0
    %1158 = vmatprep.subr.bf16.mxu0 0
    %1159 = vmatpush2.bf16.msra.mxu0 0
    %1160 = vmatprep.subr.bf16.mxu0 0
    %1161 = vmatpush2.bf16.msra.mxu0 0
    %1162 = vmatprep.subr.bf16.mxu0 0
    %1163 = vmatpush2.bf16.msra.mxu0 0
    %1164 = vmatprep.subr.bf16.mxu0 0
    %1165 = vmatpush2.bf16.msra.mxu0 0
    %1166 = vmatprep.subr.bf16.mxu0 0
    %1167 = vmatpush2.bf16.msra.mxu0 0
    %1168 = vmatprep.subr.bf16.mxu0 0
    %1169 = vmatpush2.bf16.msra.mxu0 0
    %1170 = vmatprep.mubr.bf16.mxu0 0
    %1171 = vmatmul.mubr.bf16.gmra.mxu0 %v1136
    %v1172 = vpop.f32.mrf.mxu0
    %v1173 = vadd.f32 %v1048, %v1172
    %v1174 = vpop.f32.mrf.mxu0
    %v1175 = vpop.f32.mrf.mxu0
    %v1176 = vadd.f32 %v1051, %v1175
    %v1177 = vpop.f32.mrf.mxu0
    %1178 = vdwg.mxu0
    %v1181 = vunpack.c.l.s4 1966171168
    %v1182 = vunpack.c.0.s8 %v1181
    %v1183 = vlaneseq
    %v1184 = vshrl.u32 %v1183, 7
    %v1185 = vsub.s32 %v1182, %v1184
    %v1186 = vrot.slane %v1118, %v1185
    %v1187 = vcombine.high %v1186, %v1186
    %v1189 = vunpack.c.l.s4 1966171168
    %v1190 = vunpack.c.0.s8 %v1189
    %v1191 = vlaneseq
    %v1192 = vshrl.u32 %v1191, 7
    %v1193 = vsub.s32 %v1190, %v1192
    %v1194 = vrot.slane %v1186, %v1193
    %v1196 = vunpack.c.l.s4 1966171168
    %v1197 = vunpack.c.0.s8 %v1196
    %v1198 = vlaneseq
    %v1199 = vshrl.u32 %v1198, 7
    %v1200 = vsub.s32 %v1197, %v1199
    %v1201 = vrot.slane %v1187, %v1200
    %v1202 = vlaneseq
    %v1203 = vshrl.u32 %v1202, 7
    %v1204 = vsub.s32 0, %v1203
    %v1205 = vrot.slane %v1194, %v1204
    %v1206 = vlaneseq
    %v1207 = vshrl.u32 %v1206, 7
    %v1208 = vsub.s32 0, %v1207
    %v1209 = vrot.slane %v1201, %v1208
    %v1212 = vadd.f32 %v1173, %v1205
    %v1213 = vadd.f32 %v1176, %v1209
    %v1214 = vsel %vm223, %v1212, -inf
    %v1215 = vrot.slane %v1214, 4
    %v1216 = vmax.f32 %v1214, %v1215
    %v1217 = vrot.slane %v1216, 2
    %v1218 = vmax.f32 %v1216, %v1217
    %v1219 = vrot.slane %v1218, 1
    %v1220 = vmax.f32 %v1218, %v1219
    %v1221 = vsel %vm223, %v1213, -inf
    %v1222 = vrot.slane %v1221, 4
    %v1223 = vmax.f32 %v1221, %v1222
    %v1224 = vrot.slane %v1223, 2
    %v1225 = vmax.f32 %v1223, %v1224
    %v1226 = vrot.slane %v1225, 1
    %v1227 = vmax.f32 %v1225, %v1226
    %v1228 = vpack.c.bf16 %v1213, %v1212
    %v1229 = vmax.f32 %v1212, 0.0
    %v1230 = vmax.f32 %v1213, 0.0
    %v1231 = vpack.c.bf16 %v1230, %v1229
    %v1232 = vpack.c.bf16 %v1220, %v1220
    %v1233 = vpack.c.bf16 %v1227, %v1227
    %v1234 = vmax.bf16 %v1232, 0
    %v1235 = vmax.bf16 %v1233, 0
    %s1236 = scalar_lea.vmem %s3, 96
    %v1237 = vld [vmem:[%s1236] sm:$0xf]
    %v1238 = vld [vmem:[%s1236 + $0x4] sm:$0xf]
    %v1239 = vld [vmem:[%s1236 + $0x8] sm:$0xf]
    %v1240 = vld [vmem:[%s1236 + $0xc] sm:$0xf]
    %v1241 = vld [vmem:[%s1236 + $0x10] sm:$0xf]
    %v1242 = vld [vmem:[%s1236 + $0x14] sm:$0xf]
    %v1243 = vld [vmem:[%s1236 + $0x18] sm:$0xf]
    %v1244 = vld [vmem:[%s1236 + $0x1c] sm:$0xf]
    %s1245 = scalar_lea.vmem %s7, 96
    %v1246 = vld [vmem:[%s1245] sm:$0xf]
    %v1247 = vld [vmem:[%s1245 + $0x4] sm:$0xf]
    %v1248 = vld [vmem:[%s1245 + $0x8] sm:$0xf]
    %v1249 = vld [vmem:[%s1245 + $0xc] sm:$0xf]
    %v1250 = vld [vmem:[%s1245 + $0x10] sm:$0xf]
    %v1251 = vld [vmem:[%s1245 + $0x14] sm:$0xf]
    %v1252 = vld [vmem:[%s1245 + $0x18] sm:$0xf]
    %v1253 = vld [vmem:[%s1245 + $0x1c] sm:$0xf]
    %s1254 = scalar_lea.vmem %s4, 3
    %v1255 = vld [vmem:[%s1254] sm:$0x1]
    %v1257 = vlaneseq
    %v1258 = vshrl.u32 %v1257, 7
    %v1259 = vsub.s32 0, %v1258
    %v1260 = vrot.slane %v1255, %v1259
    %v1264 = vunpack.c.l.b16 %v1234
    %v1265 = vunpack.c.l.b16 %v1235
    %v1266 = vsel %vm405, %v1265, %v1264
    %v1267 = vpack.c.b16 %v1266, %v1266
    %v1272 = vunpack.c.l.b16 %v1241
    %v1273 = vunpack.c.l.b16 %v1242
    %v1274 = vunpack.c.l.b16 %v1243
    %v1275 = vunpack.c.l.b16 %v1244
    %v1276 = vpack.c.b16 %v1273, %v1272
    %v1277 = vpack.c.b16 %v1275, %v1274
    %v1281 = vsel %vm223, %v1267, 0
    %1283 = vmatprep.subr.bf16.mxu0 0
    %1284 = vmatpush1.bf16.msra.mxu0 0
    %1285 = vmatprep.subr.bf16.mxu0 0
    %1286 = vmatpush1.bf16.msra.mxu0 0
    %1287 = vmatprep.subr.bf16.mxu0 0
    %1288 = vmatpush1.bf16.msra.mxu0 0
    %1289 = vmatprep.subr.bf16.mxu0 0
    %1290 = vmatpush1.bf16.msra.mxu0 0
    %1291 = vmatprep.subr.bf16.mxu0 0
    %1292 = vmatpush1.bf16.msra.mxu0 0
    %1293 = vmatprep.subr.bf16.mxu0 0
    %1294 = vmatpush1.bf16.msra.mxu0 0
    %1295 = vmatprep.subr.bf16.mxu0 0
    %1296 = vmatpush1.bf16.msra.mxu0 %v1277
    %1297 = vmatprep.subr.bf16.mxu0 0
    %1298 = vmatpush1.bf16.msra.mxu0 %v1276
    %1299 = vmatprep.subr.bf16.mxu0 0
    %1300 = vmatpush2.bf16.msra.mxu0 0
    %1301 = vmatprep.subr.bf16.mxu0 0
    %1302 = vmatpush2.bf16.msra.mxu0 0
    %1303 = vmatprep.subr.bf16.mxu0 0
    %1304 = vmatpush2.bf16.msra.mxu0 0
    %1305 = vmatprep.subr.bf16.mxu0 0
    %1306 = vmatpush2.bf16.msra.mxu0 0
    %1307 = vmatprep.subr.bf16.mxu0 0
    %1308 = vmatpush2.bf16.msra.mxu0 0
    %1309 = vmatprep.subr.bf16.mxu0 0
    %1310 = vmatpush2.bf16.msra.mxu0 0
    %1311 = vmatprep.subr.bf16.mxu0 0
    %1312 = vmatpush2.bf16.msra.mxu0 0
    %1313 = vmatprep.subr.bf16.mxu0 0
    %1314 = vmatpush2.bf16.msra.mxu0 0
    %1315 = vmatprep.mubr.bf16.mxu0 0
    %1316 = vmatmul.mubr.bf16.gmra.mxu0 %v1281
    %v1317 = vpop.f32.mrf.mxu0
    %v1318 = vadd.f32 %v1260, %v1317
    %v1319 = vpop.f32.mrf.mxu0
    %v1320 = vpop.f32.mrf.mxu0
    %v1321 = vpop.f32.mrf.mxu0
    %1322 = vdwg.mxu0
    %v1327 = vunpack.c.l.b16 %v1237
    %v1328 = vunpack.c.l.b16 %v1238
    %v1329 = vunpack.c.l.b16 %v1239
    %v1330 = vunpack.c.l.b16 %v1240
    %v1331 = vpack.c.b16 %v1328, %v1327
    %v1332 = vpack.c.b16 %v1330, %v1329
    %v1336 = vsel %vm223, %v1231, 0
    %1338 = vmatprep.subr.bf16.mxu0 0
    %1339 = vmatpush1.bf16.msra.mxu0 0
    %1340 = vmatprep.subr.bf16.mxu0 0
    %1341 = vmatpush1.bf16.msra.mxu0 0
    %1342 = vmatprep.subr.bf16.mxu0 0
    %1343 = vmatpush1.bf16.msra.mxu0 0
    %1344 = vmatprep.subr.bf16.mxu0 0
    %1345 = vmatpush1.bf16.msra.mxu0 0
    %1346 = vmatprep.subr.bf16.mxu0 0
    %1347 = vmatpush1.bf16.msra.mxu0 0
    %1348 = vmatprep.subr.bf16.mxu0 0
    %1349 = vmatpush1.bf16.msra.mxu0 0
    %1350 = vmatprep.subr.bf16.mxu0 0
    %1351 = vmatpush1.bf16.msra.mxu0 %v1332
    %1352 = vmatprep.subr.bf16.mxu0 0
    %1353 = vmatpush1.bf16.msra.mxu0 %v1331
    %1354 = vmatprep.subr.bf16.mxu0 0
    %1355 = vmatpush2.bf16.msra.mxu0 0
    %1356 = vmatprep.subr.bf16.mxu0 0
    %1357 = vmatpush2.bf16.msra.mxu0 0
    %1358 = vmatprep.subr.bf16.mxu0 0
    %1359 = vmatpush2.bf16.msra.mxu0 0
    %1360 = vmatprep.subr.bf16.mxu0 0
    %1361 = vmatpush2.bf16.msra.mxu0 0
    %1362 = vmatprep.subr.bf16.mxu0 0
    %1363 = vmatpush2.bf16.msra.mxu0 0
    %1364 = vmatprep.subr.bf16.mxu0 0
    %1365 = vmatpush2.bf16.msra.mxu0 0
    %1366 = vmatprep.subr.bf16.mxu0 0
    %1367 = vmatpush2.bf16.msra.mxu0 0
    %1368 = vmatprep.subr.bf16.mxu0 0
    %1369 = vmatpush2.bf16.msra.mxu0 0
    %1370 = vmatprep.mubr.bf16.mxu0 0
    %1371 = vmatmul.mubr.bf16.gmra.mxu0 %v1336
    %v1372 = vpop.f32.mrf.mxu0
    %v1373 = vadd.f32 0.0, %v1372
    %v1374 = vpop.f32.mrf.mxu0
    %v1375 = vpop.f32.mrf.mxu0
    %v1376 = vadd.f32 0.0, %v1375
    %v1377 = vpop.f32.mrf.mxu0
    %1378 = vdwg.mxu0
    %v1381 = vunpack.c.l.s4 1966171168
    %v1382 = vunpack.c.0.s8 %v1381
    %v1383 = vlaneseq
    %v1384 = vshrl.u32 %v1383, 7
    %v1385 = vsub.s32 %v1382, %v1384
    %v1386 = vrot.slane %v1318, %v1385
    %v1387 = vcombine.high %v1386, %v1386
    %v1389 = vunpack.c.l.s4 1966171168
    %v1390 = vunpack.c.0.s8 %v1389
    %v1391 = vlaneseq
    %v1392 = vshrl.u32 %v1391, 7
    %v1393 = vsub.s32 %v1390, %v1392
    %v1394 = vrot.slane %v1386, %v1393
    %v1396 = vunpack.c.l.s4 1966171168
    %v1397 = vunpack.c.0.s8 %v1396
    %v1398 = vlaneseq
    %v1399 = vshrl.u32 %v1398, 7
    %v1400 = vsub.s32 %v1397, %v1399
    %v1401 = vrot.slane %v1387, %v1400
    %v1402 = vlaneseq
    %v1403 = vshrl.u32 %v1402, 7
    %v1404 = vsub.s32 0, %v1403
    %v1405 = vrot.slane %v1394, %v1404
    %v1406 = vlaneseq
    %v1407 = vshrl.u32 %v1406, 7
    %v1408 = vsub.s32 0, %v1407
    %v1409 = vrot.slane %v1401, %v1408
    %v1412 = vadd.f32 %v1373, %v1405
    %v1413 = vadd.f32 %v1376, %v1409
    %v1414 = vmax.f32 %v1412, 0.0
    %v1415 = vmax.f32 %v1413, 0.0
    %v1416 = vpack.c.bf16 %v1414, %v1414
    %v1417 = vpack.c.bf16 %v1415, %v1415
    %s1418 = scalar_lea.vmem %s5, 48
    %v1419 = vld [vmem:[%s1418] sm:$0xf]
    %v1420 = vld [vmem:[%s1418 + $0x4] sm:$0xf]
    %v1421 = vld [vmem:[%s1418 + $0x8] sm:$0xf]
    %v1422 = vld [vmem:[%s1418 + $0xc] sm:$0xf]
    %v1425 = vunpack.c.l.b16 %v1416
    %v1426 = vunpack.c.l.b16 %v1417
    %v1427 = vpack.c.b16 %v1426, %v1425
    %v1432 = vunpack.c.l.b16 %v1419
    %v1433 = vunpack.c.l.b16 %v1420
    %v1434 = vunpack.c.l.b16 %v1421
    %v1435 = vunpack.c.l.b16 %v1422
    %v1436 = vpack.c.b16 %v1433, %v1432
    %v1437 = vpack.c.b16 %v1435, %v1434
    %v1441 = vsel %vm223, %v1427, 0
    %1443 = vmatprep.subr.bf16.mxu0 0
    %1444 = vmatpush1.bf16.msra.mxu0 0
    %1445 = vmatprep.subr.bf16.mxu0 0
    %1446 = vmatpush1.bf16.msra.mxu0 0
    %1447 = vmatprep.subr.bf16.mxu0 0
    %1448 = vmatpush1.bf16.msra.mxu0 0
    %1449 = vmatprep.subr.bf16.mxu0 0
    %1450 = vmatpush1.bf16.msra.mxu0 0
    %1451 = vmatprep.subr.bf16.mxu0 0
    %1452 = vmatpush1.bf16.msra.mxu0 0
    %1453 = vmatprep.subr.bf16.mxu0 0
    %1454 = vmatpush1.bf16.msra.mxu0 0
    %1455 = vmatprep.subr.bf16.mxu0 0
    %1456 = vmatpush1.bf16.msra.mxu0 %v1437
    %1457 = vmatprep.subr.bf16.mxu0 0
    %1458 = vmatpush1.bf16.msra.mxu0 %v1436
    %1459 = vmatprep.subr.bf16.mxu0 0
    %1460 = vmatpush2.bf16.msra.mxu0 0
    %1461 = vmatprep.subr.bf16.mxu0 0
    %1462 = vmatpush2.bf16.msra.mxu0 0
    %1463 = vmatprep.subr.bf16.mxu0 0
    %1464 = vmatpush2.bf16.msra.mxu0 0
    %1465 = vmatprep.subr.bf16.mxu0 0
    %1466 = vmatpush2.bf16.msra.mxu0 0
    %1467 = vmatprep.subr.bf16.mxu0 0
    %1468 = vmatpush2.bf16.msra.mxu0 0
    %1469 = vmatprep.subr.bf16.mxu0 0
    %1470 = vmatpush2.bf16.msra.mxu0 0
    %1471 = vmatprep.subr.bf16.mxu0 0
    %1472 = vmatpush2.bf16.msra.mxu0 0
    %1473 = vmatprep.subr.bf16.mxu0 0
    %1474 = vmatpush2.bf16.msra.mxu0 0
    %1475 = vmatprep.mubr.bf16.mxu0 0
    %1476 = vmatmul.mubr.bf16.gmra.mxu0 %v1441
    %v1477 = vpop.f32.mrf.mxu0
    %v1478 = vadd.f32 0.0, %v1477
    %v1479 = vpop.f32.mrf.mxu0
    %v1480 = vpop.f32.mrf.mxu0
    %v1481 = vadd.f32 0.0, %v1480
    %v1482 = vpop.f32.mrf.mxu0
    %1483 = vdwg.mxu0
    %s1484 = scalar_lea.vmem %s6, 3
    %v1485 = vld [vmem:[%s1484] sm:$0x1]
    %v1487 = vlaneseq
    %v1488 = vshrl.u32 %v1487, 7
    %v1489 = vsub.s32 0, %v1488
    %v1490 = vrot.slane %v1485, %v1489
    %v1494 = vunpack.c.l.b16 %v1232
    %v1495 = vunpack.c.l.b16 %v1233
    %v1496 = vsel %vm405, %v1495, %v1494
    %v1497 = vpack.c.b16 %v1496, %v1496
    %v1502 = vunpack.c.l.b16 %v1250
    %v1503 = vunpack.c.l.b16 %v1251
    %v1504 = vunpack.c.l.b16 %v1252
    %v1505 = vunpack.c.l.b16 %v1253
    %v1506 = vpack.c.b16 %v1503, %v1502
    %v1507 = vpack.c.b16 %v1505, %v1504
    %v1511 = vsel %vm223, %v1497, 0
    %1513 = vmatprep.subr.bf16.mxu0 0
    %1514 = vmatpush1.bf16.msra.mxu0 0
    %1515 = vmatprep.subr.bf16.mxu0 0
    %1516 = vmatpush1.bf16.msra.mxu0 0
    %1517 = vmatprep.subr.bf16.mxu0 0
    %1518 = vmatpush1.bf16.msra.mxu0 0
    %1519 = vmatprep.subr.bf16.mxu0 0
    %1520 = vmatpush1.bf16.msra.mxu0 0
    %1521 = vmatprep.subr.bf16.mxu0 0
    %1522 = vmatpush1.bf16.msra.mxu0 0
    %1523 = vmatprep.subr.bf16.mxu0 0
    %1524 = vmatpush1.bf16.msra.mxu0 0
    %1525 = vmatprep.subr.bf16.mxu0 0
    %1526 = vmatpush1.bf16.msra.mxu0 %v1507
    %1527 = vmatprep.subr.bf16.mxu0 0
    %1528 = vmatpush1.bf16.msra.mxu0 %v1506
    %1529 = vmatprep.subr.bf16.mxu0 0
    %1530 = vmatpush2.bf16.msra.mxu0 0
    %1531 = vmatprep.subr.bf16.mxu0 0
    %1532 = vmatpush2.bf16.msra.mxu0 0
    %1533 = vmatprep.subr.bf16.mxu0 0
    %1534 = vmatpush2.bf16.msra.mxu0 0
    %1535 = vmatprep.subr.bf16.mxu0 0
    %1536 = vmatpush2.bf16.msra.mxu0 0
    %1537 = vmatprep.subr.bf16.mxu0 0
    %1538 = vmatpush2.bf16.msra.mxu0 0
    %1539 = vmatprep.subr.bf16.mxu0 0
    %1540 = vmatpush2.bf16.msra.mxu0 0
    %1541 = vmatprep.subr.bf16.mxu0 0
    %1542 = vmatpush2.bf16.msra.mxu0 0
    %1543 = vmatprep.subr.bf16.mxu0 0
    %1544 = vmatpush2.bf16.msra.mxu0 0
    %1545 = vmatprep.mubr.bf16.mxu0 0
    %1546 = vmatmul.mubr.bf16.gmra.mxu0 %v1511
    %v1547 = vpop.f32.mrf.mxu0
    %v1548 = vadd.f32 %v1490, %v1547
    %v1549 = vpop.f32.mrf.mxu0
    %v1550 = vpop.f32.mrf.mxu0
    %v1551 = vpop.f32.mrf.mxu0
    %1552 = vdwg.mxu0
    %v1557 = vunpack.c.l.b16 %v1246
    %v1558 = vunpack.c.l.b16 %v1247
    %v1559 = vunpack.c.l.b16 %v1248
    %v1560 = vunpack.c.l.b16 %v1249
    %v1561 = vpack.c.b16 %v1558, %v1557
    %v1562 = vpack.c.b16 %v1560, %v1559
    %v1566 = vsel %vm223, %v1228, 0
    %1568 = vmatprep.subr.bf16.mxu0 0
    %1569 = vmatpush1.bf16.msra.mxu0 0
    %1570 = vmatprep.subr.bf16.mxu0 0
    %1571 = vmatpush1.bf16.msra.mxu0 0
    %1572 = vmatprep.subr.bf16.mxu0 0
    %1573 = vmatpush1.bf16.msra.mxu0 0
    %1574 = vmatprep.subr.bf16.mxu0 0
    %1575 = vmatpush1.bf16.msra.mxu0 0
    %1576 = vmatprep.subr.bf16.mxu0 0
    %1577 = vmatpush1.bf16.msra.mxu0 0
    %1578 = vmatprep.subr.bf16.mxu0 0
    %1579 = vmatpush1.bf16.msra.mxu0 0
    %1580 = vmatprep.subr.bf16.mxu0 0
    %1581 = vmatpush1.bf16.msra.mxu0 %v1562
    %1582 = vmatprep.subr.bf16.mxu0 0
    %1583 = vmatpush1.bf16.msra.mxu0 %v1561
    %1584 = vmatprep.subr.bf16.mxu0 0
    %1585 = vmatpush2.bf16.msra.mxu0 0
    %1586 = vmatprep.subr.bf16.mxu0 0
    %1587 = vmatpush2.bf16.msra.mxu0 0
    %1588 = vmatprep.subr.bf16.mxu0 0
    %1589 = vmatpush2.bf16.msra.mxu0 0
    %1590 = vmatprep.subr.bf16.mxu0 0
    %1591 = vmatpush2.bf16.msra.mxu0 0
    %1592 = vmatprep.subr.bf16.mxu0 0
    %1593 = vmatpush2.bf16.msra.mxu0 0
    %1594 = vmatprep.subr.bf16.mxu0 0
    %1595 = vmatpush2.bf16.msra.mxu0 0
    %1596 = vmatprep.subr.bf16.mxu0 0
    %1597 = vmatpush2.bf16.msra.mxu0 0
    %1598 = vmatprep.subr.bf16.mxu0 0
    %1599 = vmatpush2.bf16.msra.mxu0 0
    %1600 = vmatprep.mubr.bf16.mxu0 0
    %1601 = vmatmul.mubr.bf16.gmra.mxu0 %v1566
    %v1602 = vpop.f32.mrf.mxu0
    %v1603 = vadd.f32 %v1478, %v1602
    %v1604 = vpop.f32.mrf.mxu0
    %v1605 = vpop.f32.mrf.mxu0
    %v1606 = vadd.f32 %v1481, %v1605
    %v1607 = vpop.f32.mrf.mxu0
    %1608 = vdwg.mxu0
    %v1611 = vunpack.c.l.s4 1966171168
    %v1612 = vunpack.c.0.s8 %v1611
    %v1613 = vlaneseq
    %v1614 = vshrl.u32 %v1613, 7
    %v1615 = vsub.s32 %v1612, %v1614
    %v1616 = vrot.slane %v1548, %v1615
    %v1617 = vcombine.high %v1616, %v1616
    %v1619 = vunpack.c.l.s4 1966171168
    %v1620 = vunpack.c.0.s8 %v1619
    %v1621 = vlaneseq
    %v1622 = vshrl.u32 %v1621, 7
    %v1623 = vsub.s32 %v1620, %v1622
    %v1624 = vrot.slane %v1616, %v1623
    %v1626 = vunpack.c.l.s4 1966171168
    %v1627 = vunpack.c.0.s8 %v1626
    %v1628 = vlaneseq
    %v1629 = vshrl.u32 %v1628, 7
    %v1630 = vsub.s32 %v1627, %v1629
    %v1631 = vrot.slane %v1617, %v1630
    %v1632 = vlaneseq
    %v1633 = vshrl.u32 %v1632, 7
    %v1634 = vsub.s32 0, %v1633
    %v1635 = vrot.slane %v1624, %v1634
    %v1636 = vlaneseq
    %v1637 = vshrl.u32 %v1636, 7
    %v1638 = vsub.s32 0, %v1637
    %v1639 = vrot.slane %v1631, %v1638
    %v1642 = vadd.f32 %v1603, %v1635
    %v1643 = vadd.f32 %v1606, %v1639
    %v1644 = vsel %vm223, %v1642, -inf
    %v1645 = vrot.slane %v1644, 4
    %v1646 = vmax.f32 %v1644, %v1645
    %v1647 = vrot.slane %v1646, 2
    %v1648 = vmax.f32 %v1646, %v1647
    %v1649 = vrot.slane %v1648, 1
    %v1650 = vmax.f32 %v1648, %v1649
    %v1651 = vsel %vm223, %v1643, -inf
    %v1652 = vrot.slane %v1651, 4
    %v1653 = vmax.f32 %v1651, %v1652
    %v1654 = vrot.slane %v1653, 2
    %v1655 = vmax.f32 %v1653, %v1654
    %v1656 = vrot.slane %v1655, 1
    %v1657 = vmax.f32 %v1655, %v1656
    %v1658 = vpack.c.bf16 %v1643, %v1642
    %v1659 = vmax.f32 %v1642, 0.0
    %v1660 = vmax.f32 %v1643, 0.0
    %v1661 = vpack.c.bf16 %v1660, %v1659
    %v1662 = vpack.c.bf16 %v1650, %v1650
    %v1663 = vpack.c.bf16 %v1657, %v1657
    %v1664 = vmax.bf16 %v1662, 0
    %v1665 = vmax.bf16 %v1663, 0
    %s1666 = scalar_lea.vmem %s3, 128
    %v1667 = vld [vmem:[%s1666] sm:$0xf]
    %v1668 = vld [vmem:[%s1666 + $0x4] sm:$0xf]
    %v1669 = vld [vmem:[%s1666 + $0x8] sm:$0xf]
    %v1670 = vld [vmem:[%s1666 + $0xc] sm:$0xf]
    %v1671 = vld [vmem:[%s1666 + $0x10] sm:$0xf]
    %v1672 = vld [vmem:[%s1666 + $0x14] sm:$0xf]
    %v1673 = vld [vmem:[%s1666 + $0x18] sm:$0xf]
    %v1674 = vld [vmem:[%s1666 + $0x1c] sm:$0xf]
    %s1675 = scalar_lea.vmem %s7, 128
    %v1676 = vld [vmem:[%s1675] sm:$0xf]
    %v1677 = vld [vmem:[%s1675 + $0x4] sm:$0xf]
    %v1678 = vld [vmem:[%s1675 + $0x8] sm:$0xf]
    %v1679 = vld [vmem:[%s1675 + $0xc] sm:$0xf]
    %v1680 = vld [vmem:[%s1675 + $0x10] sm:$0xf]
    %v1681 = vld [vmem:[%s1675 + $0x14] sm:$0xf]
    %v1682 = vld [vmem:[%s1675 + $0x18] sm:$0xf]
    %v1683 = vld [vmem:[%s1675 + $0x1c] sm:$0xf]
    %s1684 = scalar_lea.vmem %s4, 4
    %v1685 = vld [vmem:[%s1684] sm:$0x1]
    %v1687 = vlaneseq
    %v1688 = vshrl.u32 %v1687, 7
    %v1689 = vsub.s32 0, %v1688
    %v1690 = vrot.slane %v1685, %v1689
    %v1694 = vunpack.c.l.b16 %v1664
    %v1695 = vunpack.c.l.b16 %v1665
    %v1696 = vsel %vm405, %v1695, %v1694
    %v1697 = vpack.c.b16 %v1696, %v1696
    %v1702 = vunpack.c.l.b16 %v1671
    %v1703 = vunpack.c.l.b16 %v1672
    %v1704 = vunpack.c.l.b16 %v1673
    %v1705 = vunpack.c.l.b16 %v1674
    %v1706 = vpack.c.b16 %v1703, %v1702
    %v1707 = vpack.c.b16 %v1705, %v1704
    %v1711 = vsel %vm223, %v1697, 0
    %1713 = vmatprep.subr.bf16.mxu0 0
    %1714 = vmatpush1.bf16.msra.mxu0 0
    %1715 = vmatprep.subr.bf16.mxu0 0
    %1716 = vmatpush1.bf16.msra.mxu0 0
    %1717 = vmatprep.subr.bf16.mxu0 0
    %1718 = vmatpush1.bf16.msra.mxu0 0
    %1719 = vmatprep.subr.bf16.mxu0 0
    %1720 = vmatpush1.bf16.msra.mxu0 0
    %1721 = vmatprep.subr.bf16.mxu0 0
    %1722 = vmatpush1.bf16.msra.mxu0 0
    %1723 = vmatprep.subr.bf16.mxu0 0
    %1724 = vmatpush1.bf16.msra.mxu0 0
    %1725 = vmatprep.subr.bf16.mxu0 0
    %1726 = vmatpush1.bf16.msra.mxu0 %v1707
    %1727 = vmatprep.subr.bf16.mxu0 0
    %1728 = vmatpush1.bf16.msra.mxu0 %v1706
    %1729 = vmatprep.subr.bf16.mxu0 0
    %1730 = vmatpush2.bf16.msra.mxu0 0
    %1731 = vmatprep.subr.bf16.mxu0 0
    %1732 = vmatpush2.bf16.msra.mxu0 0
    %1733 = vmatprep.subr.bf16.mxu0 0
    %1734 = vmatpush2.bf16.msra.mxu0 0
    %1735 = vmatprep.subr.bf16.mxu0 0
    %1736 = vmatpush2.bf16.msra.mxu0 0
    %1737 = vmatprep.subr.bf16.mxu0 0
    %1738 = vmatpush2.bf16.msra.mxu0 0
    %1739 = vmatprep.subr.bf16.mxu0 0
    %1740 = vmatpush2.bf16.msra.mxu0 0
    %1741 = vmatprep.subr.bf16.mxu0 0
    %1742 = vmatpush2.bf16.msra.mxu0 0
    %1743 = vmatprep.subr.bf16.mxu0 0
    %1744 = vmatpush2.bf16.msra.mxu0 0
    %1745 = vmatprep.mubr.bf16.mxu0 0
    %1746 = vmatmul.mubr.bf16.gmra.mxu0 %v1711
    %v1747 = vpop.f32.mrf.mxu0
    %v1748 = vadd.f32 %v1690, %v1747
    %v1749 = vpop.f32.mrf.mxu0
    %v1750 = vpop.f32.mrf.mxu0
    %v1751 = vpop.f32.mrf.mxu0
    %1752 = vdwg.mxu0
    %v1757 = vunpack.c.l.b16 %v1667
    %v1758 = vunpack.c.l.b16 %v1668
    %v1759 = vunpack.c.l.b16 %v1669
    %v1760 = vunpack.c.l.b16 %v1670
    %v1761 = vpack.c.b16 %v1758, %v1757
    %v1762 = vpack.c.b16 %v1760, %v1759
    %v1766 = vsel %vm223, %v1661, 0
    %1768 = vmatprep.subr.bf16.mxu0 0
    %1769 = vmatpush1.bf16.msra.mxu0 0
    %1770 = vmatprep.subr.bf16.mxu0 0
    %1771 = vmatpush1.bf16.msra.mxu0 0
    %1772 = vmatprep.subr.bf16.mxu0 0
    %1773 = vmatpush1.bf16.msra.mxu0 0
    %1774 = vmatprep.subr.bf16.mxu0 0
    %1775 = vmatpush1.bf16.msra.mxu0 0
    %1776 = vmatprep.subr.bf16.mxu0 0
    %1777 = vmatpush1.bf16.msra.mxu0 0
    %1778 = vmatprep.subr.bf16.mxu0 0
    %1779 = vmatpush1.bf16.msra.mxu0 0
    %1780 = vmatprep.subr.bf16.mxu0 0
    %1781 = vmatpush1.bf16.msra.mxu0 %v1762
    %1782 = vmatprep.subr.bf16.mxu0 0
    %1783 = vmatpush1.bf16.msra.mxu0 %v1761
    %1784 = vmatprep.subr.bf16.mxu0 0
    %1785 = vmatpush2.bf16.msra.mxu0 0
    %1786 = vmatprep.subr.bf16.mxu0 0
    %1787 = vmatpush2.bf16.msra.mxu0 0
    %1788 = vmatprep.subr.bf16.mxu0 0
    %1789 = vmatpush2.bf16.msra.mxu0 0
    %1790 = vmatprep.subr.bf16.mxu0 0
    %1791 = vmatpush2.bf16.msra.mxu0 0
    %1792 = vmatprep.subr.bf16.mxu0 0
    %1793 = vmatpush2.bf16.msra.mxu0 0
    %1794 = vmatprep.subr.bf16.mxu0 0
    %1795 = vmatpush2.bf16.msra.mxu0 0
    %1796 = vmatprep.subr.bf16.mxu0 0
    %1797 = vmatpush2.bf16.msra.mxu0 0
    %1798 = vmatprep.subr.bf16.mxu0 0
    %1799 = vmatpush2.bf16.msra.mxu0 0
    %1800 = vmatprep.mubr.bf16.mxu0 0
    %1801 = vmatmul.mubr.bf16.gmra.mxu0 %v1766
    %v1802 = vpop.f32.mrf.mxu0
    %v1803 = vadd.f32 0.0, %v1802
    %v1804 = vpop.f32.mrf.mxu0
    %v1805 = vpop.f32.mrf.mxu0
    %v1806 = vadd.f32 0.0, %v1805
    %v1807 = vpop.f32.mrf.mxu0
    %1808 = vdwg.mxu0
    %v1811 = vunpack.c.l.s4 1966171168
    %v1812 = vunpack.c.0.s8 %v1811
    %v1813 = vlaneseq
    %v1814 = vshrl.u32 %v1813, 7
    %v1815 = vsub.s32 %v1812, %v1814
    %v1816 = vrot.slane %v1748, %v1815
    %v1817 = vcombine.high %v1816, %v1816
    %v1819 = vunpack.c.l.s4 1966171168
    %v1820 = vunpack.c.0.s8 %v1819
    %v1821 = vlaneseq
    %v1822 = vshrl.u32 %v1821, 7
    %v1823 = vsub.s32 %v1820, %v1822
    %v1824 = vrot.slane %v1816, %v1823
    %v1826 = vunpack.c.l.s4 1966171168
    %v1827 = vunpack.c.0.s8 %v1826
    %v1828 = vlaneseq
    %v1829 = vshrl.u32 %v1828, 7
    %v1830 = vsub.s32 %v1827, %v1829
    %v1831 = vrot.slane %v1817, %v1830
    %v1832 = vlaneseq
    %v1833 = vshrl.u32 %v1832, 7
    %v1834 = vsub.s32 0, %v1833
    %v1835 = vrot.slane %v1824, %v1834
    %v1836 = vlaneseq
    %v1837 = vshrl.u32 %v1836, 7
    %v1838 = vsub.s32 0, %v1837
    %v1839 = vrot.slane %v1831, %v1838
    %v1842 = vadd.f32 %v1803, %v1835
    %v1843 = vadd.f32 %v1806, %v1839
    %v1844 = vmax.f32 %v1842, 0.0
    %v1845 = vmax.f32 %v1843, 0.0
    %v1846 = vpack.c.bf16 %v1844, %v1844
    %v1847 = vpack.c.bf16 %v1845, %v1845
    %s1848 = scalar_lea.vmem %s5, 64
    %v1849 = vld [vmem:[%s1848] sm:$0xf]
    %v1850 = vld [vmem:[%s1848 + $0x4] sm:$0xf]
    %v1851 = vld [vmem:[%s1848 + $0x8] sm:$0xf]
    %v1852 = vld [vmem:[%s1848 + $0xc] sm:$0xf]
    %v1855 = vunpack.c.l.b16 %v1846
    %v1856 = vunpack.c.l.b16 %v1847
    %v1857 = vpack.c.b16 %v1856, %v1855
    %v1862 = vunpack.c.l.b16 %v1849
    %v1863 = vunpack.c.l.b16 %v1850
    %v1864 = vunpack.c.l.b16 %v1851
    %v1865 = vunpack.c.l.b16 %v1852
    %v1866 = vpack.c.b16 %v1863, %v1862
    %v1867 = vpack.c.b16 %v1865, %v1864
    %v1871 = vsel %vm223, %v1857, 0
    %1873 = vmatprep.subr.bf16.mxu0 0
    %1874 = vmatpush1.bf16.msra.mxu0 0
    %1875 = vmatprep.subr.bf16.mxu0 0
    %1876 = vmatpush1.bf16.msra.mxu0 0
    %1877 = vmatprep.subr.bf16.mxu0 0
    %1878 = vmatpush1.bf16.msra.mxu0 0
    %1879 = vmatprep.subr.bf16.mxu0 0
    %1880 = vmatpush1.bf16.msra.mxu0 0
    %1881 = vmatprep.subr.bf16.mxu0 0
    %1882 = vmatpush1.bf16.msra.mxu0 0
    %1883 = vmatprep.subr.bf16.mxu0 0
    %1884 = vmatpush1.bf16.msra.mxu0 0
    %1885 = vmatprep.subr.bf16.mxu0 0
    %1886 = vmatpush1.bf16.msra.mxu0 %v1867
    %1887 = vmatprep.subr.bf16.mxu0 0
    %1888 = vmatpush1.bf16.msra.mxu0 %v1866
    %1889 = vmatprep.subr.bf16.mxu0 0
    %1890 = vmatpush2.bf16.msra.mxu0 0
    %1891 = vmatprep.subr.bf16.mxu0 0
    %1892 = vmatpush2.bf16.msra.mxu0 0
    %1893 = vmatprep.subr.bf16.mxu0 0
    %1894 = vmatpush2.bf16.msra.mxu0 0
    %1895 = vmatprep.subr.bf16.mxu0 0
    %1896 = vmatpush2.bf16.msra.mxu0 0
    %1897 = vmatprep.subr.bf16.mxu0 0
    %1898 = vmatpush2.bf16.msra.mxu0 0
    %1899 = vmatprep.subr.bf16.mxu0 0
    %1900 = vmatpush2.bf16.msra.mxu0 0
    %1901 = vmatprep.subr.bf16.mxu0 0
    %1902 = vmatpush2.bf16.msra.mxu0 0
    %1903 = vmatprep.subr.bf16.mxu0 0
    %1904 = vmatpush2.bf16.msra.mxu0 0
    %1905 = vmatprep.mubr.bf16.mxu0 0
    %1906 = vmatmul.mubr.bf16.gmra.mxu0 %v1871
    %v1907 = vpop.f32.mrf.mxu0
    %v1908 = vadd.f32 0.0, %v1907
    %v1909 = vpop.f32.mrf.mxu0
    %v1910 = vpop.f32.mrf.mxu0
    %v1911 = vadd.f32 0.0, %v1910
    %v1912 = vpop.f32.mrf.mxu0
    %1913 = vdwg.mxu0
    %s1914 = scalar_lea.vmem %s6, 4
    %v1915 = vld [vmem:[%s1914] sm:$0x1]
    %v1917 = vlaneseq
    %v1918 = vshrl.u32 %v1917, 7
    %v1919 = vsub.s32 0, %v1918
    %v1920 = vrot.slane %v1915, %v1919
    %v1924 = vunpack.c.l.b16 %v1662
    %v1925 = vunpack.c.l.b16 %v1663
    %v1926 = vsel %vm405, %v1925, %v1924
    %v1927 = vpack.c.b16 %v1926, %v1926
    %v1932 = vunpack.c.l.b16 %v1680
    %v1933 = vunpack.c.l.b16 %v1681
    %v1934 = vunpack.c.l.b16 %v1682
    %v1935 = vunpack.c.l.b16 %v1683
    %v1936 = vpack.c.b16 %v1933, %v1932
    %v1937 = vpack.c.b16 %v1935, %v1934
    %v1941 = vsel %vm223, %v1927, 0
    %1943 = vmatprep.subr.bf16.mxu0 0
    %1944 = vmatpush1.bf16.msra.mxu0 0
    %1945 = vmatprep.subr.bf16.mxu0 0
    %1946 = vmatpush1.bf16.msra.mxu0 0
    %1947 = vmatprep.subr.bf16.mxu0 0
    %1948 = vmatpush1.bf16.msra.mxu0 0
    %1949 = vmatprep.subr.bf16.mxu0 0
    %1950 = vmatpush1.bf16.msra.mxu0 0
    %1951 = vmatprep.subr.bf16.mxu0 0
    %1952 = vmatpush1.bf16.msra.mxu0 0
    %1953 = vmatprep.subr.bf16.mxu0 0
    %1954 = vmatpush1.bf16.msra.mxu0 0
    %1955 = vmatprep.subr.bf16.mxu0 0
    %1956 = vmatpush1.bf16.msra.mxu0 %v1937
    %1957 = vmatprep.subr.bf16.mxu0 0
    %1958 = vmatpush1.bf16.msra.mxu0 %v1936
    %1959 = vmatprep.subr.bf16.mxu0 0
    %1960 = vmatpush2.bf16.msra.mxu0 0
    %1961 = vmatprep.subr.bf16.mxu0 0
    %1962 = vmatpush2.bf16.msra.mxu0 0
    %1963 = vmatprep.subr.bf16.mxu0 0
    %1964 = vmatpush2.bf16.msra.mxu0 0
    %1965 = vmatprep.subr.bf16.mxu0 0
    %1966 = vmatpush2.bf16.msra.mxu0 0
    %1967 = vmatprep.subr.bf16.mxu0 0
    %1968 = vmatpush2.bf16.msra.mxu0 0
    %1969 = vmatprep.subr.bf16.mxu0 0
    %1970 = vmatpush2.bf16.msra.mxu0 0
    %1971 = vmatprep.subr.bf16.mxu0 0
    %1972 = vmatpush2.bf16.msra.mxu0 0
    %1973 = vmatprep.subr.bf16.mxu0 0
    %1974 = vmatpush2.bf16.msra.mxu0 0
    %1975 = vmatprep.mubr.bf16.mxu0 0
    %1976 = vmatmul.mubr.bf16.gmra.mxu0 %v1941
    %v1977 = vpop.f32.mrf.mxu0
    %v1978 = vadd.f32 %v1920, %v1977
    %v1979 = vpop.f32.mrf.mxu0
    %v1980 = vpop.f32.mrf.mxu0
    %v1981 = vpop.f32.mrf.mxu0
    %1982 = vdwg.mxu0
    %v1987 = vunpack.c.l.b16 %v1676
    %v1988 = vunpack.c.l.b16 %v1677
    %v1989 = vunpack.c.l.b16 %v1678
    %v1990 = vunpack.c.l.b16 %v1679
    %v1991 = vpack.c.b16 %v1988, %v1987
    %v1992 = vpack.c.b16 %v1990, %v1989
    %v1996 = vsel %vm223, %v1658, 0
    %1998 = vmatprep.subr.bf16.mxu0 0
    %1999 = vmatpush1.bf16.msra.mxu0 0
    %2000 = vmatprep.subr.bf16.mxu0 0
    %2001 = vmatpush1.bf16.msra.mxu0 0
    %2002 = vmatprep.subr.bf16.mxu0 0
    %2003 = vmatpush1.bf16.msra.mxu0 0
    %2004 = vmatprep.subr.bf16.mxu0 0
    %2005 = vmatpush1.bf16.msra.mxu0 0
    %2006 = vmatprep.subr.bf16.mxu0 0
    %2007 = vmatpush1.bf16.msra.mxu0 0
    %2008 = vmatprep.subr.bf16.mxu0 0
    %2009 = vmatpush1.bf16.msra.mxu0 0
    %2010 = vmatprep.subr.bf16.mxu0 0
    %2011 = vmatpush1.bf16.msra.mxu0 %v1992
    %2012 = vmatprep.subr.bf16.mxu0 0
    %2013 = vmatpush1.bf16.msra.mxu0 %v1991
    %2014 = vmatprep.subr.bf16.mxu0 0
    %2015 = vmatpush2.bf16.msra.mxu0 0
    %2016 = vmatprep.subr.bf16.mxu0 0
    %2017 = vmatpush2.bf16.msra.mxu0 0
    %2018 = vmatprep.subr.bf16.mxu0 0
    %2019 = vmatpush2.bf16.msra.mxu0 0
    %2020 = vmatprep.subr.bf16.mxu0 0
    %2021 = vmatpush2.bf16.msra.mxu0 0
    %2022 = vmatprep.subr.bf16.mxu0 0
    %2023 = vmatpush2.bf16.msra.mxu0 0
    %2024 = vmatprep.subr.bf16.mxu0 0
    %2025 = vmatpush2.bf16.msra.mxu0 0
    %2026 = vmatprep.subr.bf16.mxu0 0
    %2027 = vmatpush2.bf16.msra.mxu0 0
    %2028 = vmatprep.subr.bf16.mxu0 0
    %2029 = vmatpush2.bf16.msra.mxu0 0
    %2030 = vmatprep.mubr.bf16.mxu0 0
    %2031 = vmatmul.mubr.bf16.gmra.mxu0 %v1996
    %v2032 = vpop.f32.mrf.mxu0
    %v2033 = vadd.f32 %v1908, %v2032
    %v2034 = vpop.f32.mrf.mxu0
    %v2035 = vpop.f32.mrf.mxu0
    %v2036 = vadd.f32 %v1911, %v2035
    %v2037 = vpop.f32.mrf.mxu0
    %2038 = vdwg.mxu0
    %v2041 = vunpack.c.l.s4 1966171168
    %v2042 = vunpack.c.0.s8 %v2041
    %v2043 = vlaneseq
    %v2044 = vshrl.u32 %v2043, 7
    %v2045 = vsub.s32 %v2042, %v2044
    %v2046 = vrot.slane %v1978, %v2045
    %v2047 = vcombine.high %v2046, %v2046
    %v2049 = vunpack.c.l.s4 1966171168
    %v2050 = vunpack.c.0.s8 %v2049
    %v2051 = vlaneseq
    %v2052 = vshrl.u32 %v2051, 7
    %v2053 = vsub.s32 %v2050, %v2052
    %v2054 = vrot.slane %v2046, %v2053
    %v2056 = vunpack.c.l.s4 1966171168
    %v2057 = vunpack.c.0.s8 %v2056
    %v2058 = vlaneseq
    %v2059 = vshrl.u32 %v2058, 7
    %v2060 = vsub.s32 %v2057, %v2059
    %v2061 = vrot.slane %v2047, %v2060
    %v2062 = vlaneseq
    %v2063 = vshrl.u32 %v2062, 7
    %v2064 = vsub.s32 0, %v2063
    %v2065 = vrot.slane %v2054, %v2064
    %v2066 = vlaneseq
    %v2067 = vshrl.u32 %v2066, 7
    %v2068 = vsub.s32 0, %v2067
    %v2069 = vrot.slane %v2061, %v2068
    %v2072 = vadd.f32 %v2033, %v2065
    %v2073 = vadd.f32 %v2036, %v2069
    %v2074 = vsel %vm223, %v2072, -inf
    %v2075 = vrot.slane %v2074, 4
    %v2076 = vmax.f32 %v2074, %v2075
    %v2077 = vrot.slane %v2076, 2
    %v2078 = vmax.f32 %v2076, %v2077
    %v2079 = vrot.slane %v2078, 1
    %v2080 = vmax.f32 %v2078, %v2079
    %v2081 = vsel %vm223, %v2073, -inf
    %v2082 = vrot.slane %v2081, 4
    %v2083 = vmax.f32 %v2081, %v2082
    %v2084 = vrot.slane %v2083, 2
    %v2085 = vmax.f32 %v2083, %v2084
    %v2086 = vrot.slane %v2085, 1
    %v2087 = vmax.f32 %v2085, %v2086
    %v2088 = vmax.f32 %v2080, 0.0
    %v2089 = vmax.f32 %v2087, 0.0
    %v2090 = vpack.c.bf16 %v2088, %v2088
    %v2091 = vpack.c.bf16 %v2089, %v2089
    %v2092 = vld [vmem:[%s8] sm:$0xf]
    %v2093 = vld [vmem:[%s8 + $0x4] sm:$0xf]
    %v2094 = vld [vmem:[%s8 + $0x8] sm:$0xf]
    %v2095 = vld [vmem:[%s8 + $0xc] sm:$0xf]
    %v2096 = vld [vmem:[%s9] sm:$0x1]
    %v2098 = vlaneseq
    %v2099 = vshrl.u32 %v2098, 7
    %v2100 = vsub.s32 0, %v2099
    %v2101 = vrot.slane %v2096, %v2100
    %v2105 = vunpack.c.l.b16 %v2090
    %v2106 = vunpack.c.l.b16 %v2091
    %v2107 = vsel %vm405, %v2106, %v2105
    %v2108 = vpack.c.b16 %v2107, %v2107
    %v2113 = vunpack.c.l.b16 %v2092
    %v2114 = vunpack.c.l.b16 %v2093
    %v2115 = vunpack.c.l.b16 %v2094
    %v2116 = vunpack.c.l.b16 %v2095
    %v2117 = vpack.c.b16 %v2114, %v2113
    %v2118 = vpack.c.b16 %v2116, %v2115
    %v2122 = vsel %vm223, %v2108, 0
    %2124 = vmatprep.subr.bf16.mxu0 0
    %2125 = vmatpush1.bf16.msra.mxu0 0
    %2126 = vmatprep.subr.bf16.mxu0 0
    %2127 = vmatpush1.bf16.msra.mxu0 0
    %2128 = vmatprep.subr.bf16.mxu0 0
    %2129 = vmatpush1.bf16.msra.mxu0 0
    %2130 = vmatprep.subr.bf16.mxu0 0
    %2131 = vmatpush1.bf16.msra.mxu0 0
    %2132 = vmatprep.subr.bf16.mxu0 0
    %2133 = vmatpush1.bf16.msra.mxu0 0
    %2134 = vmatprep.subr.bf16.mxu0 0
    %2135 = vmatpush1.bf16.msra.mxu0 0
    %2136 = vmatprep.subr.bf16.mxu0 0
    %2137 = vmatpush1.bf16.msra.mxu0 %v2118
    %2138 = vmatprep.subr.bf16.mxu0 0
    %2139 = vmatpush1.bf16.msra.mxu0 %v2117
    %2140 = vmatprep.subr.bf16.mxu0 0
    %2141 = vmatpush2.bf16.msra.mxu0 0
    %2142 = vmatprep.subr.bf16.mxu0 0
    %2143 = vmatpush2.bf16.msra.mxu0 0
    %2144 = vmatprep.subr.bf16.mxu0 0
    %2145 = vmatpush2.bf16.msra.mxu0 0
    %2146 = vmatprep.subr.bf16.mxu0 0
    %2147 = vmatpush2.bf16.msra.mxu0 0
    %2148 = vmatprep.subr.bf16.mxu0 0
    %2149 = vmatpush2.bf16.msra.mxu0 0
    %2150 = vmatprep.subr.bf16.mxu0 0
    %2151 = vmatpush2.bf16.msra.mxu0 0
    %2152 = vmatprep.subr.bf16.mxu0 0
    %2153 = vmatpush2.bf16.msra.mxu0 0
    %2154 = vmatprep.subr.bf16.mxu0 0
    %2155 = vmatpush2.bf16.msra.mxu0 0
    %2156 = vmatprep.mubr.bf16.mxu0 0
    %2157 = vmatmul.mubr.bf16.gmra.mxu0 %v2122
    %v2158 = vpop.f32.mrf.mxu0
    %v2159 = vadd.f32 %v2101, %v2158
    %v2160 = vpop.f32.mrf.mxu0
    %v2161 = vpop.f32.mrf.mxu0
    %v2162 = vpop.f32.mrf.mxu0
    %2163 = vdwg.mxu0
    %2164 = vst [vmem:[#allocation2] sm:$0x3] %v2159
    // Predicated region
    $region42: #{tpu_custom_call.1} parent=1 // pred_check
      _
    $region43: #{tpu_custom_call.1} parent=1 // pred_check_branch
      %2166 = sbr.rel (0) target = $region45
    $region44: #{tpu_custom_call.1} parent=1 // pred_region
      %s2168 = ssub.s32 32, 32
      %2169 = vsyncadd [#allocation3], %s2168
      %s2171 = sshll.u32 [#allocation2], 4
      %s2172 = int_to_ptr.vmem [resolvable:$true] %s2171
      %2174 = dma.vmem_to_hbm [thread:$0]  %s2172, 32, %s10, [#allocation3]
    $region45: #{tpu_custom_call.1} parent=1 // pred_fallthru
      _
    // Predicated region
    $region46: #{tpu_custom_call.1} parent=1 // pred_check
      _
    $region47: #{tpu_custom_call.1} parent=1 // pred_check_branch
      %2176 = sbr.rel (0) target = $region49
    $region48: #{tpu_custom_call.1} parent=1 // pred_region
      %2177 = dma.done [#allocation3], 32
    $region49: #{tpu_custom_call.1} parent=1 // pred_fallthru
      _
    %2178 = vsyncpa [#allocation3], 1

</llo_original>
